<compile_context>
chip_gen: v7x
topology: tpu7x:2x2x1
jax: 0.10.0
libtpu: 0.0.40
codegen_flags: <defaults>
</compile_context>

<pallas_src>
import math
import functools

import jax
import jax.numpy as jnp
from jax.experimental import pallas as pl
from jax.experimental.pallas import tpu as pltpu


# ----------------------------------------------------------------------------
# Fused forward kernel
# ----------------------------------------------------------------------------

def _fused_forward_kernel(t_ref, fw_ref, tsw1_ref, tsb1_ref, tsw2_ref, tsb2_ref,
                          x_ref, w_in_ref,
                          ln1_ref, wqkv_ref, wo_ref, ln2_ref,
                          ffw1_ref, ffb1_ref, ffw2_ref, ffb2_ref,
                          cos_ref, sin_ref, w_out_ref,
                          o_ref, h_ref,
                          *, B, T, C, D, H, Dh, S_pad, inner, depth):
    l = pl.program_id(0)
    M = B * S_pad
    n_real = T + 1                       # prepended global token + T data tokens
    half = Dh // 2
    scale = 1.0 / math.sqrt(Dh)

    # ---------------- grid step 0: build the residual stream in VMEM ----------------
    @pl.when(l == 0)
    def _init():
        # FourierFeatures(t) -> Linear -> SiLU -> Linear  (timestep / global embedding)
        f = (2.0 * math.pi) * t_ref[...] * fw_ref[...]                    # (B, F2)
        feat = jnp.concatenate([jnp.cos(f), jnp.sin(f)], axis=-1)         # (B, 2*F2)
        h1 = jnp.dot(feat.astype(jnp.bfloat16), tsw1_ref[...],
                     preferred_element_type=jnp.float32) + tsb1_ref[...]
        h1 = h1 * jax.nn.sigmoid(h1)                                      # SiLU
        temb = jnp.dot(h1.astype(jnp.bfloat16), tsw2_ref[...],
                       preferred_element_type=jnp.float32) + tsb2_ref[...]  # (B, D)

        # project_in(preprocess_conv(x) + x): k=1 conv + residual pre-folded into w_in
        xt = x_ref[...].reshape(B * T, C)                                 # (B*T, C) f32
        tok = jnp.dot(xt.astype(jnp.bfloat16), w_in_ref[...],
                      preferred_element_type=jnp.float32)                 # (B*T, D)

        h_ref[...] = jnp.zeros((M, D), jnp.float32)
        for b in range(B):
            h_ref[pl.ds(b * S_pad, 1), :] = temb[b:b + 1, :]              # prepend token
            h_ref[pl.ds(b * S_pad + 1, T), :] = tok[b * T:(b + 1) * T, :]

    # ---------------- transformer block l ----------------
    x = h_ref[...]                                                        # (M, D) f32

    def layernorm(v, g):                                                  # gamma-only, eps 1e-5
        mu = jnp.mean(v, axis=-1, keepdims=True)
        vc = v - mu
        var = jnp.mean(vc * vc, axis=-1, keepdims=True)
        return vc * jax.lax.rsqrt(var + 1e-5) * g

    hn = layernorm(x, ln1_ref[0])
    qkv = jnp.dot(hn.astype(jnp.bfloat16), wqkv_ref[0],
                  preferred_element_type=jnp.float32)                     # (M, 3D)

    cosT = cos_ref[...]                                                   # (M, Dh)
    sinT = sin_ref[...]                                                   # (M, Dh) sign-folded

    def rope(u):                                                          # (M, Dh), rot_dim == Dh
        return u * cosT + pltpu.roll(u, half, axis=1) * sinT

    # additive key-padding bias (only the pad rows beyond prepend+T are masked)
    kpos = jax.lax.broadcasted_iota(jnp.int32, (1, 1, S_pad), 2)
    key_bias = jnp.where(kpos < n_real, 0.0, -1e30).astype(jnp.float32)   # (1, 1, S_pad)

    head_outs = []
    for hi in range(H):
        q = rope(qkv[:, hi * Dh:(hi + 1) * Dh]).reshape(B, S_pad, Dh)
        k = rope(qkv[:, D + hi * Dh:D + (hi + 1) * Dh]).reshape(B, S_pad, Dh)
        v = qkv[:, 2 * D + hi * Dh:2 * D + (hi + 1) * Dh].reshape(B, S_pad, Dh)
        s = jnp.einsum('bqd,bkd->bqk', q.astype(jnp.bfloat16), k.astype(jnp.bfloat16),
                       preferred_element_type=jnp.float32) * scale + key_bias
        m = jnp.max(s, axis=-1, keepdims=True)
        p = jnp.exp(s - m)
        lsum = jnp.sum(p, axis=-1, keepdims=True)
        o = jnp.einsum('bqk,bkd->bqd', p.astype(jnp.bfloat16), v.astype(jnp.bfloat16),
                       preferred_element_type=jnp.float32)
        head_outs.append(o * pl.reciprocal(lsum, approx=True))
    attn = jnp.concatenate(head_outs, axis=-1).reshape(M, D)              # (M, D)
    attn = jnp.dot(attn.astype(jnp.bfloat16), wo_ref[0],
                   preferred_element_type=jnp.float32)
    x = x + attn

    # SwiGLU feed-forward
    hn2 = layernorm(x, ln2_ref[0])
    glu = jnp.dot(hn2.astype(jnp.bfloat16), ffw1_ref[0],
                  preferred_element_type=jnp.float32) + ffb1_ref[0]       # (M, 2*inner)
    a = glu[:, :inner]
    g = glu[:, inner:]
    gated = a * (g * jax.nn.sigmoid(g))
    ff = jnp.dot(gated.astype(jnp.bfloat16), ffw2_ref[0],
                 preferred_element_type=jnp.float32) + ffb2_ref[0]
    x = x + ff

    h_ref[...] = x

    # ---------------- last grid step: fused output projection ----------------
    @pl.when(l == depth - 1)
    def _final():
        # project_out + (postprocess_conv + residual), folded into w_out; drop prepend/pad rows
        out_all = jnp.dot(x.astype(jnp.bfloat16), w_out_ref[...],
                          preferred_element_type=jnp.float32)             # (M, C)
        for b in range(B):
            o_ref[b] = out_all[b * S_pad + 1: b * S_pad + 1 + T, :].astype(o_ref.dtype)


# ----------------------------------------------------------------------------
# Wrapper
# ----------------------------------------------------------------------------

def diffusion_transformer_forward(params, x, t, *, embed_dim, num_heads):
    # x: (B, C, T), t: (B,)   cfg_scale=1.0, no conditioning -> direct _forward path.
    B, C, T = x.shape
    D = embed_dim
    H = num_heads
    Dh = D // H
    S = T + 1                                          # prepended global-cond token
    S_pad = ((S + 7) // 8) * 8                         # pad seq to a sublane multiple
    M = B * S_pad

    depth = params["w_qkv"].shape[0]
    inner = params["ff_w2"].shape[1]
    F2 = params["fourier_w"].shape[1]

    # only remaining host-side glue: channel-last layout in / out (one tiny op each)
    x_btc = jnp.transpose(x, (0, 2, 1)).astype(jnp.float32)     # (B, T, C)
    t_col = t.reshape(B, 1).astype(jnp.float32)

    # Rotary tables: RotaryEmbedding(max(Dh//2, 32)); here rot_dim == Dh (fully rotated).
    # Shape-only constants -> folded by XLA at compile time.
    rot_dim = min(max(Dh // 2, 32), Dh)
    assert rot_dim == Dh, "TODO(synk): partial-rotation tail (rot_dim < dim_head) not implemented"
    inv_freq = 1.0 / (10000.0 ** (jnp.arange(0, Dh, 2, dtype=jnp.float32) / Dh))
    fr = jnp.arange(S_pad, dtype=jnp.float32)[:, None] * inv_freq[None, :]   # (S_pad, Dh/2)
    cos_h = jnp.concatenate([jnp.cos(fr), jnp.cos(fr)], axis=-1)             # (S_pad, Dh)
    sin_h = jnp.concatenate([-jnp.sin(fr), jnp.sin(fr)], axis=-1)            # sign-folded
    cosT = jnp.tile(cos_h, (B, 1))                                           # (M, Dh)
    sinT = jnp.tile(sin_h, (B, 1))

    kern = functools.partial(_fused_forward_kernel, B=B, T=T, C=C, D=D, H=H,
                             Dh=Dh, S_pad=S_pad, inner=inner, depth=depth)

    out_btc = pl.pallas_call(
        kern,
        out_shape=jax.ShapeDtypeStruct((B, T, C), jnp.float32),
        grid=(depth,),
        in_specs=[
            pl.BlockSpec((B, 1), lambda l: (0, 0)),                    # t
            pl.BlockSpec((1, F2), lambda l: (0, 0)),                   # fourier weight
            pl.BlockSpec((2 * F2, D), lambda l: (0, 0)),               # ts_w1
            pl.BlockSpec((1, D), lambda l: (0, 0)),                    # ts_b1
            pl.BlockSpec((D, D), lambda l: (0, 0)),                    # ts_w2
            pl.BlockSpec((1, D), lambda l: (0, 0)),                    # ts_b2
            pl.BlockSpec((B, T, C), lambda l: (0, 0, 0)),              # x (channel-last)
            pl.BlockSpec((C, D), lambda l: (0, 0)),                    # folded in-proj
            pl.BlockSpec((1, 1, D), lambda l: (l, 0, 0)),              # ln1 gamma
            pl.BlockSpec((1, D, 3 * D), lambda l: (l, 0, 0)),          # fused qkv weight
            pl.BlockSpec((1, D, D), lambda l: (l, 0, 0)),              # attn out-proj
            pl.BlockSpec((1, 1, D), lambda l: (l, 0, 0)),              # ln2 gamma
            pl.BlockSpec((1, D, 2 * inner), lambda l: (l, 0, 0)),      # ff w1
            pl.BlockSpec((1, 1, 2 * inner), lambda l: (l, 0, 0)),      # ff b1
            pl.BlockSpec((1, inner, D), lambda l: (l, 0, 0)),          # ff w2
            pl.BlockSpec((1, 1, D), lambda l: (l, 0, 0)),              # ff b2
            pl.BlockSpec((M, Dh), lambda l: (0, 0)),                   # rotary cos (tiled)
            pl.BlockSpec((M, Dh), lambda l: (0, 0)),                   # rotary sin (signed)
            pl.BlockSpec((D, C), lambda l: (0, 0)),                    # folded out-proj
        ],
        out_specs=pl.BlockSpec((B, T, C), lambda l: (0, 0, 0)),
        scratch_shapes=[pltpu.VMEM((M, D), jnp.float32)],              # residual stream
        compiler_params=pltpu.CompilerParams(dimension_semantics=("arbitrary",)),
    )(t_col, params["fourier_w"], params["ts_w1"], params["ts_b1"],
      params["ts_w2"], params["ts_b2"], x_btc, params["w_in"],
      params["ln1_g"], params["w_qkv"], params["w_o"], params["ln2_g"],
      params["ff_w1"], params["ff_b1"], params["ff_w2"], params["ff_b2"],
      cosT, sinT, params["w_out"])

    return jnp.transpose(out_btc, (0, 2, 1))                          # (B, C, T)


# ----------------------------------------------------------------------------
# Parameters (deterministic init; shapes follow the module __init__).
# Per-layer weights stacked along a leading depth axis; k=1 pre/post convs (+ residual)
# folded into the in/out projection weights; MXU operands pre-cast to bf16.
# ----------------------------------------------------------------------------

def init_params(key, io_channels, embed_dim, depth, num_heads, ff_mult=4,
                timestep_features_dim=256):
    C, D = io_channels, embed_dim
    inner = D * ff_mult
    F2 = timestep_features_dim // 2
    bf16 = jnp.bfloat16

    def nrm(k, shape, scl):
        return jax.random.normal(k, shape, dtype=jnp.float32) * scl

    keys = jax.random.split(key, 10)

    # FourierFeatures(1, 256): weight stored transposed as (1, 128), f32 (feeds cos/sin)
    fourier_w = nrm(keys[0], (1, F2), 1.0)
    # to_timestep_embed: Linear(256, D) -> SiLU -> Linear(D, D)  (bias=True)
    ts_w1 = nrm(keys[1], (timestep_features_dim, D), 0.05)
    ts_w2 = nrm(keys[2], (D, D), 0.05)

    # preprocess/postprocess Conv1d(k=1, bias=False) are zero-init in the module; they are
    # folded (with their +x residual) into the projections:  w_in = (pre + I) @ proj_in,
    # w_out = proj_out @ (post + I)  -- exact for k=1 convs, still correct if non-zero.
    pre_conv_w = jnp.zeros((C, C), jnp.float32)
    post_conv_w = jnp.zeros((C, C), jnp.float32)
    proj_in_w = nrm(keys[3], (C, D), 0.05)
    proj_out_w = nrm(keys[4], (D, C), 0.05)
    eye_c = jnp.eye(C, dtype=jnp.float32)
    w_in = (eye_c + pre_conv_w) @ proj_in_w                       # (C, D)
    w_out = proj_out_w @ (eye_c + post_conv_w)                    # (D, C)

    # Transformer layers, stacked along depth. wq/wkv fused into one (D, 3D) weight.
    # NOTE: reference zero-inits attn to_out / ff out (zero_init_branch_outputs=True);
    # random-init deterministically so the kernel exercises real compute.
    w_qkv = jnp.stack([nrm(jax.random.fold_in(keys[5], i), (D, 3 * D), 0.05)
                       for i in range(depth)])
    w_o = jnp.stack([nrm(jax.random.fold_in(keys[6], i), (D, D), 0.05)
                     for i in range(depth)])
    ff_w1 = jnp.stack([nrm(jax.random.fold_in(keys[7], i), (D, 2 * inner), 0.05)
                       for i in range(depth)])
    ff_w2 = jnp.stack([nrm(jax.random.fold_in(keys[8], i), (inner, D), 0.05)
                       for i in range(depth)])

    return {
        "fourier_w": fourier_w,
        "ts_w1": ts_w1.astype(bf16), "ts_b1": jnp.zeros((1, D), jnp.float32),
        "ts_w2": ts_w2.astype(bf16), "ts_b2": jnp.zeros((1, D), jnp.float32),
        "w_in": w_in.astype(bf16), "w_out": w_out.astype(bf16),
        "ln1_g": jnp.ones((depth, 1, D), jnp.float32),
        "ln2_g": jnp.ones((depth, 1, D), jnp.float32),
        "w_qkv": w_qkv.astype(bf16), "w_o": w_o.astype(bf16),
        "ff_w1": ff_w1.astype(bf16), "ff_b1": jnp.zeros((depth, 1, 2 * inner), jnp.float32),
        "ff_w2": ff_w2.astype(bf16), "ff_b2": jnp.zeros((depth, 1, D), jnp.float32),
    }


# TODO(synk): the 'x-transformers' Encoder path, cross-attention / adaLN / prepend-cond /
# add-cond / input-concat branches, non-trivial masks, and the cfg_dropout / cfg_scale != 1
# batched CFG path are not exercised by this configuration and are not implemented.


# ----------------------------------------------------------------------------
# main
# ----------------------------------------------------------------------------

if __name__ == "__main__":
    IO_CHANNELS = 16
    EMBED_DIM = 64
    DEPTH = 2
    NUM_HEADS = 2
    B, T = 2, 16

    key = jax.random.PRNGKey(0)
    k_param, k_x, k_t = jax.random.split(key, 3)

    params = init_params(k_param, IO_CHANNELS, EMBED_DIM, DEPTH, NUM_HEADS)

    x = jax.random.normal(k_x, (B, IO_CHANNELS, T), dtype=jnp.float32)   # (B, C, T)
    t = jax.random.uniform(k_t, (B,), dtype=jnp.float32)                 # diffusion timestep

    fwd = jax.jit(functools.partial(diffusion_transformer_forward,
                                    embed_dim=EMBED_DIM, num_heads=NUM_HEADS))
    out = fwd(params, x, t)
    out = jax.block_until_ready(out)

    assert out.shape == (B, IO_CHANNELS, T), out.shape
    assert jnp.all(jnp.isfinite(out))
    print("KERNEL_OK")
</pallas_src>

<mosaic_0001>
module attributes {stable_mosaic.version = 11 : i64} {
  func.func @_fused_forward_kernel(%arg0: i32, %arg1: memref<2x1xf32, #tpu.memory_space<vmem>>, %arg2: memref<1x128xf32, #tpu.memory_space<vmem>>, %arg3: memref<256x64xbf16, #tpu.memory_space<vmem>>, %arg4: memref<1x64xf32, #tpu.memory_space<vmem>>, %arg5: memref<64x64xbf16, #tpu.memory_space<vmem>>, %arg6: memref<1x64xf32, #tpu.memory_space<vmem>>, %arg7: memref<2x16x16xf32, #tpu.memory_space<vmem>>, %arg8: memref<16x64xbf16, #tpu.memory_space<vmem>>, %arg9: memref<1x1x64xf32, #tpu.memory_space<vmem>>, %arg10: memref<1x64x192xbf16, #tpu.memory_space<vmem>>, %arg11: memref<1x64x64xbf16, #tpu.memory_space<vmem>>, %arg12: memref<1x1x64xf32, #tpu.memory_space<vmem>>, %arg13: memref<1x64x512xbf16, #tpu.memory_space<vmem>>, %arg14: memref<1x1x512xf32, #tpu.memory_space<vmem>>, %arg15: memref<1x256x64xbf16, #tpu.memory_space<vmem>>, %arg16: memref<1x1x64xf32, #tpu.memory_space<vmem>>, %arg17: memref<48x32xf32, #tpu.memory_space<vmem>>, %arg18: memref<48x32xf32, #tpu.memory_space<vmem>>, %arg19: memref<64x16xbf16, #tpu.memory_space<vmem>>, %arg20: memref<2x16x16xf32, #tpu.memory_space<vmem>>, %arg21: memref<48x64xf32, #tpu.memory_space<vmem>>) attributes {dimension_semantics = [#tpu.dimension_semantics<arbitrary>], iteration_bounds = array<i64: 2>, scalar_prefetch = 0 : i64, scratch_operands = 1 : i64, tpu.core_type = #tpu.core_type<tc>, window_params = [{pipeline_mode = #tpu.pipeline_mode<synchronous>, transform_indices = @transform_0, window_bounds = array<i64: 2, 1>}, {pipeline_mode = #tpu.pipeline_mode<synchronous>, transform_indices = @transform_1, window_bounds = array<i64: 1, 128>}, {pipeline_mode = #tpu.pipeline_mode<synchronous>, transform_indices = @transform_2, window_bounds = array<i64: 256, 64>}, {pipeline_mode = #tpu.pipeline_mode<synchronous>, transform_indices = @transform_3, window_bounds = array<i64: 1, 64>}, {pipeline_mode = #tpu.pipeline_mode<synchronous>, transform_indices = @transform_4, window_bounds = array<i64: 64, 64>}, {pipeline_mode = #tpu.pipeline_mode<synchronous>, transform_indices = @transform_5, window_bounds = array<i64: 1, 64>}, {pipeline_mode = #tpu.pipeline_mode<synchronous>, transform_indices = @transform_6, window_bounds = array<i64: 2, 16, 16>}, {pipeline_mode = #tpu.pipeline_mode<synchronous>, transform_indices = @transform_7, window_bounds = array<i64: 16, 64>}, {transform_indices = @transform_8, window_bounds = array<i64: 1, 1, 64>}, {transform_indices = @transform_9, window_bounds = array<i64: 1, 64, 192>}, {transform_indices = @transform_10, window_bounds = array<i64: 1, 64, 64>}, {transform_indices = @transform_11, window_bounds = array<i64: 1, 1, 64>}, {transform_indices = @transform_12, window_bounds = array<i64: 1, 64, 512>}, {transform_indices = @transform_13, window_bounds = array<i64: 1, 1, 512>}, {transform_indices = @transform_14, window_bounds = array<i64: 1, 256, 64>}, {transform_indices = @transform_15, window_bounds = array<i64: 1, 1, 64>}, {pipeline_mode = #tpu.pipeline_mode<synchronous>, transform_indices = @transform_16, window_bounds = array<i64: 48, 32>}, {pipeline_mode = #tpu.pipeline_mode<synchronous>, transform_indices = @transform_17, window_bounds = array<i64: 48, 32>}, {pipeline_mode = #tpu.pipeline_mode<synchronous>, transform_indices = @transform_18, window_bounds = array<i64: 64, 16>}, {pipeline_mode = #tpu.pipeline_mode<synchronous>, transform_indices = @transform_19, window_bounds = array<i64: 2, 16, 16>}]} {
    %c0_i32 = arith.constant 0 : i32
    %0 = arith.cmpi eq, %arg0, %c0_i32 : i32
    %1 = arith.extui %0 : i1 to i32
    %c0_i32_0 = arith.constant 0 : i32
    %2 = arith.cmpi ne, %1, %c0_i32_0 : i32
    scf.if %2 {
      %c0_62 = arith.constant 0 : index
      %c0_63 = arith.constant 0 : index
      %161 = vector.load %arg1[%c0_62, %c0_63] : memref<2x1xf32, #tpu.memory_space<vmem>>, vector<2x1xf32>
      %cst_64 = arith.constant 6.28318548 : f32
      %162 = vector.broadcast %cst_64 : f32 to vector<2x1xf32>
      %163 = arith.mulf %162, %161 : vector<2x1xf32>
      %c0_65 = arith.constant 0 : index
      %c0_66 = arith.constant 0 : index
      %164 = vector.load %arg2[%c0_65, %c0_66] : memref<1x128xf32, #tpu.memory_space<vmem>>, vector<1x128xf32>
      %165 = vector.broadcast %163 : vector<2x1xf32> to vector<2x128xf32>
      %166 = vector.broadcast %164 : vector<1x128xf32> to vector<2x128xf32>
      %167 = arith.mulf %165, %166 : vector<2x128xf32>
      %168 = math.cos %167 : vector<2x128xf32>
      %169 = math.sin %167 : vector<2x128xf32>
      %170 = tpu.concatenate %168, %169 in 1 : vector<2x128xf32>, vector<2x128xf32> -> vector<2x256xf32>
      %171 = arith.truncf %170 : vector<2x256xf32> to vector<2x256xbf16>
      %c0_67 = arith.constant 0 : index
      %c0_68 = arith.constant 0 : index
      %172 = vector.load %arg3[%c0_67, %c0_68] : memref<256x64xbf16, #tpu.memory_space<vmem>>, vector<256x64xbf16>
      %cst_69 = arith.constant dense<0.000000e+00> : vector<2x64xf32>
      %173 = tpu.matmul %171, %172, %cst_69 {dimension_numbers = #tpu.dot_dimension_numbers<[1], [0], [0], [1], [0, 0, 1, 1], [], []>} : vector<2x256xbf16>, vector<256x64xbf16>, vector<2x64xf32> -> vector<2x64xf32>
      %c0_70 = arith.constant 0 : index
      %c0_71 = arith.constant 0 : index
      %174 = vector.load %arg4[%c0_70, %c0_71] : memref<1x64xf32, #tpu.memory_space<vmem>>, vector<1x64xf32>
      %175 = vector.broadcast %174 : vector<1x64xf32> to vector<2x64xf32>
      %176 = arith.addf %173, %175 : vector<2x64xf32>
      %177 = arith.negf %176 : vector<2x64xf32>
      %178 = math.exp %177 : vector<2x64xf32>
      %cst_72 = arith.constant 1.000000e+00 : f32
      %179 = vector.broadcast %cst_72 : f32 to vector<2x64xf32>
      %180 = arith.addf %179, %178 : vector<2x64xf32>
      %181 = arith.divf %179, %180 : vector<2x64xf32>
      %182 = arith.mulf %176, %181 : vector<2x64xf32>
      %183 = arith.truncf %182 : vector<2x64xf32> to vector<2x64xbf16>
      %c0_73 = arith.constant 0 : index
      %c0_74 = arith.constant 0 : index
      %184 = vector.load %arg5[%c0_73, %c0_74] : memref<64x64xbf16, #tpu.memory_space<vmem>>, vector<64x64xbf16>
      %cst_75 = arith.constant dense<0.000000e+00> : vector<2x64xf32>
      %185 = tpu.matmul %183, %184, %cst_75 {dimension_numbers = #tpu.dot_dimension_numbers<[1], [0], [0], [1], [0, 0, 1, 1], [], []>} : vector<2x64xbf16>, vector<64x64xbf16>, vector<2x64xf32> -> vector<2x64xf32>
      %c0_76 = arith.constant 0 : index
      %c0_77 = arith.constant 0 : index
      %186 = vector.load %arg6[%c0_76, %c0_77] : memref<1x64xf32, #tpu.memory_space<vmem>>, vector<1x64xf32>
      %187 = vector.broadcast %186 : vector<1x64xf32> to vector<2x64xf32>
      %188 = arith.addf %185, %187 : vector<2x64xf32>
      %c0_78 = arith.constant 0 : index
      %c0_79 = arith.constant 0 : index
      %c0_80 = arith.constant 0 : index
      %189 = vector.load %arg7[%c0_78, %c0_79, %c0_80] : memref<2x16x16xf32, #tpu.memory_space<vmem>>, vector<2x16x16xf32>
      %190 = vector.shape_cast %189 : vector<2x16x16xf32> to vector<32x16xf32>
      %191 = arith.truncf %190 : vector<32x16xf32> to vector<32x16xbf16>
      %c0_81 = arith.constant 0 : index
      %c0_82 = arith.constant 0 : index
      %192 = vector.load %arg8[%c0_81, %c0_82] : memref<16x64xbf16, #tpu.memory_space<vmem>>, vector<16x64xbf16>
      %cst_83 = arith.constant dense<0.000000e+00> : vector<32x64xf32>
      %193 = tpu.matmul %191, %192, %cst_83 {dimension_numbers = #tpu.dot_dimension_numbers<[1], [0], [0], [1], [0, 0, 1, 1], [], []>} : vector<32x16xbf16>, vector<16x64xbf16>, vector<32x64xf32> -> vector<32x64xf32>
      %cst_84 = arith.constant 0.000000e+00 : f32
      %194 = vector.broadcast %cst_84 : f32 to vector<48x64xf32>
      %c0_85 = arith.constant 0 : index
      %c0_86 = arith.constant 0 : index
      %195 = vector.load %arg21[%c0_85, %c0_86] : memref<48x64xf32, #tpu.memory_space<vmem>>, vector<48x64xf32>
      tpu.vector_store %arg21[%c0_85, %c0_86], %194 {strides = array<i32>} : memref<48x64xf32, #tpu.memory_space<vmem>>, vector<48x64xf32>,
      %196 = vector.extract_strided_slice %188 {offsets = [0, 0], sizes = [1, 64], strides = [1, 1]} : vector<2x64xf32> to vector<1x64xf32>
      %c0_87 = arith.constant 0 : index
      %c0_88 = arith.constant 0 : index
      %197 = vector.load %arg21[%c0_87, %c0_88] : memref<48x64xf32, #tpu.memory_space<vmem>>, vector<1x64xf32>
      tpu.vector_store %arg21[%c0_87, %c0_88], %196 {strides = array<i32>} : memref<48x64xf32, #tpu.memory_space<vmem>>, vector<1x64xf32>,
      %198 = vector.extract_strided_slice %193 {offsets = [0, 0], sizes = [16, 64], strides = [1, 1]} : vector<32x64xf32> to vector<16x64xf32>
      %c1 = arith.constant 1 : index
      %c0_89 = arith.constant 0 : index
      %199 = vector.load %arg21[%c1, %c0_89] : memref<48x64xf32, #tpu.memory_space<vmem>>, vector<16x64xf32>
      tpu.vector_store %arg21[%c1, %c0_89], %198 {strides = array<i32>} : memref<48x64xf32, #tpu.memory_space<vmem>>, vector<16x64xf32>,
      %200 = vector.extract_strided_slice %188 {offsets = [1, 0], sizes = [1, 64], strides = [1, 1]} : vector<2x64xf32> to vector<1x64xf32>
      %c24 = arith.constant 24 : index
      %c0_90 = arith.constant 0 : index
      %201 = vector.load %arg21[%c24, %c0_90] : memref<48x64xf32, #tpu.memory_space<vmem>>, vector<1x64xf32>
      tpu.vector_store %arg21[%c24, %c0_90], %200 {strides = array<i32>} : memref<48x64xf32, #tpu.memory_space<vmem>>, vector<1x64xf32>,
      %202 = vector.extract_strided_slice %193 {offsets = [16, 0], sizes = [16, 64], strides = [1, 1]} : vector<32x64xf32> to vector<16x64xf32>
      %c25 = arith.constant 25 : index
      %c0_91 = arith.constant 0 : index
      %203 = vector.load %arg21[%c25, %c0_91] : memref<48x64xf32, #tpu.memory_space<vmem>>, vector<16x64xf32>
      tpu.vector_store %arg21[%c25, %c0_91], %202 {strides = array<i32>} : memref<48x64xf32, #tpu.memory_space<vmem>>, vector<16x64xf32>,
    } else {
    }
    %c0 = arith.constant 0 : index
    %c0_1 = arith.constant 0 : index
    %3 = vector.load %arg21[%c0, %c0_1] : memref<48x64xf32, #tpu.memory_space<vmem>>, vector<48x64xf32>
    %c0_2 = arith.constant 0 : index
    %c0_3 = arith.constant 0 : index
    %c0_4 = arith.constant 0 : index
    %4 = vector.load %arg9[%c0_2, %c0_3, %c0_4] : memref<1x1x64xf32, #tpu.memory_space<vmem>>, vector<1x1x64xf32>
    %5 = vector.shape_cast %4 : vector<1x1x64xf32> to vector<1x64xf32>
    %cst = arith.constant dense<0.000000e+00> : vector<48xf32>
    %6 = vector.multi_reduction <add>, %3, %cst [1] : vector<48x64xf32> to vector<48xf32>
    %7 = vector.shape_cast %6 : vector<48xf32> to vector<48x1xf32>
    %cst_5 = arith.constant 6.400000e+01 : f32
    %8 = vector.broadcast %cst_5 : f32 to vector<48x1xf32>
    %9 = arith.divf %7, %8 : vector<48x1xf32>
    %10 = vector.broadcast %9 : vector<48x1xf32> to vector<48x64xf32>
    %11 = arith.subf %3, %10 : vector<48x64xf32>
    %12 = arith.mulf %11, %11 : vector<48x64xf32>
    %cst_6 = arith.constant dense<0.000000e+00> : vector<48xf32>
    %13 = vector.multi_reduction <add>, %12, %cst_6 [1] : vector<48x64xf32> to vector<48xf32>
    %14 = vector.shape_cast %13 : vector<48xf32> to vector<48x1xf32>
    %cst_7 = arith.constant 6.400000e+01 : f32
    %15 = vector.broadcast %cst_7 : f32 to vector<48x1xf32>
    %16 = arith.divf %14, %15 : vector<48x1xf32>
    %cst_8 = arith.constant 9.99999974E-6 : f32
    %17 = vector.broadcast %cst_8 : f32 to vector<48x1xf32>
    %18 = arith.addf %16, %17 : vector<48x1xf32>
    %19 = math.rsqrt %18 : vector<48x1xf32>
    %20 = vector.broadcast %19 : vector<48x1xf32> to vector<48x64xf32>
    %21 = arith.mulf %11, %20 : vector<48x64xf32>
    %22 = vector.broadcast %5 : vector<1x64xf32> to vector<48x64xf32>
    %23 = arith.mulf %21, %22 : vector<48x64xf32>
    %24 = arith.truncf %23 : vector<48x64xf32> to vector<48x64xbf16>
    %c0_9 = arith.constant 0 : index
    %c0_10 = arith.constant 0 : index
    %c0_11 = arith.constant 0 : index
    %25 = vector.load %arg10[%c0_9, %c0_10, %c0_11] : memref<1x64x192xbf16, #tpu.memory_space<vmem>>, vector<1x64x192xbf16>
    %26 = vector.shape_cast %25 : vector<1x64x192xbf16> to vector<64x192xbf16>
    %cst_12 = arith.constant dense<0.000000e+00> : vector<48x192xf32>
    %27 = tpu.matmul %24, %26, %cst_12 {dimension_numbers = #tpu.dot_dimension_numbers<[1], [0], [0], [1], [0, 0, 1, 1], [], []>} : vector<48x64xbf16>, vector<64x192xbf16>, vector<48x192xf32> -> vector<48x192xf32>
    %c0_13 = arith.constant 0 : index
    %c0_14 = arith.constant 0 : index
    %28 = vector.load %arg17[%c0_13, %c0_14] : memref<48x32xf32, #tpu.memory_space<vmem>>, vector<48x32xf32>
    %c0_15 = arith.constant 0 : index
    %c0_16 = arith.constant 0 : index
    %29 = vector.load %arg18[%c0_15, %c0_16] : memref<48x32xf32, #tpu.memory_space<vmem>>, vector<48x32xf32>
    %30 = tpu.iota {dimensions = array<i32: 2>} : vector<1x1x24xi32>
    %c17_i32 = arith.constant 17 : i32
    %31 = vector.broadcast %c17_i32 : i32 to vector<1x1x24xi32>
    %32 = arith.cmpi slt, %30, %31 : vector<1x1x24xi32>
    %cst_17 = arith.constant 0.000000e+00 : f32
    %cst_18 = arith.constant -1.000000e+30 : f32
    %33 = vector.broadcast %cst_17 : f32 to vector<1x1x24xf32>
    %34 = vector.broadcast %cst_18 : f32 to vector<1x1x24xf32>
    %35 = arith.select %32, %33, %34 : vector<1x1x24xi1>, vector<1x1x24xf32>
    %36 = vector.extract_strided_slice %27 {offsets = [0, 0], sizes = [48, 32], strides = [1, 1]} : vector<48x192xf32> to vector<48x32xf32>
    %37 = arith.mulf %36, %28 : vector<48x32xf32>
    %c16_i32 = arith.constant 16 : i32
    %38 = tpu.dynamic_rotate %36 by %c16_i32 dim 1 : vector<48x32xf32>, i32 -> vector<48x32xf32>
    %39 = arith.mulf %38, %29 : vector<48x32xf32>
    %40 = arith.addf %37, %39 : vector<48x32xf32>
    %41 = vector.shape_cast %40 : vector<48x32xf32> to vector<2x24x32xf32>
    %42 = vector.extract_strided_slice %27 {offsets = [0, 64], sizes = [48, 32], strides = [1, 1]} : vector<48x192xf32> to vector<48x32xf32>
    %43 = arith.mulf %42, %28 : vector<48x32xf32>
    %c16_i32_19 = arith.constant 16 : i32
    %44 = tpu.dynamic_rotate %42 by %c16_i32_19 dim 1 : vector<48x32xf32>, i32 -> vector<48x32xf32>
    %45 = arith.mulf %44, %29 : vector<48x32xf32>
    %46 = arith.addf %43, %45 : vector<48x32xf32>
    %47 = vector.shape_cast %46 : vector<48x32xf32> to vector<2x24x32xf32>
    %48 = vector.extract_strided_slice %27 {offsets = [0, 128], sizes = [48, 32], strides = [1, 1]} : vector<48x192xf32> to vector<48x32xf32>
    %49 = vector.shape_cast %48 : vector<48x32xf32> to vector<2x24x32xf32>
    %50 = arith.truncf %41 : vector<2x24x32xf32> to vector<2x24x32xbf16>
    %51 = arith.truncf %47 : vector<2x24x32xf32> to vector<2x24x32xbf16>
    "tpu.trace_start"() <{level = 10 : i32, message = "bqd,bkd->bqk"}> : () -> ()
    %cst_20 = arith.constant dense<0.000000e+00> : vector<2x24x24xf32>
    %52 = tpu.matmul %50, %51, %cst_20 {dimension_numbers = #tpu.dot_dimension_numbers<[2], [2], [1], [1], [0, 0, 0, 1, 1, 1], [0], [0]>} : vector<2x24x32xbf16>, vector<2x24x32xbf16>, vector<2x24x24xf32> -> vector<2x24x24xf32>
    "tpu.trace_stop"() : () -> ()
    %cst_21 = arith.constant 0.176776692 : f32
    %53 = vector.broadcast %cst_21 : f32 to vector<2x24x24xf32>
    %54 = arith.mulf %52, %53 : vector<2x24x24xf32>
    %55 = vector.broadcast %35 : vector<1x1x24xf32> to vector<2x24x24xf32>
    %56 = arith.addf %54, %55 : vector<2x24x24xf32>
    %cst_22 = arith.constant dense<0xFF800000> : vector<2x24xf32>
    %57 = vector.multi_reduction <maximumf>, %56, %cst_22 [2] : vector<2x24x24xf32> to vector<2x24xf32>
    %58 = vector.shape_cast %57 : vector<2x24xf32> to vector<2x24x1xf32>
    %59 = vector.broadcast %58 : vector<2x24x1xf32> to vector<2x24x24xf32>
    %60 = arith.subf %56, %59 : vector<2x24x24xf32>
    %61 = math.exp %60 : vector<2x24x24xf32>
    %cst_23 = arith.constant dense<0.000000e+00> : vector<2x24xf32>
    %62 = vector.multi_reduction <add>, %61, %cst_23 [2] : vector<2x24x24xf32> to vector<2x24xf32>
    %63 = vector.shape_cast %62 : vector<2x24xf32> to vector<2x24x1xf32>
    %64 = arith.truncf %61 : vector<2x24x24xf32> to vector<2x24x24xbf16>
    %65 = arith.truncf %49 : vector<2x24x32xf32> to vector<2x24x32xbf16>
    "tpu.trace_start"() <{level = 10 : i32, message = "bqk,bkd->bqd"}> : () -> ()
    %cst_24 = arith.constant dense<0.000000e+00> : vector<2x24x32xf32>
    %66 = tpu.matmul %64, %65, %cst_24 {dimension_numbers = #tpu.dot_dimension_numbers<[2], [1], [1], [2], [0, 0, 0, 1, 1, 2], [0], [0]>} : vector<2x24x24xbf16>, vector<2x24x32xbf16>, vector<2x24x32xf32> -> vector<2x24x32xf32>
    "tpu.trace_stop"() : () -> ()
    %67 = tpu.reciprocal %63 {approx = true} : vector<2x24x1xf32> -> vector<2x24x1xf32>
    %68 = vector.broadcast %67 : vector<2x24x1xf32> to vector<2x24x32xf32>
    %69 = arith.mulf %66, %68 : vector<2x24x32xf32>
    %70 = vector.extract_strided_slice %27 {offsets = [0, 32], sizes = [48, 32], strides = [1, 1]} : vector<48x192xf32> to vector<48x32xf32>
    %71 = arith.mulf %70, %28 : vector<48x32xf32>
    %c16_i32_25 = arith.constant 16 : i32
    %72 = tpu.dynamic_rotate %70 by %c16_i32_25 dim 1 : vector<48x32xf32>, i32 -> vector<48x32xf32>
    %73 = arith.mulf %72, %29 : vector<48x32xf32>
    %74 = arith.addf %71, %73 : vector<48x32xf32>
    %75 = vector.shape_cast %74 : vector<48x32xf32> to vector<2x24x32xf32>
    %76 = vector.extract_strided_slice %27 {offsets = [0, 96], sizes = [48, 32], strides = [1, 1]} : vector<48x192xf32> to vector<48x32xf32>
    %77 = arith.mulf %76, %28 : vector<48x32xf32>
    %c16_i32_26 = arith.constant 16 : i32
    %78 = tpu.dynamic_rotate %76 by %c16_i32_26 dim 1 : vector<48x32xf32>, i32 -> vector<48x32xf32>
    %79 = arith.mulf %78, %29 : vector<48x32xf32>
    %80 = arith.addf %77, %79 : vector<48x32xf32>
    %81 = vector.shape_cast %80 : vector<48x32xf32> to vector<2x24x32xf32>
    %82 = vector.extract_strided_slice %27 {offsets = [0, 160], sizes = [48, 32], strides = [1, 1]} : vector<48x192xf32> to vector<48x32xf32>
    %83 = vector.shape_cast %82 : vector<48x32xf32> to vector<2x24x32xf32>
    %84 = arith.truncf %75 : vector<2x24x32xf32> to vector<2x24x32xbf16>
    %85 = arith.truncf %81 : vector<2x24x32xf32> to vector<2x24x32xbf16>
    "tpu.trace_start"() <{level = 10 : i32, message = "bqd,bkd->bqk"}> : () -> ()
    %cst_27 = arith.constant dense<0.000000e+00> : vector<2x24x24xf32>
    %86 = tpu.matmul %84, %85, %cst_27 {dimension_numbers = #tpu.dot_dimension_numbers<[2], [2], [1], [1], [0, 0, 0, 1, 1, 1], [0], [0]>} : vector<2x24x32xbf16>, vector<2x24x32xbf16>, vector<2x24x24xf32> -> vector<2x24x24xf32>
    "tpu.trace_stop"() : () -> ()
    %cst_28 = arith.constant 0.176776692 : f32
    %87 = vector.broadcast %cst_28 : f32 to vector<2x24x24xf32>
    %88 = arith.mulf %86, %87 : vector<2x24x24xf32>
    %89 = vector.broadcast %35 : vector<1x1x24xf32> to vector<2x24x24xf32>
    %90 = arith.addf %88, %89 : vector<2x24x24xf32>
    %cst_29 = arith.constant dense<0xFF800000> : vector<2x24xf32>
    %91 = vector.multi_reduction <maximumf>, %90, %cst_29 [2] : vector<2x24x24xf32> to vector<2x24xf32>
    %92 = vector.shape_cast %91 : vector<2x24xf32> to vector<2x24x1xf32>
    %93 = vector.broadcast %92 : vector<2x24x1xf32> to vector<2x24x24xf32>
    %94 = arith.subf %90, %93 : vector<2x24x24xf32>
    %95 = math.exp %94 : vector<2x24x24xf32>
    %cst_30 = arith.constant dense<0.000000e+00> : vector<2x24xf32>
    %96 = vector.multi_reduction <add>, %95, %cst_30 [2] : vector<2x24x24xf32> to vector<2x24xf32>
    %97 = vector.shape_cast %96 : vector<2x24xf32> to vector<2x24x1xf32>
    %98 = arith.truncf %95 : vector<2x24x24xf32> to vector<2x24x24xbf16>
    %99 = arith.truncf %83 : vector<2x24x32xf32> to vector<2x24x32xbf16>
    "tpu.trace_start"() <{level = 10 : i32, message = "bqk,bkd->bqd"}> : () -> ()
    %cst_31 = arith.constant dense<0.000000e+00> : vector<2x24x32xf32>
    %100 = tpu.matmul %98, %99, %cst_31 {dimension_numbers = #tpu.dot_dimension_numbers<[2], [1], [1], [2], [0, 0, 0, 1, 1, 2], [0], [0]>} : vector<2x24x24xbf16>, vector<2x24x32xbf16>, vector<2x24x32xf32> -> vector<2x24x32xf32>
    "tpu.trace_stop"() : () -> ()
    %101 = tpu.reciprocal %97 {approx = true} : vector<2x24x1xf32> -> vector<2x24x1xf32>
    %102 = vector.broadcast %101 : vector<2x24x1xf32> to vector<2x24x32xf32>
    %103 = arith.mulf %100, %102 : vector<2x24x32xf32>
    %104 = tpu.concatenate %69, %103 in 2 : vector<2x24x32xf32>, vector<2x24x32xf32> -> vector<2x24x64xf32>
    %105 = vector.shape_cast %104 : vector<2x24x64xf32> to vector<48x64xf32>
    %106 = arith.truncf %105 : vector<48x64xf32> to vector<48x64xbf16>
    %c0_32 = arith.constant 0 : index
    %c0_33 = arith.constant 0 : index
    %c0_34 = arith.constant 0 : index
    %107 = vector.load %arg11[%c0_32, %c0_33, %c0_34] : memref<1x64x64xbf16, #tpu.memory_space<vmem>>, vector<1x64x64xbf16>
    %108 = vector.shape_cast %107 : vector<1x64x64xbf16> to vector<64x64xbf16>
    %cst_35 = arith.constant dense<0.000000e+00> : vector<48x64xf32>
    %109 = tpu.matmul %106, %108, %cst_35 {dimension_numbers = #tpu.dot_dimension_numbers<[1], [0], [0], [1], [0, 0, 1, 1], [], []>} : vector<48x64xbf16>, vector<64x64xbf16>, vector<48x64xf32> -> vector<48x64xf32>
    %110 = arith.addf %3, %109 : vector<48x64xf32>
    %c0_36 = arith.constant 0 : index
    %c0_37 = arith.constant 0 : index
    %c0_38 = arith.constant 0 : index
    %111 = vector.load %arg12[%c0_36, %c0_37, %c0_38] : memref<1x1x64xf32, #tpu.memory_space<vmem>>, vector<1x1x64xf32>
    %112 = vector.shape_cast %111 : vector<1x1x64xf32> to vector<1x64xf32>
    %cst_39 = arith.constant dense<0.000000e+00> : vector<48xf32>
    %113 = vector.multi_reduction <add>, %110, %cst_39 [1] : vector<48x64xf32> to vector<48xf32>
    %114 = vector.shape_cast %113 : vector<48xf32> to vector<48x1xf32>
    %cst_40 = arith.constant 6.400000e+01 : f32
    %115 = vector.broadcast %cst_40 : f32 to vector<48x1xf32>
    %116 = arith.divf %114, %115 : vector<48x1xf32>
    %117 = vector.broadcast %116 : vector<48x1xf32> to vector<48x64xf32>
    %118 = arith.subf %110, %117 : vector<48x64xf32>
    %119 = arith.mulf %118, %118 : vector<48x64xf32>
    %cst_41 = arith.constant dense<0.000000e+00> : vector<48xf32>
    %120 = vector.multi_reduction <add>, %119, %cst_41 [1] : vector<48x64xf32> to vector<48xf32>
    %121 = vector.shape_cast %120 : vector<48xf32> to vector<48x1xf32>
    %cst_42 = arith.constant 6.400000e+01 : f32
    %122 = vector.broadcast %cst_42 : f32 to vector<48x1xf32>
    %123 = arith.divf %121, %122 : vector<48x1xf32>
    %cst_43 = arith.constant 9.99999974E-6 : f32
    %124 = vector.broadcast %cst_43 : f32 to vector<48x1xf32>
    %125 = arith.addf %123, %124 : vector<48x1xf32>
    %126 = math.rsqrt %125 : vector<48x1xf32>
    %127 = vector.broadcast %126 : vector<48x1xf32> to vector<48x64xf32>
    %128 = arith.mulf %118, %127 : vector<48x64xf32>
    %129 = vector.broadcast %112 : vector<1x64xf32> to vector<48x64xf32>
    %130 = arith.mulf %128, %129 : vector<48x64xf32>
    %131 = arith.truncf %130 : vector<48x64xf32> to vector<48x64xbf16>
    %c0_44 = arith.constant 0 : index
    %c0_45 = arith.constant 0 : index
    %c0_46 = arith.constant 0 : index
    %132 = vector.load %arg13[%c0_44, %c0_45, %c0_46] : memref<1x64x512xbf16, #tpu.memory_space<vmem>>, vector<1x64x512xbf16>
    %133 = vector.shape_cast %132 : vector<1x64x512xbf16> to vector<64x512xbf16>
    %cst_47 = arith.constant dense<0.000000e+00> : vector<48x512xf32>
    %134 = tpu.matmul %131, %133, %cst_47 {dimension_numbers = #tpu.dot_dimension_numbers<[1], [0], [0], [1], [0, 0, 1, 1], [], []>} : vector<48x64xbf16>, vector<64x512xbf16>, vector<48x512xf32> -> vector<48x512xf32>
    %c0_48 = arith.constant 0 : index
    %c0_49 = arith.constant 0 : index
    %c0_50 = arith.constant 0 : index
    %135 = vector.load %arg14[%c0_48, %c0_49, %c0_50] : memref<1x1x512xf32, #tpu.memory_space<vmem>>, vector<1x1x512xf32>
    %136 = vector.shape_cast %135 : vector<1x1x512xf32> to vector<1x512xf32>
    %137 = vector.broadcast %136 : vector<1x512xf32> to vector<48x512xf32>
    %138 = arith.addf %134, %137 : vector<48x512xf32>
    %139 = vector.extract_strided_slice %138 {offsets = [0, 0], sizes = [48, 256], strides = [1, 1]} : vector<48x512xf32> to vector<48x256xf32>
    %140 = vector.extract_strided_slice %138 {offsets = [0, 256], sizes = [48, 256], strides = [1, 1]} : vector<48x512xf32> to vector<48x256xf32>
    %141 = arith.negf %140 : vector<48x256xf32>
    %142 = math.exp %141 : vector<48x256xf32>
    %cst_51 = arith.constant 1.000000e+00 : f32
    %143 = vector.broadcast %cst_51 : f32 to vector<48x256xf32>
    %144 = arith.addf %143, %142 : vector<48x256xf32>
    %145 = arith.divf %143, %144 : vector<48x256xf32>
    %146 = arith.mulf %140, %145 : vector<48x256xf32>
    %147 = arith.mulf %139, %146 : vector<48x256xf32>
    %148 = arith.truncf %147 : vector<48x256xf32> to vector<48x256xbf16>
    %c0_52 = arith.constant 0 : index
    %c0_53 = arith.constant 0 : index
    %c0_54 = arith.constant 0 : index
    %149 = vector.load %arg15[%c0_52, %c0_53, %c0_54] : memref<1x256x64xbf16, #tpu.memory_space<vmem>>, vector<1x256x64xbf16>
    %150 = vector.shape_cast %149 : vector<1x256x64xbf16> to vector<256x64xbf16>
    %cst_55 = arith.constant dense<0.000000e+00> : vector<48x64xf32>
    %151 = tpu.matmul %148, %150, %cst_55 {dimension_numbers = #tpu.dot_dimension_numbers<[1], [0], [0], [1], [0, 0, 1, 1], [], []>} : vector<48x256xbf16>, vector<256x64xbf16>, vector<48x64xf32> -> vector<48x64xf32>
    %c0_56 = arith.constant 0 : index
    %c0_57 = arith.constant 0 : index
    %c0_58 = arith.constant 0 : index
    %152 = vector.load %arg16[%c0_56, %c0_57, %c0_58] : memref<1x1x64xf32, #tpu.memory_space<vmem>>, vector<1x1x64xf32>
    %153 = vector.shape_cast %152 : vector<1x1x64xf32> to vector<1x64xf32>
    %154 = vector.broadcast %153 : vector<1x64xf32> to vector<48x64xf32>
    %155 = arith.addf %151, %154 : vector<48x64xf32>
    %156 = arith.addf %110, %155 : vector<48x64xf32>
    %c0_59 = arith.constant 0 : index
    %c0_60 = arith.constant 0 : index
    %157 = vector.load %arg21[%c0_59, %c0_60] : memref<48x64xf32, #tpu.memory_space<vmem>>, vector<48x64xf32>
    tpu.vector_store %arg21[%c0_59, %c0_60], %156 {strides = array<i32>} : memref<48x64xf32, #tpu.memory_space<vmem>>, vector<48x64xf32>,
    %c1_i32 = arith.constant 1 : i32
    %158 = arith.cmpi eq, %arg0, %c1_i32 : i32
    %159 = arith.extui %158 : i1 to i32
    %c0_i32_61 = arith.constant 0 : i32
    %160 = arith.cmpi ne, %159, %c0_i32_61 : i32
    scf.if %160 {
      %161 = arith.truncf %156 : vector<48x64xf32> to vector<48x64xbf16>
      %c0_62 = arith.constant 0 : index
      %c0_63 = arith.constant 0 : index
      %162 = vector.load %arg19[%c0_62, %c0_63] : memref<64x16xbf16, #tpu.memory_space<vmem>>, vector<64x16xbf16>
      %cst_64 = arith.constant dense<0.000000e+00> : vector<48x16xf32>
      %163 = tpu.matmul %161, %162, %cst_64 {dimension_numbers = #tpu.dot_dimension_numbers<[1], [0], [0], [1], [0, 0, 1, 1], [], []>} : vector<48x64xbf16>, vector<64x16xbf16>, vector<48x16xf32> -> vector<48x16xf32>
      %164 = vector.extract_strided_slice %163 {offsets = [1, 0], sizes = [16, 16], strides = [1, 1]} : vector<48x16xf32> to vector<16x16xf32>
      %c0_65 = arith.constant 0 : index
      %c0_66 = arith.constant 0 : index
      %c0_67 = arith.constant 0 : index
      %165 = vector.load %arg20[%c0_65, %c0_66, %c0_67] : memref<2x16x16xf32, #tpu.memory_space<vmem>>, vector<1x16x16xf32>
      %166 = vector.shape_cast %165 : vector<1x16x16xf32> to vector<16x16xf32>
      %167 = vector.shape_cast %164 : vector<16x16xf32> to vector<1x16x16xf32>
      tpu.vector_store %arg20[%c0_65, %c0_66, %c0_67], %167 {strides = array<i32>} : memref<2x16x16xf32, #tpu.memory_space<vmem>>, vector<1x16x16xf32>,
      %168 = vector.extract_strided_slice %163 {offsets = [25, 0], sizes = [16, 16], strides = [1, 1]} : vector<48x16xf32> to vector<16x16xf32>
      %c1 = arith.constant 1 : index
      %c0_68 = arith.constant 0 : index
      %c0_69 = arith.constant 0 : index
      %169 = vector.load %arg20[%c1, %c0_68, %c0_69] : memref<2x16x16xf32, #tpu.memory_space<vmem>>, vector<1x16x16xf32>
      %170 = vector.shape_cast %169 : vector<1x16x16xf32> to vector<16x16xf32>
      %171 = vector.shape_cast %168 : vector<16x16xf32> to vector<1x16x16xf32>
      tpu.vector_store %arg20[%c1, %c0_68, %c0_69], %171 {strides = array<i32>} : memref<2x16x16xf32, #tpu.memory_space<vmem>>, vector<1x16x16xf32>,
    } else {
    }
    return
  }
  func.func @transform_0(%arg0: i32) -> (i32, i32) {
    %c0_i32 = arith.constant 0 : i32
    %c0_i32_0 = arith.constant 0 : i32
    %c0_i32_1 = arith.constant 0 : i32
    return %c0_i32, %c0_i32_0 : i32, i32
  }
  func.func @transform_1(%arg0: i32) -> (i32, i32) {
    %c0_i32 = arith.constant 0 : i32
    %c0_i32_0 = arith.constant 0 : i32
    %c0_i32_1 = arith.constant 0 : i32
    return %c0_i32, %c0_i32_0 : i32, i32
  }
  func.func @transform_2(%arg0: i32) -> (i32, i32) {
    %c0_i32 = arith.constant 0 : i32
    %c0_i32_0 = arith.constant 0 : i32
    %c0_i32_1 = arith.constant 0 : i32
    return %c0_i32, %c0_i32_0 : i32, i32
  }
  func.func @transform_3(%arg0: i32) -> (i32, i32) {
    %c0_i32 = arith.constant 0 : i32
    %c0_i32_0 = arith.constant 0 : i32
    %c0_i32_1 = arith.constant 0 : i32
    return %c0_i32, %c0_i32_0 : i32, i32
  }
  func.func @transform_4(%arg0: i32) -> (i32, i32) {
    %c0_i32 = arith.constant 0 : i32
    %c0_i32_0 = arith.constant 0 : i32
    %c0_i32_1 = arith.constant 0 : i32
    return %c0_i32, %c0_i32_0 : i32, i32
  }
  func.func @transform_5(%arg0: i32) -> (i32, i32) {
    %c0_i32 = arith.constant 0 : i32
    %c0_i32_0 = arith.constant 0 : i32
    %c0_i32_1 = arith.constant 0 : i32
    return %c0_i32, %c0_i32_0 : i32, i32
  }
  func.func @transform_6(%arg0: i32) -> (i32, i32, i32) {
    %c0_i32 = arith.constant 0 : i32
    %c0_i32_0 = arith.constant 0 : i32
    %c0_i32_1 = arith.constant 0 : i32
    %c0_i32_2 = arith.constant 0 : i32
    return %c0_i32, %c0_i32_0, %c0_i32_1 : i32, i32, i32
  }
  func.func @transform_7(%arg0: i32) -> (i32, i32) {
    %c0_i32 = arith.constant 0 : i32
    %c0_i32_0 = arith.constant 0 : i32
    %c0_i32_1 = arith.constant 0 : i32
    return %c0_i32, %c0_i32_0 : i32, i32
  }
  func.func @transform_8(%arg0: i32) -> (i32, i32, i32) {
    %c0_i32 = arith.constant 0 : i32
    %c0_i32_0 = arith.constant 0 : i32
    %c0_i32_1 = arith.constant 0 : i32
    return %arg0, %c0_i32, %c0_i32_0 : i32, i32, i32
  }
  func.func @transform_9(%arg0: i32) -> (i32, i32, i32) {
    %c0_i32 = arith.constant 0 : i32
    %c0_i32_0 = arith.constant 0 : i32
    %c0_i32_1 = arith.constant 0 : i32
    return %arg0, %c0_i32, %c0_i32_0 : i32, i32, i32
  }
  func.func @transform_10(%arg0: i32) -> (i32, i32, i32) {
    %c0_i32 = arith.constant 0 : i32
    %c0_i32_0 = arith.constant 0 : i32
    %c0_i32_1 = arith.constant 0 : i32
    return %arg0, %c0_i32, %c0_i32_0 : i32, i32, i32
  }
  func.func @transform_11(%arg0: i32) -> (i32, i32, i32) {
    %c0_i32 = arith.constant 0 : i32
    %c0_i32_0 = arith.constant 0 : i32
    %c0_i32_1 = arith.constant 0 : i32
    return %arg0, %c0_i32, %c0_i32_0 : i32, i32, i32
  }
  func.func @transform_12(%arg0: i32) -> (i32, i32, i32) {
    %c0_i32 = arith.constant 0 : i32
    %c0_i32_0 = arith.constant 0 : i32
    %c0_i32_1 = arith.constant 0 : i32
    return %arg0, %c0_i32, %c0_i32_0 : i32, i32, i32
  }
  func.func @transform_13(%arg0: i32) -> (i32, i32, i32) {
    %c0_i32 = arith.constant 0 : i32
    %c0_i32_0 = arith.constant 0 : i32
    %c0_i32_1 = arith.constant 0 : i32
    return %arg0, %c0_i32, %c0_i32_0 : i32, i32, i32
  }
  func.func @transform_14(%arg0: i32) -> (i32, i32, i32) {
    %c0_i32 = arith.constant 0 : i32
    %c0_i32_0 = arith.constant 0 : i32
    %c0_i32_1 = arith.constant 0 : i32
    return %arg0, %c0_i32, %c0_i32_0 : i32, i32, i32
  }
  func.func @transform_15(%arg0: i32) -> (i32, i32, i32) {
    %c0_i32 = arith.constant 0 : i32
    %c0_i32_0 = arith.constant 0 : i32
    %c0_i32_1 = arith.constant 0 : i32
    return %arg0, %c0_i32, %c0_i32_0 : i32, i32, i32
  }
  func.func @transform_16(%arg0: i32) -> (i32, i32) {
    %c0_i32 = arith.constant 0 : i32
    %c0_i32_0 = arith.constant 0 : i32
    %c0_i32_1 = arith.constant 0 : i32
    return %c0_i32, %c0_i32_0 : i32, i32
  }
  func.func @transform_17(%arg0: i32) -> (i32, i32) {
    %c0_i32 = arith.constant 0 : i32
    %c0_i32_0 = arith.constant 0 : i32
    %c0_i32_1 = arith.constant 0 : i32
    return %c0_i32, %c0_i32_0 : i32, i32
  }
  func.func @transform_18(%arg0: i32) -> (i32, i32) {
    %c0_i32 = arith.constant 0 : i32
    %c0_i32_0 = arith.constant 0 : i32
    %c0_i32_1 = arith.constant 0 : i32
    return %c0_i32, %c0_i32_0 : i32, i32
  }
  func.func @transform_19(%arg0: i32) -> (i32, i32, i32) {
    %c0_i32 = arith.constant 0 : i32
    %c0_i32_0 = arith.constant 0 : i32
    %c0_i32_1 = arith.constant 0 : i32
    %c0_i32_2 = arith.constant 0 : i32
    return %c0_i32, %c0_i32_0, %c0_i32_1 : i32, i32, i32
  }
}

</mosaic_0001>

<llo_original>
// kernel: diffusion_transformer_forward.1
$region0: #{diffusion_transformer_forward.1}
  #allocation0 [shape = 'u32[]', space=smem, size = 0x4, offset = 0x4, fixed_abs, tag = 'smem constant byte address 0x4 - core index']
  #allocation1 [shape = 'u32[144,128]{1,0:T(1,128)}', space=vmem, size = 0x12000, scoped, tag = 'internal scratch']
  #allocation2 [shape = 'f32[48,64]{1,0:T(8,128)}', space=vmem, size = 0x6000, scoped, tag = 'scratch operand']
  %s0 = inlined_call_operand.vmem [shape: f32[2,1], index: 0, kind: input, shape index: {}]
  %s1 = inlined_call_operand.vmem [shape: f32[1,128], index: 1, kind: input, shape index: {}]
  %s2 = inlined_call_operand.vmem [shape: bf16[256,64], index: 2, kind: input, shape index: {}]
  %s3 = inlined_call_operand.vmem [shape: f32[1,64], index: 3, kind: input, shape index: {}]
  %s4 = inlined_call_operand.vmem [shape: bf16[64,64], index: 4, kind: input, shape index: {}]
  %s5 = inlined_call_operand.vmem [shape: f32[1,64], index: 5, kind: input, shape index: {}]
  %s6 = inlined_call_operand.vmem [shape: f32[2,16,16], index: 6, kind: input, shape index: {}]
  %s7 = inlined_call_operand.vmem [shape: bf16[16,64], index: 7, kind: input, shape index: {}]
  %s8 = inlined_call_operand.vmem [shape: f32[2,1,64], index: 8, kind: input, shape index: {}]
  %s9 = inlined_call_operand.vmem [shape: bf16[2,64,192], index: 9, kind: input, shape index: {}]
  %s10 = inlined_call_operand.vmem [shape: bf16[2,64,64], index: 10, kind: input, shape index: {}]
  %s11 = inlined_call_operand.vmem [shape: f32[2,1,64], index: 11, kind: input, shape index: {}]
  %s12 = inlined_call_operand.vmem [shape: bf16[2,64,512], index: 12, kind: input, shape index: {}]
  %s13 = inlined_call_operand.vmem [shape: f32[2,1,512], index: 13, kind: input, shape index: {}]
  %s14 = inlined_call_operand.vmem [shape: bf16[2,256,64], index: 14, kind: input, shape index: {}]
  %s15 = inlined_call_operand.vmem [shape: f32[2,1,64], index: 15, kind: input, shape index: {}]
  %s16 = inlined_call_operand.vmem [shape: f32[48,32], index: 16, kind: input, shape index: {}]
  %s17 = inlined_call_operand.vmem [shape: f32[48,32], index: 17, kind: input, shape index: {}]
  %s18 = inlined_call_operand.vmem [shape: bf16[64,16], index: 18, kind: input, shape index: {}]
  %s19 = inlined_call_operand.vmem [shape: f32[2,16,16], index: 19, kind: output, shape index: {}]
  %s20 = sld [smem:[#allocation0]]
  $region117: #{diffusion_transformer_forward.1} parent=0
    _
  %s22 = ssub.s32 1, %s20
  %s23 = scalar_select 0, %s22, %s20
  loop: start=0, step=1, limit=4
  $region2: #{diffusion_transformer_forward.1} parent=0 // loop_pre_header
    _
  $region3: #{diffusion_transformer_forward.1} parent=0 // loop_header
    %s25 = sphi 0, %s29
    %p26 = scmp.ge.s32.totalorder %s25, 4
    %s33 = sphi 0, %s33
    %s35 = sphi 0, %s33
    %s36 = sphi 0, %s35
    %s50 = sphi 0, %s36
    %s54 = sphi 0, %s54
    %s56 = sphi 0, %s54
    %s57 = sphi 0, %s56
    %s71 = sphi 0, %s57
    %s75 = sphi 0, %s75
    %s77 = sphi 0, %s75
    %s78 = sphi 0, %s77
    %s92 = sphi 0, %s78
    %s96 = sphi 0, %s96
    %s98 = sphi 0, %s96
    %s99 = sphi 0, %s98
    %s113 = sphi 0, %s99
    %s117 = sphi 0, %s117
    %s119 = sphi 0, %s117
    %s120 = sphi 0, %s119
    %s134 = sphi 0, %s120
    %s138 = sphi 0, %s138
    %s140 = sphi 0, %s138
    %s141 = sphi 0, %s140
    %s155 = sphi 0, %s141
    %s159 = sphi 0, %s159
    %s161 = sphi 0, %s159
    %s162 = sphi 0, %s161
    %s176 = sphi 0, %s162
    %s180 = sphi 0, %s180
    %s182 = sphi 0, %s180
    %s183 = sphi 0, %s182
    %s197 = sphi 0, %s183
    %s203 = sphi 0, %s205
    %s206 = sphi 0, %s203
    %s207 = sphi 0, %s206
    %s223 = sphi 0, %s207
    %s229 = sphi 0, %s231
    %s232 = sphi 0, %s229
    %s233 = sphi 0, %s232
    %s249 = sphi 0, %s233
    %s255 = sphi 0, %s257
    %s258 = sphi 0, %s255
    %s259 = sphi 0, %s258
    %s275 = sphi 0, %s259
    %s281 = sphi 0, %s283
    %s284 = sphi 0, %s281
    %s285 = sphi 0, %s284
    %s301 = sphi 0, %s285
    %s307 = sphi 0, %s309
    %s310 = sphi 0, %s307
    %s311 = sphi 0, %s310
    %s327 = sphi 0, %s311
    %s333 = sphi 0, %s335
    %s336 = sphi 0, %s333
    %s337 = sphi 0, %s336
    %s353 = sphi 0, %s337
    %s359 = sphi 0, %s361
    %s362 = sphi 0, %s359
    %s363 = sphi 0, %s362
    %s379 = sphi 0, %s363
    %s385 = sphi 0, %s387
    %s388 = sphi 0, %s385
    %s389 = sphi 0, %s388
    %s405 = sphi 0, %s389
    %s409 = sphi 0, %s409
    %s411 = sphi 0, %s409
    %s412 = sphi 0, %s411
    %s426 = sphi 0, %s412
    %s430 = sphi 0, %s430
    %s432 = sphi 0, %s430
    %s433 = sphi 0, %s432
    %s447 = sphi 0, %s433
    %s451 = sphi 0, %s451
    %s453 = sphi 0, %s451
    %s454 = sphi 0, %s453
    %s468 = sphi 0, %s454
    %s472 = sphi 0, %s472
    %s474 = sphi 0, %s472
    %s475 = sphi 0, %s474
    %s489 = sphi 0, %s475
  $region4: #{diffusion_transformer_forward.1} parent=0 // loop_header_branch
    %28 = sbr.rel (%p26) target = $region8
  $region5: #{diffusion_transformer_forward.1} parent=0 // loop_body
    %s30 = ssub.s32 %s25, 1
    %s31 = ssub.s32 %s25, 2
    %s32 = sadd.s32 %s25, 1
    %s34 = sadd.s32 %s33, 1
    %p37 = scmp.eq.s32.totalorder %s25, 1
    %p38 = scmp.ne.s32.totalorder %s33, %s35
    %p39 = scmp.eq.s32.totalorder %s25, 0
    %p40 = por %p38, %p39
    %p41 = scmp.ne.s32.totalorder %s33, %s35
    %p42 = scmp.eq.s32.totalorder %s30, 1
    %p43 = por %p41, %p42
    %p44 = scmp.ne.s32.totalorder %s35, %s36
    %p45 = scmp.eq.s32.totalorder %s30, 0
    %p46 = por %p44, %p45
    %p47 = scmp.ne.s32.totalorder %s35, %s36
    %p48 = scmp.eq.s32.totalorder %s31, 1
    %p49 = por %p47, %p48
    %p51 = scmp.ne.s32.totalorder %s36, %s50
    %p52 = scmp.eq.s32.totalorder %s31, 0
    %p53 = por %p51, %p52
    %s55 = sadd.s32 %s54, 1
    %p58 = scmp.eq.s32.totalorder %s25, 1
    %p59 = scmp.ne.s32.totalorder %s54, %s56
    %p60 = scmp.eq.s32.totalorder %s25, 0
    %p61 = por %p59, %p60
    %p62 = scmp.ne.s32.totalorder %s54, %s56
    %p63 = scmp.eq.s32.totalorder %s30, 1
    %p64 = por %p62, %p63
    %p65 = scmp.ne.s32.totalorder %s56, %s57
    %p66 = scmp.eq.s32.totalorder %s30, 0
    %p67 = por %p65, %p66
    %p68 = scmp.ne.s32.totalorder %s56, %s57
    %p69 = scmp.eq.s32.totalorder %s31, 1
    %p70 = por %p68, %p69
    %p72 = scmp.ne.s32.totalorder %s57, %s71
    %p73 = scmp.eq.s32.totalorder %s31, 0
    %p74 = por %p72, %p73
    %s76 = sadd.s32 %s75, 1
    %p79 = scmp.eq.s32.totalorder %s25, 1
    %p80 = scmp.ne.s32.totalorder %s75, %s77
    %p81 = scmp.eq.s32.totalorder %s25, 0
    %p82 = por %p80, %p81
    %p83 = scmp.ne.s32.totalorder %s75, %s77
    %p84 = scmp.eq.s32.totalorder %s30, 1
    %p85 = por %p83, %p84
    %p86 = scmp.ne.s32.totalorder %s77, %s78
    %p87 = scmp.eq.s32.totalorder %s30, 0
    %p88 = por %p86, %p87
    %p89 = scmp.ne.s32.totalorder %s77, %s78
    %p90 = scmp.eq.s32.totalorder %s31, 1
    %p91 = por %p89, %p90
    %p93 = scmp.ne.s32.totalorder %s78, %s92
    %p94 = scmp.eq.s32.totalorder %s31, 0
    %p95 = por %p93, %p94
    %s97 = sadd.s32 %s96, 1
    %p100 = scmp.eq.s32.totalorder %s25, 1
    %p101 = scmp.ne.s32.totalorder %s96, %s98
    %p102 = scmp.eq.s32.totalorder %s25, 0
    %p103 = por %p101, %p102
    %p104 = scmp.ne.s32.totalorder %s96, %s98
    %p105 = scmp.eq.s32.totalorder %s30, 1
    %p106 = por %p104, %p105
    %p107 = scmp.ne.s32.totalorder %s98, %s99
    %p108 = scmp.eq.s32.totalorder %s30, 0
    %p109 = por %p107, %p108
    %p110 = scmp.ne.s32.totalorder %s98, %s99
    %p111 = scmp.eq.s32.totalorder %s31, 1
    %p112 = por %p110, %p111
    %p114 = scmp.ne.s32.totalorder %s99, %s113
    %p115 = scmp.eq.s32.totalorder %s31, 0
    %p116 = por %p114, %p115
    %s118 = sadd.s32 %s117, 1
    %p121 = scmp.eq.s32.totalorder %s25, 1
    %p122 = scmp.ne.s32.totalorder %s117, %s119
    %p123 = scmp.eq.s32.totalorder %s25, 0
    %p124 = por %p122, %p123
    %p125 = scmp.ne.s32.totalorder %s117, %s119
    %p126 = scmp.eq.s32.totalorder %s30, 1
    %p127 = por %p125, %p126
    %p128 = scmp.ne.s32.totalorder %s119, %s120
    %p129 = scmp.eq.s32.totalorder %s30, 0
    %p130 = por %p128, %p129
    %p131 = scmp.ne.s32.totalorder %s119, %s120
    %p132 = scmp.eq.s32.totalorder %s31, 1
    %p133 = por %p131, %p132
    %p135 = scmp.ne.s32.totalorder %s120, %s134
    %p136 = scmp.eq.s32.totalorder %s31, 0
    %p137 = por %p135, %p136
    %s139 = sadd.s32 %s138, 1
    %p142 = scmp.eq.s32.totalorder %s25, 1
    %p143 = scmp.ne.s32.totalorder %s138, %s140
    %p144 = scmp.eq.s32.totalorder %s25, 0
    %p145 = por %p143, %p144
    %p146 = scmp.ne.s32.totalorder %s138, %s140
    %p147 = scmp.eq.s32.totalorder %s30, 1
    %p148 = por %p146, %p147
    %p149 = scmp.ne.s32.totalorder %s140, %s141
    %p150 = scmp.eq.s32.totalorder %s30, 0
    %p151 = por %p149, %p150
    %p152 = scmp.ne.s32.totalorder %s140, %s141
    %p153 = scmp.eq.s32.totalorder %s31, 1
    %p154 = por %p152, %p153
    %p156 = scmp.ne.s32.totalorder %s141, %s155
    %p157 = scmp.eq.s32.totalorder %s31, 0
    %p158 = por %p156, %p157
    %s160 = sadd.s32 %s159, 1
    %p163 = scmp.eq.s32.totalorder %s25, 1
    %p164 = scmp.ne.s32.totalorder %s159, %s161
    %p165 = scmp.eq.s32.totalorder %s25, 0
    %p166 = por %p164, %p165
    %p167 = scmp.ne.s32.totalorder %s159, %s161
    %p168 = scmp.eq.s32.totalorder %s30, 1
    %p169 = por %p167, %p168
    %p170 = scmp.ne.s32.totalorder %s161, %s162
    %p171 = scmp.eq.s32.totalorder %s30, 0
    %p172 = por %p170, %p171
    %p173 = scmp.ne.s32.totalorder %s161, %s162
    %p174 = scmp.eq.s32.totalorder %s31, 1
    %p175 = por %p173, %p174
    %p177 = scmp.ne.s32.totalorder %s162, %s176
    %p178 = scmp.eq.s32.totalorder %s31, 0
    %p179 = por %p177, %p178
    %s181 = sadd.s32 %s180, 1
    %p184 = scmp.eq.s32.totalorder %s25, 1
    %p185 = scmp.ne.s32.totalorder %s180, %s182
    %p186 = scmp.eq.s32.totalorder %s25, 0
    %p187 = por %p185, %p186
    %p188 = scmp.ne.s32.totalorder %s180, %s182
    %p189 = scmp.eq.s32.totalorder %s30, 1
    %p190 = por %p188, %p189
    %p191 = scmp.ne.s32.totalorder %s182, %s183
    %p192 = scmp.eq.s32.totalorder %s30, 0
    %p193 = por %p191, %p192
    %p194 = scmp.ne.s32.totalorder %s182, %s183
    %p195 = scmp.eq.s32.totalorder %s31, 1
    %p196 = por %p194, %p195
    %p198 = scmp.ne.s32.totalorder %s183, %s197
    %p199 = scmp.eq.s32.totalorder %s31, 0
    %p200 = por %p198, %p199
    %s201 = ssub.s32 %s25, %s32
    %p202 = scmp.eq.s32.totalorder %s201, 0
    %s204 = sadd.s32 %s203, 1
    %s205 = scalar_select %p202, %s203, %s204
    %p208 = pneg %p202
    %p209 = scmp.eq.s32.totalorder %s25, 1
    %p210 = por %p208, %p209
    %p211 = scmp.ne.s32.totalorder %s203, %s206
    %p212 = scmp.eq.s32.totalorder %s25, 0
    %p213 = por %p211, %p212
    %p214 = scmp.ne.s32.totalorder %s203, %s206
    %p215 = scmp.eq.s32.totalorder %s30, 1
    %p216 = por %p214, %p215
    %p217 = scmp.ne.s32.totalorder %s206, %s207
    %p218 = scmp.eq.s32.totalorder %s30, 0
    %p219 = por %p217, %p218
    %p220 = scmp.ne.s32.totalorder %s206, %s207
    %p221 = scmp.eq.s32.totalorder %s31, 1
    %p222 = por %p220, %p221
    %p224 = scmp.ne.s32.totalorder %s207, %s223
    %p225 = scmp.eq.s32.totalorder %s31, 0
    %p226 = por %p224, %p225
    %s227 = ssub.s32 %s25, %s32
    %p228 = scmp.eq.s32.totalorder %s227, 0
    %s230 = sadd.s32 %s229, 1
    %s231 = scalar_select %p228, %s229, %s230
    %p234 = pneg %p228
    %p235 = scmp.eq.s32.totalorder %s25, 1
    %p236 = por %p234, %p235
    %p237 = scmp.ne.s32.totalorder %s229, %s232
    %p238 = scmp.eq.s32.totalorder %s25, 0
    %p239 = por %p237, %p238
    %p240 = scmp.ne.s32.totalorder %s229, %s232
    %p241 = scmp.eq.s32.totalorder %s30, 1
    %p242 = por %p240, %p241
    %p243 = scmp.ne.s32.totalorder %s232, %s233
    %p244 = scmp.eq.s32.totalorder %s30, 0
    %p245 = por %p243, %p244
    %p246 = scmp.ne.s32.totalorder %s232, %s233
    %p247 = scmp.eq.s32.totalorder %s31, 1
    %p248 = por %p246, %p247
    %p250 = scmp.ne.s32.totalorder %s233, %s249
    %p251 = scmp.eq.s32.totalorder %s31, 0
    %p252 = por %p250, %p251
    %s253 = ssub.s32 %s25, %s32
    %p254 = scmp.eq.s32.totalorder %s253, 0
    %s256 = sadd.s32 %s255, 1
    %s257 = scalar_select %p254, %s255, %s256
    %p260 = pneg %p254
    %p261 = scmp.eq.s32.totalorder %s25, 1
    %p262 = por %p260, %p261
    %p263 = scmp.ne.s32.totalorder %s255, %s258
    %p264 = scmp.eq.s32.totalorder %s25, 0
    %p265 = por %p263, %p264
    %p266 = scmp.ne.s32.totalorder %s255, %s258
    %p267 = scmp.eq.s32.totalorder %s30, 1
    %p268 = por %p266, %p267
    %p269 = scmp.ne.s32.totalorder %s258, %s259
    %p270 = scmp.eq.s32.totalorder %s30, 0
    %p271 = por %p269, %p270
    %p272 = scmp.ne.s32.totalorder %s258, %s259
    %p273 = scmp.eq.s32.totalorder %s31, 1
    %p274 = por %p272, %p273
    %p276 = scmp.ne.s32.totalorder %s259, %s275
    %p277 = scmp.eq.s32.totalorder %s31, 0
    %p278 = por %p276, %p277
    %s279 = ssub.s32 %s25, %s32
    %p280 = scmp.eq.s32.totalorder %s279, 0
    %s282 = sadd.s32 %s281, 1
    %s283 = scalar_select %p280, %s281, %s282
    %p286 = pneg %p280
    %p287 = scmp.eq.s32.totalorder %s25, 1
    %p288 = por %p286, %p287
    %p289 = scmp.ne.s32.totalorder %s281, %s284
    %p290 = scmp.eq.s32.totalorder %s25, 0
    %p291 = por %p289, %p290
    %p292 = scmp.ne.s32.totalorder %s281, %s284
    %p293 = scmp.eq.s32.totalorder %s30, 1
    %p294 = por %p292, %p293
    %p295 = scmp.ne.s32.totalorder %s284, %s285
    %p296 = scmp.eq.s32.totalorder %s30, 0
    %p297 = por %p295, %p296
    %p298 = scmp.ne.s32.totalorder %s284, %s285
    %p299 = scmp.eq.s32.totalorder %s31, 1
    %p300 = por %p298, %p299
    %p302 = scmp.ne.s32.totalorder %s285, %s301
    %p303 = scmp.eq.s32.totalorder %s31, 0
    %p304 = por %p302, %p303
    %s305 = ssub.s32 %s25, %s32
    %p306 = scmp.eq.s32.totalorder %s305, 0
    %s308 = sadd.s32 %s307, 1
    %s309 = scalar_select %p306, %s307, %s308
    %p312 = pneg %p306
    %p313 = scmp.eq.s32.totalorder %s25, 1
    %p314 = por %p312, %p313
    %p315 = scmp.ne.s32.totalorder %s307, %s310
    %p316 = scmp.eq.s32.totalorder %s25, 0
    %p317 = por %p315, %p316
    %p318 = scmp.ne.s32.totalorder %s307, %s310
    %p319 = scmp.eq.s32.totalorder %s30, 1
    %p320 = por %p318, %p319
    %p321 = scmp.ne.s32.totalorder %s310, %s311
    %p322 = scmp.eq.s32.totalorder %s30, 0
    %p323 = por %p321, %p322
    %p324 = scmp.ne.s32.totalorder %s310, %s311
    %p325 = scmp.eq.s32.totalorder %s31, 1
    %p326 = por %p324, %p325
    %p328 = scmp.ne.s32.totalorder %s311, %s327
    %p329 = scmp.eq.s32.totalorder %s31, 0
    %p330 = por %p328, %p329
    %s331 = ssub.s32 %s25, %s32
    %p332 = scmp.eq.s32.totalorder %s331, 0
    %s334 = sadd.s32 %s333, 1
    %s335 = scalar_select %p332, %s333, %s334
    %p338 = pneg %p332
    %p339 = scmp.eq.s32.totalorder %s25, 1
    %p340 = por %p338, %p339
    %p341 = scmp.ne.s32.totalorder %s333, %s336
    %p342 = scmp.eq.s32.totalorder %s25, 0
    %p343 = por %p341, %p342
    %p344 = scmp.ne.s32.totalorder %s333, %s336
    %p345 = scmp.eq.s32.totalorder %s30, 1
    %p346 = por %p344, %p345
    %p347 = scmp.ne.s32.totalorder %s336, %s337
    %p348 = scmp.eq.s32.totalorder %s30, 0
    %p349 = por %p347, %p348
    %p350 = scmp.ne.s32.totalorder %s336, %s337
    %p351 = scmp.eq.s32.totalorder %s31, 1
    %p352 = por %p350, %p351
    %p354 = scmp.ne.s32.totalorder %s337, %s353
    %p355 = scmp.eq.s32.totalorder %s31, 0
    %p356 = por %p354, %p355
    %s357 = ssub.s32 %s25, %s32
    %p358 = scmp.eq.s32.totalorder %s357, 0
    %s360 = sadd.s32 %s359, 1
    %s361 = scalar_select %p358, %s359, %s360
    %p364 = pneg %p358
    %p365 = scmp.eq.s32.totalorder %s25, 1
    %p366 = por %p364, %p365
    %p367 = scmp.ne.s32.totalorder %s359, %s362
    %p368 = scmp.eq.s32.totalorder %s25, 0
    %p369 = por %p367, %p368
    %p370 = scmp.ne.s32.totalorder %s359, %s362
    %p371 = scmp.eq.s32.totalorder %s30, 1
    %p372 = por %p370, %p371
    %p373 = scmp.ne.s32.totalorder %s362, %s363
    %p374 = scmp.eq.s32.totalorder %s30, 0
    %p375 = por %p373, %p374
    %p376 = scmp.ne.s32.totalorder %s362, %s363
    %p377 = scmp.eq.s32.totalorder %s31, 1
    %p378 = por %p376, %p377
    %p380 = scmp.ne.s32.totalorder %s363, %s379
    %p381 = scmp.eq.s32.totalorder %s31, 0
    %p382 = por %p380, %p381
    %s383 = ssub.s32 %s25, %s32
    %p384 = scmp.eq.s32.totalorder %s383, 0
    %s386 = sadd.s32 %s385, 1
    %s387 = scalar_select %p384, %s385, %s386
    %p390 = pneg %p384
    %p391 = scmp.eq.s32.totalorder %s25, 1
    %p392 = por %p390, %p391
    %p393 = scmp.ne.s32.totalorder %s385, %s388
    %p394 = scmp.eq.s32.totalorder %s25, 0
    %p395 = por %p393, %p394
    %p396 = scmp.ne.s32.totalorder %s385, %s388
    %p397 = scmp.eq.s32.totalorder %s30, 1
    %p398 = por %p396, %p397
    %p399 = scmp.ne.s32.totalorder %s388, %s389
    %p400 = scmp.eq.s32.totalorder %s30, 0
    %p401 = por %p399, %p400
    %p402 = scmp.ne.s32.totalorder %s388, %s389
    %p403 = scmp.eq.s32.totalorder %s31, 1
    %p404 = por %p402, %p403
    %p406 = scmp.ne.s32.totalorder %s389, %s405
    %p407 = scmp.eq.s32.totalorder %s31, 0
    %p408 = por %p406, %p407
    %s410 = sadd.s32 %s409, 1
    %p413 = scmp.eq.s32.totalorder %s25, 1
    %p414 = scmp.ne.s32.totalorder %s409, %s411
    %p415 = scmp.eq.s32.totalorder %s25, 0
    %p416 = por %p414, %p415
    %p417 = scmp.ne.s32.totalorder %s409, %s411
    %p418 = scmp.eq.s32.totalorder %s30, 1
    %p419 = por %p417, %p418
    %p420 = scmp.ne.s32.totalorder %s411, %s412
    %p421 = scmp.eq.s32.totalorder %s30, 0
    %p422 = por %p420, %p421
    %p423 = scmp.ne.s32.totalorder %s411, %s412
    %p424 = scmp.eq.s32.totalorder %s31, 1
    %p425 = por %p423, %p424
    %p427 = scmp.ne.s32.totalorder %s412, %s426
    %p428 = scmp.eq.s32.totalorder %s31, 0
    %p429 = por %p427, %p428
    %s431 = sadd.s32 %s430, 1
    %p434 = scmp.eq.s32.totalorder %s25, 1
    %p435 = scmp.ne.s32.totalorder %s430, %s432
    %p436 = scmp.eq.s32.totalorder %s25, 0
    %p437 = por %p435, %p436
    %p438 = scmp.ne.s32.totalorder %s430, %s432
    %p439 = scmp.eq.s32.totalorder %s30, 1
    %p440 = por %p438, %p439
    %p441 = scmp.ne.s32.totalorder %s432, %s433
    %p442 = scmp.eq.s32.totalorder %s30, 0
    %p443 = por %p441, %p442
    %p444 = scmp.ne.s32.totalorder %s432, %s433
    %p445 = scmp.eq.s32.totalorder %s31, 1
    %p446 = por %p444, %p445
    %p448 = scmp.ne.s32.totalorder %s433, %s447
    %p449 = scmp.eq.s32.totalorder %s31, 0
    %p450 = por %p448, %p449
    %s452 = sadd.s32 %s451, 1
    %p455 = scmp.eq.s32.totalorder %s25, 1
    %p456 = scmp.ne.s32.totalorder %s451, %s453
    %p457 = scmp.eq.s32.totalorder %s25, 0
    %p458 = por %p456, %p457
    %p459 = scmp.ne.s32.totalorder %s451, %s453
    %p460 = scmp.eq.s32.totalorder %s30, 1
    %p461 = por %p459, %p460
    %p462 = scmp.ne.s32.totalorder %s453, %s454
    %p463 = scmp.eq.s32.totalorder %s30, 0
    %p464 = por %p462, %p463
    %p465 = scmp.ne.s32.totalorder %s453, %s454
    %p466 = scmp.eq.s32.totalorder %s31, 1
    %p467 = por %p465, %p466
    %p469 = scmp.ne.s32.totalorder %s454, %s468
    %p470 = scmp.eq.s32.totalorder %s31, 0
    %p471 = por %p469, %p470
    %s473 = sadd.s32 %s472, 1
    %p476 = scmp.eq.s32.totalorder %s25, 1
    %p477 = scmp.ne.s32.totalorder %s472, %s474
    %p478 = scmp.eq.s32.totalorder %s25, 0
    %p479 = por %p477, %p478
    %p480 = scmp.ne.s32.totalorder %s472, %s474
    %p481 = scmp.eq.s32.totalorder %s30, 1
    %p482 = por %p480, %p481
    %p483 = scmp.ne.s32.totalorder %s474, %s475
    %p484 = scmp.eq.s32.totalorder %s30, 0
    %p485 = por %p483, %p484
    %p486 = scmp.ne.s32.totalorder %s474, %s475
    %p487 = scmp.eq.s32.totalorder %s31, 1
    %p488 = por %p486, %p487
    %p490 = scmp.ne.s32.totalorder %s475, %s489
    %p491 = scmp.eq.s32.totalorder %s31, 0
    %p492 = por %p490, %p491
    %p493 = scmp.le.s32.totalorder 1, %s25
    %p494 = scmp.lt.s32.totalorder %s25, 3
    %p495 = pnand %p493, %p494
    %p496 = pneg %p495
    // Predicated region
    $region9: #{diffusion_transformer_forward.1} parent=5 // pred_check
      _
    $region10: #{diffusion_transformer_forward.1} parent=5 // pred_check_branch
      %498 = sbr.rel (%p495) target = $region12
    $region11: #{diffusion_transformer_forward.1} parent=5 // pred_region
      %s499 = ssub.s32 %s25, 1
      // Predicated region
      $region13: #{diffusion_transformer_forward.1} parent=11 // pred_check
        %p500 = pneg %p46
      $region14: #{diffusion_transformer_forward.1} parent=11 // pred_check_branch
        %502 = sbr.rel (%p500) target = $region16
      $region15: #{diffusion_transformer_forward.1} parent=11 // pred_region
        _
      $region16: #{diffusion_transformer_forward.1} parent=11 // pred_fallthru
        _
      // Predicated region
      $region17: #{diffusion_transformer_forward.1} parent=11 // pred_check
        %p503 = pneg %p67
      $region18: #{diffusion_transformer_forward.1} parent=11 // pred_check_branch
        %505 = sbr.rel (%p503) target = $region20
      $region19: #{diffusion_transformer_forward.1} parent=11 // pred_region
        _
      $region20: #{diffusion_transformer_forward.1} parent=11 // pred_fallthru
        _
      // Predicated region
      $region21: #{diffusion_transformer_forward.1} parent=11 // pred_check
        %p506 = pneg %p88
      $region22: #{diffusion_transformer_forward.1} parent=11 // pred_check_branch
        %508 = sbr.rel (%p506) target = $region24
      $region23: #{diffusion_transformer_forward.1} parent=11 // pred_region
        _
      $region24: #{diffusion_transformer_forward.1} parent=11 // pred_fallthru
        _
      // Predicated region
      $region25: #{diffusion_transformer_forward.1} parent=11 // pred_check
        %p509 = pneg %p109
      $region26: #{diffusion_transformer_forward.1} parent=11 // pred_check_branch
        %511 = sbr.rel (%p509) target = $region28
      $region27: #{diffusion_transformer_forward.1} parent=11 // pred_region
        _
      $region28: #{diffusion_transformer_forward.1} parent=11 // pred_fallthru
        _
      // Predicated region
      $region29: #{diffusion_transformer_forward.1} parent=11 // pred_check
        %p512 = pneg %p130
      $region30: #{diffusion_transformer_forward.1} parent=11 // pred_check_branch
        %514 = sbr.rel (%p512) target = $region32
      $region31: #{diffusion_transformer_forward.1} parent=11 // pred_region
        _
      $region32: #{diffusion_transformer_forward.1} parent=11 // pred_fallthru
        _
      // Predicated region
      $region33: #{diffusion_transformer_forward.1} parent=11 // pred_check
        %p515 = pneg %p151
      $region34: #{diffusion_transformer_forward.1} parent=11 // pred_check_branch
        %517 = sbr.rel (%p515) target = $region36
      $region35: #{diffusion_transformer_forward.1} parent=11 // pred_region
        _
      $region36: #{diffusion_transformer_forward.1} parent=11 // pred_fallthru
        _
      // Predicated region
      $region37: #{diffusion_transformer_forward.1} parent=11 // pred_check
        %p518 = pneg %p172
      $region38: #{diffusion_transformer_forward.1} parent=11 // pred_check_branch
        %520 = sbr.rel (%p518) target = $region40
      $region39: #{diffusion_transformer_forward.1} parent=11 // pred_region
        _
      $region40: #{diffusion_transformer_forward.1} parent=11 // pred_fallthru
        _
      // Predicated region
      $region41: #{diffusion_transformer_forward.1} parent=11 // pred_check
        %p521 = pneg %p193
      $region42: #{diffusion_transformer_forward.1} parent=11 // pred_check_branch
        %523 = sbr.rel (%p521) target = $region44
      $region43: #{diffusion_transformer_forward.1} parent=11 // pred_region
        _
      $region44: #{diffusion_transformer_forward.1} parent=11 // pred_fallthru
        _
      // Predicated region
      $region45: #{diffusion_transformer_forward.1} parent=11 // pred_check
        %p524 = pneg %p422
      $region46: #{diffusion_transformer_forward.1} parent=11 // pred_check_branch
        %526 = sbr.rel (%p524) target = $region48
      $region47: #{diffusion_transformer_forward.1} parent=11 // pred_region
        _
      $region48: #{diffusion_transformer_forward.1} parent=11 // pred_fallthru
        _
      // Predicated region
      $region49: #{diffusion_transformer_forward.1} parent=11 // pred_check
        %p527 = pneg %p443
      $region50: #{diffusion_transformer_forward.1} parent=11 // pred_check_branch
        %529 = sbr.rel (%p527) target = $region52
      $region51: #{diffusion_transformer_forward.1} parent=11 // pred_region
        _
      $region52: #{diffusion_transformer_forward.1} parent=11 // pred_fallthru
        _
      // Predicated region
      $region53: #{diffusion_transformer_forward.1} parent=11 // pred_check
        %p530 = pneg %p464
      $region54: #{diffusion_transformer_forward.1} parent=11 // pred_check_branch
        %532 = sbr.rel (%p530) target = $region56
      $region55: #{diffusion_transformer_forward.1} parent=11 // pred_region
        _
      $region56: #{diffusion_transformer_forward.1} parent=11 // pred_fallthru
        _
    $region12: #{diffusion_transformer_forward.1} parent=5 // pred_fallthru
      _
    %p533 = scmp.lt.s32.totalorder %s25, 2
    // Predicated region
    $region57: #{diffusion_transformer_forward.1} parent=5 // pred_check
      %p534 = pneg %p533
    $region58: #{diffusion_transformer_forward.1} parent=5 // pred_check_branch
      %536 = sbr.rel (%p534) target = $region60
    $region59: #{diffusion_transformer_forward.1} parent=5 // pred_region
      // Predicated region
      $region61: #{diffusion_transformer_forward.1} parent=59 // pred_check
        %p537 = pneg %p213
      $region62: #{diffusion_transformer_forward.1} parent=59 // pred_check_branch
        %539 = sbr.rel (%p537) target = $region64
      $region63: #{diffusion_transformer_forward.1} parent=59 // pred_region
        %p540 = scmp.lt.s32.totalorder %s25, 1
        %s541 = scalar_select %p540, %s25, 1
        %s542 = scalar_lea.vmem %s8, %s541
      $region64: #{diffusion_transformer_forward.1} parent=59 // pred_fallthru
        _
      // Predicated region
      $region65: #{diffusion_transformer_forward.1} parent=59 // pred_check
        %p543 = pneg %p239
      $region66: #{diffusion_transformer_forward.1} parent=59 // pred_check_branch
        %545 = sbr.rel (%p543) target = $region68
      $region67: #{diffusion_transformer_forward.1} parent=59 // pred_region
        %p546 = scmp.lt.s32.totalorder %s25, 1
        %s547 = scalar_select %p546, %s25, 1
        %s548 = smul.addr %s547, 16
        %s549 = smul.addr %s548, 4
        %s550 = scalar_lea.vmem %s9, %s549
      $region68: #{diffusion_transformer_forward.1} parent=59 // pred_fallthru
        _
      // Predicated region
      $region69: #{diffusion_transformer_forward.1} parent=59 // pred_check
        %p551 = pneg %p265
      $region70: #{diffusion_transformer_forward.1} parent=59 // pred_check_branch
        %553 = sbr.rel (%p551) target = $region72
      $region71: #{diffusion_transformer_forward.1} parent=59 // pred_region
        %p554 = scmp.lt.s32.totalorder %s25, 1
        %s555 = scalar_select %p554, %s25, 1
        %s556 = smul.addr %s555, 8
        %s557 = smul.addr %s556, 4
        %s558 = scalar_lea.vmem %s10, %s557
      $region72: #{diffusion_transformer_forward.1} parent=59 // pred_fallthru
        _
      // Predicated region
      $region73: #{diffusion_transformer_forward.1} parent=59 // pred_check
        %p559 = pneg %p291
      $region74: #{diffusion_transformer_forward.1} parent=59 // pred_check_branch
        %561 = sbr.rel (%p559) target = $region76
      $region75: #{diffusion_transformer_forward.1} parent=59 // pred_region
        %p562 = scmp.lt.s32.totalorder %s25, 1
        %s563 = scalar_select %p562, %s25, 1
        %s564 = scalar_lea.vmem %s11, %s563
      $region76: #{diffusion_transformer_forward.1} parent=59 // pred_fallthru
        _
      // Predicated region
      $region77: #{diffusion_transformer_forward.1} parent=59 // pred_check
        %p565 = pneg %p317
      $region78: #{diffusion_transformer_forward.1} parent=59 // pred_check_branch
        %567 = sbr.rel (%p565) target = $region80
      $region79: #{diffusion_transformer_forward.1} parent=59 // pred_region
        %p568 = scmp.lt.s32.totalorder %s25, 1
        %s569 = scalar_select %p568, %s25, 1
        %s570 = smul.addr %s569, 32
        %s571 = smul.addr %s570, 4
        %s572 = scalar_lea.vmem %s12, %s571
      $region80: #{diffusion_transformer_forward.1} parent=59 // pred_fallthru
        _
      // Predicated region
      $region81: #{diffusion_transformer_forward.1} parent=59 // pred_check
        %p573 = pneg %p343
      $region82: #{diffusion_transformer_forward.1} parent=59 // pred_check_branch
        %575 = sbr.rel (%p573) target = $region84
      $region83: #{diffusion_transformer_forward.1} parent=59 // pred_region
        %p576 = scmp.lt.s32.totalorder %s25, 1
        %s577 = scalar_select %p576, %s25, 1
        %s578 = smul.addr %s577, 4
        %s579 = scalar_lea.vmem %s13, %s578
      $region84: #{diffusion_transformer_forward.1} parent=59 // pred_fallthru
        _
      // Predicated region
      $region85: #{diffusion_transformer_forward.1} parent=59 // pred_check
        %p580 = pneg %p369
      $region86: #{diffusion_transformer_forward.1} parent=59 // pred_check_branch
        %582 = sbr.rel (%p580) target = $region88
      $region87: #{diffusion_transformer_forward.1} parent=59 // pred_region
        %p583 = scmp.lt.s32.totalorder %s25, 1
        %s584 = scalar_select %p583, %s25, 1
        %s585 = smul.addr %s584, 32
        %s586 = smul.addr %s585, 4
        %s587 = scalar_lea.vmem %s14, %s586
      $region88: #{diffusion_transformer_forward.1} parent=59 // pred_fallthru
        _
      // Predicated region
      $region89: #{diffusion_transformer_forward.1} parent=59 // pred_check
        %p588 = pneg %p395
      $region90: #{diffusion_transformer_forward.1} parent=59 // pred_check_branch
        %590 = sbr.rel (%p588) target = $region92
      $region91: #{diffusion_transformer_forward.1} parent=59 // pred_region
        %p591 = scmp.lt.s32.totalorder %s25, 1
        %s592 = scalar_select %p591, %s25, 1
        %s593 = scalar_lea.vmem %s15, %s592
      $region92: #{diffusion_transformer_forward.1} parent=59 // pred_fallthru
        _
    $region60: #{diffusion_transformer_forward.1} parent=5 // pred_fallthru
      _
    %p594 = scmp.le.s32.totalorder 1, %s25
    %p595 = scmp.lt.s32.totalorder %s25, 3
    %p596 = pnand %p594, %p595
    %p597 = pneg %p596
    // Predicated region
    $region93: #{diffusion_transformer_forward.1} parent=5 // pred_check
      _
    $region94: #{diffusion_transformer_forward.1} parent=5 // pred_check_branch
      %599 = sbr.rel (%p596) target = $region96
    $region95: #{diffusion_transformer_forward.1} parent=5 // pred_region
      %s600 = ssub.s32 %s25, 1
      %p601 = pneg %p46
      %p602 = pneg %p43
      %p603 = pneg %p67
      %p604 = pneg %p64
      %p605 = pneg %p88
      %p606 = pneg %p85
      %p607 = pneg %p109
      %p608 = pneg %p106
      %p609 = pneg %p130
      %p610 = pneg %p127
      %p611 = pneg %p151
      %p612 = pneg %p148
      %p613 = pneg %p172
      %p614 = pneg %p169
      %p615 = pneg %p193
      %p616 = pneg %p190
      %p617 = scmp.lt.s32.totalorder %s30, 1
      %s618 = scalar_select %p617, %s30, 1
      %s619 = scalar_lea.vmem %s8, %s618
      %p620 = pneg %p219
      %p621 = pneg %p216
      %p622 = scmp.lt.s32.totalorder %s30, 1
      %s623 = scalar_select %p622, %s30, 1
      %s624 = smul.addr %s623, 16
      %s625 = smul.addr %s624, 4
      %s626 = scalar_lea.vmem %s9, %s625
      %p627 = pneg %p245
      %p628 = pneg %p242
      %p629 = scmp.lt.s32.totalorder %s30, 1
      %s630 = scalar_select %p629, %s30, 1
      %s631 = smul.addr %s630, 8
      %s632 = smul.addr %s631, 4
      %s633 = scalar_lea.vmem %s10, %s632
      %p634 = pneg %p271
      %p635 = pneg %p268
      %p636 = scmp.lt.s32.totalorder %s30, 1
      %s637 = scalar_select %p636, %s30, 1
      %s638 = scalar_lea.vmem %s11, %s637
      %p639 = pneg %p297
      %p640 = pneg %p294
      %p641 = scmp.lt.s32.totalorder %s30, 1
      %s642 = scalar_select %p641, %s30, 1
      %s643 = smul.addr %s642, 32
      %s644 = smul.addr %s643, 4
      %s645 = scalar_lea.vmem %s12, %s644
      %p646 = pneg %p323
      %p647 = pneg %p320
      %p648 = scmp.lt.s32.totalorder %s30, 1
      %s649 = scalar_select %p648, %s30, 1
      %s650 = smul.addr %s649, 4
      %s651 = scalar_lea.vmem %s13, %s650
      %p652 = pneg %p349
      %p653 = pneg %p346
      %p654 = scmp.lt.s32.totalorder %s30, 1
      %s655 = scalar_select %p654, %s30, 1
      %s656 = smul.addr %s655, 32
      %s657 = smul.addr %s656, 4
      %s658 = scalar_lea.vmem %s14, %s657
      %p659 = pneg %p375
      %p660 = pneg %p372
      %p661 = scmp.lt.s32.totalorder %s30, 1
      %s662 = scalar_select %p661, %s30, 1
      %s663 = scalar_lea.vmem %s15, %s662
      %p664 = pneg %p401
      %p665 = pneg %p398
      %p666 = pneg %p422
      %p667 = pneg %p419
      %p668 = pneg %p443
      %p669 = pneg %p440
      %p670 = pneg %p464
      %p671 = pneg %p461
      %p672 = pneg %p485
      %p673 = pneg %p482
      %p674 = scmp.lt.s32.totalorder %s30, 1
      %s675 = scalar_select %p674, %s30, 1
      %s676 = scalar_lea.vmem %s8, %s675
      %p677 = scmp.lt.s32.totalorder %s30, 1
      %s678 = scalar_select %p677, %s30, 1
      %s679 = smul.addr %s678, 16
      %s680 = smul.addr %s679, 4
      %s681 = scalar_lea.vmem %s9, %s680
      %p682 = scmp.lt.s32.totalorder %s30, 1
      %s683 = scalar_select %p682, %s30, 1
      %s684 = smul.addr %s683, 8
      %s685 = smul.addr %s684, 4
      %s686 = scalar_lea.vmem %s10, %s685
      %p687 = scmp.lt.s32.totalorder %s30, 1
      %s688 = scalar_select %p687, %s30, 1
      %s689 = scalar_lea.vmem %s11, %s688
      %p690 = scmp.lt.s32.totalorder %s30, 1
      %s691 = scalar_select %p690, %s30, 1
      %s692 = smul.addr %s691, 32
      %s693 = smul.addr %s692, 4
      %s694 = scalar_lea.vmem %s12, %s693
      %p695 = scmp.lt.s32.totalorder %s30, 1
      %s696 = scalar_select %p695, %s30, 1
      %s697 = smul.addr %s696, 4
      %s698 = scalar_lea.vmem %s13, %s697
      %p699 = scmp.lt.s32.totalorder %s30, 1
      %s700 = scalar_select %p699, %s30, 1
      %s701 = smul.addr %s700, 32
      %s702 = smul.addr %s701, 4
      %s703 = scalar_lea.vmem %s14, %s702
      %p704 = scmp.lt.s32.totalorder %s30, 1
      %s705 = scalar_select %p704, %s30, 1
      %s706 = scalar_lea.vmem %s15, %s705
      %p708 = scmp.eq.s32.totalorder %s30, 0
      // Predicated region
      $region97: #{diffusion_transformer_forward.1} parent=95 // pred_check
        %p709 = pneg %p708
      $region98: #{diffusion_transformer_forward.1} parent=95 // pred_check_branch
        %711 = sbr.rel (%p709) target = $region100
      $region99: #{diffusion_transformer_forward.1} parent=95 // pred_region
        %v712 = vld [vmem:[%s0] sm:$0x3]
        %v713 = vmul.f32 %v712, 6.2831855
        %v714 = vld [vmem:[%s1] sm:$0x1]
        %716 = vset.pattern.permute.xlu0 0
        %717 = vperm.xlu0 %716, %v713
        %v718 = vpop.permute.xlu0 %717
        %v721 = vlaneseq
        %v722 = vshrl.u32 %v721, 7
        %v723 = vsub.s32 0, %v722
        %v724 = vrot.slane %v714, %v723
        %v726 = vmul.f32 %v718, %v724
        %v727 = vand.u32 2147483647, %v726
        %vm728 = vcmp.le.f32.partialorder %v727, 0.7853982
        %vm729 = vcmp.lt.s32.totalorder %v726, 0
        %v730 = vand.u32 %v726, 2139095040
        %v731 = vshrl.u32 %v730, 23
        %v732 = vsub.s32 %v731, 127
        %v733 = vand.u32 2147483647, %v726
        %v734 = vand.u32 %v733, 8388607
        %v735 = vor.u32 %v734, 8388608
        %v736 = vsub.s32 0, %v735
        %v737 = vadd.s32 %v732, 1
        %vm738 = vcmp.gt.s32.totalorder %v737, 0
        %v739 = vsel %vm738, %v737, 0
        %v740 = vshrl.u32 %v739, 5
        %v741 = vand.u32 %v739, 31
        %v742 = vsub.s32 32, %v741
        %v743 = vshrl.u32 683565275, %v742
        %v744 = vshll.u32 683565275, %v741
        %v745 = vshrl.u32 2475754826, %v742
        %v746 = vor.u32 %v744, %v745
        %v747 = vshll.u32 2475754826, %v741
        %v748 = vshrl.u32 2131351028, %v742
        %v749 = vor.u32 %v747, %v748
        %v750 = vshll.u32 2131351028, %v741
        %v751 = vshrl.u32 2102212464, %v742
        %v752 = vor.u32 %v750, %v751
        %v753 = vshll.u32 2102212464, %v741
        %v754 = vshrl.u32 920167782, %v742
        %v755 = vor.u32 %v753, %v754
        %v756 = vshll.u32 920167782, %v741
        %v757 = vshrl.u32 1326507024, %v742
        %v758 = vor.u32 %v756, %v757
        %vm759 = vcmp.lt.s32.totalorder %v740, 1
        %vm760 = vcmp.lt.s32.totalorder %v740, 2
        %vm761 = vcmp.lt.s32.totalorder %v740, 3
        %vm762 = vcmp.lt.s32.totalorder %v740, 4
        %v763 = vsel %vm759, %v743, %v746
        %v764 = vsel %vm762, %v752, 2102212464
        %v765 = vsel %vm761, %v749, %v764
        %v766 = vsel %vm760, %v763, %v765
        %v767 = vsel %vm759, %v746, %v749
        %v768 = vsel %vm762, %v755, 920167782
        %v769 = vsel %vm761, %v752, %v768
        %v770 = vsel %vm760, %v767, %v769
        %v771 = vsel %vm759, %v749, %v752
        %v772 = vsel %vm762, %v758, 1326507024
        %v773 = vsel %vm761, %v755, %v772
        %v774 = vsel %vm760, %v771, %v773
        %v775 = vshll.u32 %v735, 8
        %v776 = vmul.u32.u64.compose %v775, %v774
        %v777 = vextract.low.u32 %v776
        %v778 = vextract.high.u32 %v776
        %v779 = vmul.u32.u64.compose %v775, %v770
        %v780 = vextract.low.u32 %v779
        %v781 = vextract.high.u32 %v779
        %v782 = vmul.u32 %v775, %v766
        %v783 = vadd.s32 %v778, %v780
        %vm784 = vc.u32 %v778, %v780
        %v785 = vadd.s32 %v781, 1
        %v786 = vsel %vm784, %v785, %v781
        %v787 = vadd.s32 %v782, %v786
        %v788 = vadd.s32 %v787, 536870912
        %v789 = vshrl.u32 %v788, 30
        %v790 = vshll.u32 %v789, 30
        %v791 = vsub.s32 %v787, %v790
        %vm792 = vcmp.lt.s32.totalorder %v791, 0
        %v793 = vsub.s32 0, %v791
        %v794 = vsel %vm792, %v793, %v791
        %v795 = vclz %v794
        %v796 = vsub.s32 %v795, 2
        %vm797 = vcmp.gt.s32.totalorder 0, %v796
        %v798 = vsel %vm797, 0, %v796
        %v799 = vsub.s32 32, %v798
        %v800 = vshll.u32 %v791, %v798
        %v801 = vshrl.u32 %v783, %v799
        %v802 = vor.u32 %v800, %v801
        %v803 = vsub.s32 4294967266, %v798
        %v804 = vadd.s32 %v803, 127
        %v805 = vshll.u32 %v804, 23
        %v806 = vor.u32 4788187, %v805
        %v807 = vand.u32 2147483647, %v806
        %v809 = vcvt.s32.f32 %v802
        %v810 = vmul.f32 %v809, %v807
        %v811 = vxor.u32 %v810, 2147483648
        %v812 = vsel %vm729, %v811, %v810
        %v813 = vsub.s32 4, %v789
        %v814 = vsel %vm729, %v813, %v789
        %v815 = vsel %vm728, %v726, %v812
        %v816 = vsel %vm728, 0, %v814
        %v817 = vcosq.f32.pop %v815
        %v818 = vsinq.f32.pop %v815
        %vm819 = vweird.f32 %v726
        %v820 = vand.u32 %v816, 3
        %vm821 = vcmp.lt.s32.totalorder %v820, 2
        %vm822 = vcmp.eq.s32.totalorder %v820, 0
        %v823 = vxor.u32 %v818, 2147483648
        %v824 = vsel %vm822, %v817, %v823
        %vm825 = vcmp.eq.s32.totalorder %v820, 2
        %v826 = vxor.u32 %v817, 2147483648
        %v827 = vsel %vm825, %v826, %v818
        %v828 = vsel %vm821, %v824, %v827
        %v829 = vsel %vm819, nan, %v828
        %v830 = vand.u32 2147483647, %v726
        %vm831 = vcmp.le.f32.partialorder %v830, 0.7853982
        %vm832 = vcmp.lt.s32.totalorder %v726, 0
        %v833 = vand.u32 %v726, 2139095040
        %v834 = vshrl.u32 %v833, 23
        %v835 = vsub.s32 %v834, 127
        %v836 = vand.u32 2147483647, %v726
        %v837 = vand.u32 %v836, 8388607
        %v838 = vor.u32 %v837, 8388608
        %v839 = vsub.s32 0, %v838
        %v840 = vadd.s32 %v835, 1
        %vm841 = vcmp.gt.s32.totalorder %v840, 0
        %v842 = vsel %vm841, %v840, 0
        %v843 = vshrl.u32 %v842, 5
        %v844 = vand.u32 %v842, 31
        %v845 = vsub.s32 32, %v844
        %v846 = vshrl.u32 683565275, %v845
        %v847 = vshll.u32 683565275, %v844
        %v848 = vshrl.u32 2475754826, %v845
        %v849 = vor.u32 %v847, %v848
        %v850 = vshll.u32 2475754826, %v844
        %v851 = vshrl.u32 2131351028, %v845
        %v852 = vor.u32 %v850, %v851
        %v853 = vshll.u32 2131351028, %v844
        %v854 = vshrl.u32 2102212464, %v845
        %v855 = vor.u32 %v853, %v854
        %v856 = vshll.u32 2102212464, %v844
        %v857 = vshrl.u32 920167782, %v845
        %v858 = vor.u32 %v856, %v857
        %v859 = vshll.u32 920167782, %v844
        %v860 = vshrl.u32 1326507024, %v845
        %v861 = vor.u32 %v859, %v860
        %vm862 = vcmp.lt.s32.totalorder %v843, 1
        %vm863 = vcmp.lt.s32.totalorder %v843, 2
        %vm864 = vcmp.lt.s32.totalorder %v843, 3
        %vm865 = vcmp.lt.s32.totalorder %v843, 4
        %v866 = vsel %vm862, %v846, %v849
        %v867 = vsel %vm865, %v855, 2102212464
        %v868 = vsel %vm864, %v852, %v867
        %v869 = vsel %vm863, %v866, %v868
        %v870 = vsel %vm862, %v849, %v852
        %v871 = vsel %vm865, %v858, 920167782
        %v872 = vsel %vm864, %v855, %v871
        %v873 = vsel %vm863, %v870, %v872
        %v874 = vsel %vm862, %v852, %v855
        %v875 = vsel %vm865, %v861, 1326507024
        %v876 = vsel %vm864, %v858, %v875
        %v877 = vsel %vm863, %v874, %v876
        %v878 = vshll.u32 %v838, 8
        %v879 = vmul.u32.u64.compose %v878, %v877
        %v880 = vextract.low.u32 %v879
        %v881 = vextract.high.u32 %v879
        %v882 = vmul.u32.u64.compose %v878, %v873
        %v883 = vextract.low.u32 %v882
        %v884 = vextract.high.u32 %v882
        %v885 = vmul.u32 %v878, %v869
        %v886 = vadd.s32 %v881, %v883
        %vm887 = vc.u32 %v881, %v883
        %v888 = vadd.s32 %v884, 1
        %v889 = vsel %vm887, %v888, %v884
        %v890 = vadd.s32 %v885, %v889
        %v891 = vadd.s32 %v890, 536870912
        %v892 = vshrl.u32 %v891, 30
        %v893 = vshll.u32 %v892, 30
        %v894 = vsub.s32 %v890, %v893
        %vm895 = vcmp.lt.s32.totalorder %v894, 0
        %v896 = vsub.s32 0, %v894
        %v897 = vsel %vm895, %v896, %v894
        %v898 = vclz %v897
        %v899 = vsub.s32 %v898, 2
        %vm900 = vcmp.gt.s32.totalorder 0, %v899
        %v901 = vsel %vm900, 0, %v899
        %v902 = vsub.s32 32, %v901
        %v903 = vshll.u32 %v894, %v901
        %v904 = vshrl.u32 %v886, %v902
        %v905 = vor.u32 %v903, %v904
        %v906 = vsub.s32 4294967266, %v901
        %v907 = vadd.s32 %v906, 127
        %v908 = vshll.u32 %v907, 23
        %v909 = vor.u32 4788187, %v908
        %v910 = vand.u32 2147483647, %v909
        %v912 = vcvt.s32.f32 %v905
        %v913 = vmul.f32 %v912, %v910
        %v914 = vxor.u32 %v913, 2147483648
        %v915 = vsel %vm832, %v914, %v913
        %v916 = vsub.s32 4, %v892
        %v917 = vsel %vm832, %v916, %v892
        %v918 = vsel %vm831, %v726, %v915
        %v919 = vsel %vm831, 0, %v917
        %v920 = vcosq.f32.pop %v918
        %v921 = vsinq.f32.pop %v918
        %vm922 = vweird.f32 %v726
        %v923 = vadd.s32 %v919, 3
        %v924 = vand.u32 %v923, 3
        %vm925 = vcmp.lt.s32.totalorder %v924, 2
        %vm926 = vcmp.eq.s32.totalorder %v924, 0
        %v927 = vxor.u32 %v921, 2147483648
        %v928 = vsel %vm926, %v920, %v927
        %vm929 = vcmp.eq.s32.totalorder %v924, 2
        %v930 = vxor.u32 %v920, 2147483648
        %v931 = vsel %vm929, %v930, %v921
        %v932 = vsel %vm925, %v928, %v931
        %v933 = vsel %vm922, nan, %v932
        %v934 = vpack.c.bf16 %v829, %v829
        %v935 = vpack.c.bf16 %v933, %v933
        %v936 = vld [vmem:[%s2] sm:$0xf]
        %v937 = vld [vmem:[%s2 + $0x4] sm:$0xf]
        %v938 = vld [vmem:[%s2 + $0x8] sm:$0xf]
        %v939 = vld [vmem:[%s2 + $0xc] sm:$0xf]
        %v940 = vld [vmem:[%s2 + $0x10] sm:$0xf]
        %v941 = vld [vmem:[%s2 + $0x14] sm:$0xf]
        %v942 = vld [vmem:[%s2 + $0x18] sm:$0xf]
        %v943 = vld [vmem:[%s2 + $0x1c] sm:$0xf]
        %v944 = vld [vmem:[%s2 + $0x20] sm:$0xf]
        %v945 = vld [vmem:[%s2 + $0x24] sm:$0xf]
        %v946 = vld [vmem:[%s2 + $0x28] sm:$0xf]
        %v947 = vld [vmem:[%s2 + $0x2c] sm:$0xf]
        %v948 = vld [vmem:[%s2 + $0x30] sm:$0xf]
        %v949 = vld [vmem:[%s2 + $0x34] sm:$0xf]
        %v950 = vld [vmem:[%s2 + $0x38] sm:$0xf]
        %v951 = vld [vmem:[%s2 + $0x3c] sm:$0xf]
        %v952 = vld [vmem:[%s2 + $0x40] sm:$0xf]
        %v953 = vld [vmem:[%s2 + $0x44] sm:$0xf]
        %v954 = vld [vmem:[%s2 + $0x48] sm:$0xf]
        %v955 = vld [vmem:[%s2 + $0x4c] sm:$0xf]
        %v956 = vld [vmem:[%s2 + $0x50] sm:$0xf]
        %v957 = vld [vmem:[%s2 + $0x54] sm:$0xf]
        %v958 = vld [vmem:[%s2 + $0x58] sm:$0xf]
        %v959 = vld [vmem:[%s2 + $0x5c] sm:$0xf]
        %v960 = vld [vmem:[%s2 + $0x60] sm:$0xf]
        %v961 = vld [vmem:[%s2 + $0x64] sm:$0xf]
        %v962 = vld [vmem:[%s2 + $0x68] sm:$0xf]
        %v963 = vld [vmem:[%s2 + $0x6c] sm:$0xf]
        %v964 = vld [vmem:[%s2 + $0x70] sm:$0xf]
        %v965 = vld [vmem:[%s2 + $0x74] sm:$0xf]
        %v966 = vld [vmem:[%s2 + $0x78] sm:$0xf]
        %v967 = vld [vmem:[%s2 + $0x7c] sm:$0xf]
        %v968 = vld [vmem:[%s3] sm:$0x1]
        %v970 = vlaneseq
        %v971 = vshrl.u32 %v970, 7
        %v972 = vsub.s32 0, %v971
        %v973 = vrot.slane %v968, %v972
        %v1007 = vunpack.c.l.b16 %v936
        %v1008 = vunpack.c.l.b16 %v937
        %v1009 = vunpack.c.l.b16 %v938
        %v1010 = vunpack.c.l.b16 %v939
        %v1011 = vunpack.c.l.b16 %v940
        %v1012 = vunpack.c.l.b16 %v941
        %v1013 = vunpack.c.l.b16 %v942
        %v1014 = vunpack.c.l.b16 %v943
        %v1015 = vunpack.c.l.b16 %v944
        %v1016 = vunpack.c.l.b16 %v945
        %v1017 = vunpack.c.l.b16 %v946
        %v1018 = vunpack.c.l.b16 %v947
        %v1019 = vunpack.c.l.b16 %v948
        %v1020 = vunpack.c.l.b16 %v949
        %v1021 = vunpack.c.l.b16 %v950
        %v1022 = vunpack.c.l.b16 %v951
        %v1023 = vunpack.c.l.b16 %v952
        %v1024 = vunpack.c.l.b16 %v953
        %v1025 = vunpack.c.l.b16 %v954
        %v1026 = vunpack.c.l.b16 %v955
        %v1027 = vunpack.c.l.b16 %v956
        %v1028 = vunpack.c.l.b16 %v957
        %v1029 = vunpack.c.l.b16 %v958
        %v1030 = vunpack.c.l.b16 %v959
        %v1031 = vunpack.c.l.b16 %v960
        %v1032 = vunpack.c.l.b16 %v961
        %v1033 = vunpack.c.l.b16 %v962
        %v1034 = vunpack.c.l.b16 %v963
        %v1035 = vunpack.c.l.b16 %v964
        %v1036 = vunpack.c.l.b16 %v965
        %v1037 = vunpack.c.l.b16 %v966
        %v1038 = vunpack.c.l.b16 %v967
        %v1039 = vpack.c.b16 %v1008, %v1007
        %v1040 = vpack.c.b16 %v1010, %v1009
        %v1041 = vpack.c.b16 %v1012, %v1011
        %v1042 = vpack.c.b16 %v1014, %v1013
        %v1043 = vpack.c.b16 %v1016, %v1015
        %v1044 = vpack.c.b16 %v1018, %v1017
        %v1045 = vpack.c.b16 %v1020, %v1019
        %v1046 = vpack.c.b16 %v1022, %v1021
        %v1047 = vpack.c.b16 %v1024, %v1023
        %v1048 = vpack.c.b16 %v1026, %v1025
        %v1049 = vpack.c.b16 %v1028, %v1027
        %v1050 = vpack.c.b16 %v1030, %v1029
        %v1051 = vpack.c.b16 %v1032, %v1031
        %v1052 = vpack.c.b16 %v1034, %v1033
        %v1053 = vpack.c.b16 %v1036, %v1035
        %v1054 = vpack.c.b16 %v1038, %v1037
        %1071 = vmatprep.subr.bf16.mxu0 0
        %1072 = vmatpush1.bf16.msra.mxu0 %v1039
        %1073 = vmatprep.subr.bf16.mxu0 0
        %1074 = vmatpush1.bf16.msra.mxu0 %v1040
        %1075 = vmatprep.subr.bf16.mxu0 0
        %1076 = vmatpush1.bf16.msra.mxu0 %v1041
        %1077 = vmatprep.subr.bf16.mxu0 0
        %1078 = vmatpush1.bf16.msra.mxu0 %v1042
        %1079 = vmatprep.subr.bf16.mxu0 0
        %1080 = vmatpush1.bf16.msra.mxu0 %v1043
        %1081 = vmatprep.subr.bf16.mxu0 0
        %1082 = vmatpush1.bf16.msra.mxu0 %v1044
        %1083 = vmatprep.subr.bf16.mxu0 0
        %1084 = vmatpush1.bf16.msra.mxu0 %v1045
        %1085 = vmatprep.subr.bf16.mxu0 0
        %1086 = vmatpush1.bf16.msra.mxu0 %v1046
        %1087 = vmatprep.subr.bf16.mxu0 0
        %1088 = vmatpush1.bf16.msra.mxu0 %v1047
        %1089 = vmatprep.subr.bf16.mxu0 0
        %1090 = vmatpush1.bf16.msra.mxu0 %v1048
        %1091 = vmatprep.subr.bf16.mxu0 0
        %1092 = vmatpush1.bf16.msra.mxu0 %v1049
        %1093 = vmatprep.subr.bf16.mxu0 0
        %1094 = vmatpush1.bf16.msra.mxu0 %v1050
        %1095 = vmatprep.subr.bf16.mxu0 0
        %1096 = vmatpush1.bf16.msra.mxu0 %v1051
        %1097 = vmatprep.subr.bf16.mxu0 0
        %1098 = vmatpush1.bf16.msra.mxu0 %v1052
        %1099 = vmatprep.subr.bf16.mxu0 0
        %1100 = vmatpush1.bf16.msra.mxu0 %v1053
        %1101 = vmatprep.subr.bf16.mxu0 0
        %1102 = vmatpush1.bf16.msra.mxu0 %v1054
        %1103 = vmatprep.mubr.bf16.mxu0 %v935
        %1104 = vmatmul.mubr.bf16.gmra.mrb[0].mxu0 %v934
        %v1105 = vpop.f32.mrb[0].mxu0
        %v1106 = vadd.f32 %v973, %v1105
        %v1107 = vpop.f32.mrb[0].mxu0
        %v1108 = vpop.f32.mrb[0].mxu0
        %v1109 = vpop.f32.mrb[0].mxu0
        %1110 = vdwg.mxu0
        %v1111 = vxor.u32 %v1106, 2147483648
        %v1112 = vmul.f32 %v1111, 1.442695
        %v1113 = vpow.pop %v1112
        %v1114 = vadd.f32 %v1113, 1.0
        %v1115 = vrcp.pop %v1114
        %v1116 = vmul.f32 1.0, %v1115
        %v1117 = vmul.f32 %v1106, %v1116
        %v1118 = vpack.c.bf16 %v1117, %v1117
        %v1119 = vld [vmem:[%s4] sm:$0xf]
        %v1120 = vld [vmem:[%s4 + $0x4] sm:$0xf]
        %v1121 = vld [vmem:[%s4 + $0x8] sm:$0xf]
        %v1122 = vld [vmem:[%s4 + $0xc] sm:$0xf]
        %v1123 = vld [vmem:[%s4 + $0x10] sm:$0xf]
        %v1124 = vld [vmem:[%s4 + $0x14] sm:$0xf]
        %v1125 = vld [vmem:[%s4 + $0x18] sm:$0xf]
        %v1126 = vld [vmem:[%s4 + $0x1c] sm:$0xf]
        %v1127 = vld [vmem:[%s5] sm:$0x1]
        %v1129 = vlaneseq
        %v1130 = vshrl.u32 %v1129, 7
        %v1131 = vsub.s32 0, %v1130
        %v1132 = vrot.slane %v1127, %v1131
        %v1142 = vunpack.c.l.b16 %v1119
        %v1143 = vunpack.c.l.b16 %v1120
        %v1144 = vunpack.c.l.b16 %v1121
        %v1145 = vunpack.c.l.b16 %v1122
        %v1146 = vunpack.c.l.b16 %v1123
        %v1147 = vunpack.c.l.b16 %v1124
        %v1148 = vunpack.c.l.b16 %v1125
        %v1149 = vunpack.c.l.b16 %v1126
        %v1150 = vpack.c.b16 %v1143, %v1142
        %v1151 = vpack.c.b16 %v1145, %v1144
        %v1152 = vpack.c.b16 %v1147, %v1146
        %v1153 = vpack.c.b16 %v1149, %v1148
        %vm1158 = vcmask 523264
        %v1160 = vsel %vm1158, %v1118, 0
        %1162 = vmatprep.subr.bf16.mxu0 0
        %1163 = vmatpush1.bf16.msra.mxu0 %v1150
        %1164 = vmatprep.subr.bf16.mxu0 0
        %1165 = vmatpush1.bf16.msra.mxu0 %v1151
        %1166 = vmatprep.subr.bf16.mxu0 0
        %1167 = vmatpush1.bf16.msra.mxu0 %v1152
        %1168 = vmatprep.subr.bf16.mxu0 0
        %1169 = vmatpush1.bf16.msra.mxu0 %v1153
        %1170 = vmatprep.subr.bf16.mxu0 0
        %1171 = vmatpush1.bf16.msra.mxu0 0
        %1172 = vmatprep.subr.bf16.mxu0 0
        %1173 = vmatpush1.bf16.msra.mxu0 0
        %1174 = vmatprep.subr.bf16.mxu0 0
        %1175 = vmatpush1.bf16.msra.mxu0 0
        %1176 = vmatprep.subr.bf16.mxu0 0
        %1177 = vmatpush1.bf16.msra.mxu0 0
        %1178 = vmatprep.subr.bf16.mxu0 0
        %1179 = vmatpush1.bf16.msra.mxu0 0
        %1180 = vmatprep.subr.bf16.mxu0 0
        %1181 = vmatpush1.bf16.msra.mxu0 0
        %1182 = vmatprep.subr.bf16.mxu0 0
        %1183 = vmatpush1.bf16.msra.mxu0 0
        %1184 = vmatprep.subr.bf16.mxu0 0
        %1185 = vmatpush1.bf16.msra.mxu0 0
        %1186 = vmatprep.subr.bf16.mxu0 0
        %1187 = vmatpush1.bf16.msra.mxu0 0
        %1188 = vmatprep.subr.bf16.mxu0 0
        %1189 = vmatpush1.bf16.msra.mxu0 0
        %1190 = vmatprep.subr.bf16.mxu0 0
        %1191 = vmatpush1.bf16.msra.mxu0 0
        %1192 = vmatprep.subr.bf16.mxu0 0
        %1193 = vmatpush1.bf16.msra.mxu0 0
        %1194 = vmatprep.mubr.bf16.mxu0 0
        %1195 = vmatmul.mubr.bf16.gmra.mrb[0].mxu0 %v1160
        %v1196 = vpop.f32.mrb[0].mxu0
        %v1197 = vadd.f32 %v1132, %v1196
        %v1198 = vpop.f32.mrb[0].mxu0
        %v1199 = vpop.f32.mrb[0].mxu0
        %v1200 = vpop.f32.mrb[0].mxu0
        %1201 = vdwg.mxu0
        %v1202 = vld [vmem:[%s6] sm:$0xff]
        %v1203 = vld [vmem:[%s6 + $0x8] sm:$0xff]
        %v1204 = vld [vmem:[%s6 + $0x10] sm:$0xff]
        %v1205 = vld [vmem:[%s6 + $0x18] sm:$0xff]
        %v1206 = vpack.c.bf16 %v1203, %v1202
        %v1207 = vpack.c.bf16 %v1205, %v1204
        %v1208 = vld [vmem:[%s7] sm:$0xf]
        %v1209 = vld [vmem:[%s7 + $0x4] sm:$0xf]
        %v1212 = vunpack.c.l.b16 %v1208
        %v1213 = vunpack.c.l.b16 %v1209
        %v1214 = vpack.c.b16 %v1213, %v1212
        %vm1216 = vcmask 130048
        %v1218 = vsel %vm1216, %v1206, 0
        %v1221 = vsel %vm1216, %v1207, 0
        %1223 = vmatprep.subr.bf16.mxu0 0
        %1224 = vmatpush1.bf16.msra.mxu0 %v1214
        %1225 = vmatprep.subr.bf16.mxu0 0
        %1226 = vmatpush1.bf16.msra.mxu0 0
        %1227 = vmatprep.subr.bf16.mxu0 0
        %1228 = vmatpush1.bf16.msra.mxu0 0
        %1229 = vmatprep.subr.bf16.mxu0 0
        %1230 = vmatpush1.bf16.msra.mxu0 0
        %1231 = vmatprep.subr.bf16.mxu0 0
        %1232 = vmatpush1.bf16.msra.mxu0 0
        %1233 = vmatprep.subr.bf16.mxu0 0
        %1234 = vmatpush1.bf16.msra.mxu0 0
        %1235 = vmatprep.subr.bf16.mxu0 0
        %1236 = vmatpush1.bf16.msra.mxu0 0
        %1237 = vmatprep.subr.bf16.mxu0 0
        %1238 = vmatpush1.bf16.msra.mxu0 0
        %1239 = vmatprep.subr.bf16.mxu0 0
        %1240 = vmatpush1.bf16.msra.mxu0 0
        %1241 = vmatprep.subr.bf16.mxu0 0
        %1242 = vmatpush1.bf16.msra.mxu0 0
        %1243 = vmatprep.subr.bf16.mxu0 0
        %1244 = vmatpush1.bf16.msra.mxu0 0
        %1245 = vmatprep.subr.bf16.mxu0 0
        %1246 = vmatpush1.bf16.msra.mxu0 0
        %1247 = vmatprep.subr.bf16.mxu0 0
        %1248 = vmatpush1.bf16.msra.mxu0 0
        %1249 = vmatprep.subr.bf16.mxu0 0
        %1250 = vmatpush1.bf16.msra.mxu0 0
        %1251 = vmatprep.subr.bf16.mxu0 0
        %1252 = vmatpush1.bf16.msra.mxu0 0
        %1253 = vmatprep.subr.bf16.mxu0 0
        %1254 = vmatpush1.bf16.msra.mxu0 0
        %1255 = vmatprep.mubr.bf16.mxu0 0
        %1256 = vmatmul.mubr.bf16.gmra.mrb[0].mxu0 %v1218
        %v1257 = vpop.f32.mrb[0].mxu0
        %v1258 = vadd.f32 0.0, %v1257
        %v1259 = vpop.f32.mrb[0].mxu0
        %v1260 = vpop.f32.mrb[0].mxu0
        %v1261 = vadd.f32 0.0, %v1260
        %v1262 = vpop.f32.mrb[0].mxu0
        %1263 = vmatprep.mubr.bf16.mxu0 0
        %1264 = vmatmul.mubr.bf16.gmra.mrb[0].mxu0 %v1221
        %v1265 = vpop.f32.mrb[0].mxu0
        %v1266 = vadd.f32 0.0, %v1265
        %v1267 = vpop.f32.mrb[0].mxu0
        %v1268 = vpop.f32.mrb[0].mxu0
        %v1269 = vadd.f32 0.0, %v1268
        %v1270 = vpop.f32.mrb[0].mxu0
        %1271 = vdwg.mxu0
        %1272 = vst.msk [vmem:[#allocation2] sm:$0xff] %vm1158, 0.0
        %1273 = vst.msk [vmem:[#allocation2 + $0x8] sm:$0xff] %vm1158, 0.0
        %1274 = vst.msk [vmem:[#allocation2 + $0x10] sm:$0xff] %vm1158, 0.0
        %1275 = vst.msk [vmem:[#allocation2 + $0x18] sm:$0xff] %vm1158, 0.0
        %1276 = vst.msk [vmem:[#allocation2 + $0x20] sm:$0xff] %vm1158, 0.0
        %1277 = vst.msk [vmem:[#allocation2 + $0x28] sm:$0xff] %vm1158, 0.0
        %vm1278 = vcmask 516096
        %1279 = vst.msk [vmem:[#allocation2] sm:$0x1] %vm1278, %v1197
        %1280 = vst.msk [vmem:[#allocation2 + $0x1] sm:$0xff] %vm1158, %v1258
        %1281 = vst.msk [vmem:[#allocation2 + $0x9] sm:$0xff] %vm1158, %v1261
        %vm1282 = vcmask 517121
        %1283 = vst.msk [vmem:[#allocation2 + $0x17] sm:$0x2] %vm1282, %v1197
        %1284 = vst.msk [vmem:[#allocation2 + $0x19] sm:$0xff] %vm1158, %v1266
        %1285 = vst.msk [vmem:[#allocation2 + $0x21] sm:$0xff] %vm1158, %v1269
      $region100: #{diffusion_transformer_forward.1} parent=95 // pred_fallthru
        _
      %v1286 = vld [vmem:[#allocation2] sm:$0xff]
      %v1287 = vld [vmem:[#allocation2 + $0x8] sm:$0xff]
      %v1288 = vld [vmem:[#allocation2 + $0x10] sm:$0xff]
      %v1289 = vld [vmem:[#allocation2 + $0x18] sm:$0xff]
      %v1290 = vld [vmem:[#allocation2 + $0x20] sm:$0xff]
      %v1291 = vld [vmem:[#allocation2 + $0x28] sm:$0xff]
      %v1292 = vld [vmem:[%s676] sm:$0x1]
      %vm1293 = vcmask 523264
      %v1294 = vsel %vm1293, %v1286, 0.0
      %1295 = vadd.xlane.f32.xlu0 %v1294
      %v1296 = vpop.xlane.xlu0 %1295
      %v1297 = vsel %vm1293, %v1287, 0.0
      %1298 = vadd.xlane.f32.xlu0 %v1297
      %v1299 = vpop.xlane.xlu0 %1298
      %v1300 = vsel %vm1293, %v1288, 0.0
      %1301 = vadd.xlane.f32.xlu0 %v1300
      %v1302 = vpop.xlane.xlu0 %1301
      %v1303 = vsel %vm1293, %v1289, 0.0
      %1304 = vadd.xlane.f32.xlu0 %v1303
      %v1305 = vpop.xlane.xlu0 %1304
      %v1306 = vsel %vm1293, %v1290, 0.0
      %1307 = vadd.xlane.f32.xlu0 %v1306
      %v1308 = vpop.xlane.xlu0 %1307
      %v1309 = vsel %vm1293, %v1291, 0.0
      %1310 = vadd.xlane.f32.xlu0 %v1309
      %v1311 = vpop.xlane.xlu0 %1310
      %v1312 = vrcp.pop 64.0
      %v1313 = vmul.f32 %v1296, %v1312
      %v1314 = vmul.f32 %v1299, %v1312
      %v1315 = vmul.f32 %v1302, %v1312
      %v1316 = vmul.f32 %v1305, %v1312
      %v1317 = vmul.f32 %v1308, %v1312
      %v1318 = vmul.f32 %v1311, %v1312
      %v1319 = vsub.f32 %v1286, %v1313
      %v1320 = vsub.f32 %v1287, %v1314
      %v1321 = vsub.f32 %v1288, %v1315
      %v1322 = vsub.f32 %v1289, %v1316
      %v1323 = vsub.f32 %v1290, %v1317
      %v1324 = vsub.f32 %v1291, %v1318
      %v1325 = vmul.f32 %v1319, %v1319
      %v1326 = vmul.f32 %v1320, %v1320
      %v1327 = vmul.f32 %v1321, %v1321
      %v1328 = vmul.f32 %v1322, %v1322
      %v1329 = vmul.f32 %v1323, %v1323
      %v1330 = vmul.f32 %v1324, %v1324
      %v1331 = vsel %vm1293, %v1325, 0.0
      %1332 = vadd.xlane.f32.xlu0 %v1331
      %v1333 = vpop.xlane.xlu0 %1332
      %v1334 = vsel %vm1293, %v1326, 0.0
      %1335 = vadd.xlane.f32.xlu0 %v1334
      %v1336 = vpop.xlane.xlu0 %1335
      %v1337 = vsel %vm1293, %v1327, 0.0
      %1338 = vadd.xlane.f32.xlu0 %v1337
      %v1339 = vpop.xlane.xlu0 %1338
      %v1340 = vsel %vm1293, %v1328, 0.0
      %1341 = vadd.xlane.f32.xlu0 %v1340
      %v1342 = vpop.xlane.xlu0 %1341
      %v1343 = vsel %vm1293, %v1329, 0.0
      %1344 = vadd.xlane.f32.xlu0 %v1343
      %v1345 = vpop.xlane.xlu0 %1344
      %v1346 = vsel %vm1293, %v1330, 0.0
      %1347 = vadd.xlane.f32.xlu0 %v1346
      %v1348 = vpop.xlane.xlu0 %1347
      %v1349 = vmul.f32 %v1333, %v1312
      %v1350 = vmul.f32 %v1336, %v1312
      %v1351 = vmul.f32 %v1339, %v1312
      %v1352 = vmul.f32 %v1342, %v1312
      %v1353 = vmul.f32 %v1345, %v1312
      %v1354 = vmul.f32 %v1348, %v1312
      %v1355 = vadd.f32 %v1349, 1e-05
      %v1356 = vadd.f32 %v1350, 1e-05
      %v1357 = vadd.f32 %v1351, 1e-05
      %v1358 = vadd.f32 %v1352, 1e-05
      %v1359 = vadd.f32 %v1353, 1e-05
      %v1360 = vadd.f32 %v1354, 1e-05
      %v1361 = vrsqrt.pop %v1355
      %v1362 = vrsqrt.pop %v1356
      %v1363 = vrsqrt.pop %v1357
      %v1364 = vrsqrt.pop %v1358
      %v1365 = vrsqrt.pop %v1359
      %v1366 = vrsqrt.pop %v1360
      %v1367 = vmul.f32 %v1319, %v1361
      %v1368 = vmul.f32 %v1320, %v1362
      %v1369 = vmul.f32 %v1321, %v1363
      %v1370 = vmul.f32 %v1322, %v1364
      %v1371 = vmul.f32 %v1323, %v1365
      %v1372 = vmul.f32 %v1324, %v1366
      %v1374 = vlaneseq
      %v1375 = vshrl.u32 %v1374, 7
      %v1376 = vsub.s32 0, %v1375
      %v1377 = vrot.slane %v1292, %v1376
      %v1379 = vmul.f32 %v1367, %v1377
      %v1380 = vmul.f32 %v1368, %v1377
      %v1381 = vmul.f32 %v1369, %v1377
      %v1382 = vmul.f32 %v1370, %v1377
      %v1383 = vmul.f32 %v1371, %v1377
      %v1384 = vmul.f32 %v1372, %v1377
      %v1385 = vpack.c.bf16 %v1380, %v1379
      %v1386 = vpack.c.bf16 %v1382, %v1381
      %v1387 = vpack.c.bf16 %v1384, %v1383
      %v1388 = vld [vmem:[%s681] sm:$0xff]
      %v1389 = vld [vmem:[%s681 + $0x8] sm:$0xff]
      %v1390 = vld [vmem:[%s681 + $0x10] sm:$0xff]
      %v1391 = vld [vmem:[%s681 + $0x18] sm:$0xff]
      %v1392 = vld [vmem:[%s681 + $0x20] sm:$0xff]
      %v1393 = vld [vmem:[%s681 + $0x28] sm:$0xff]
      %v1394 = vld [vmem:[%s681 + $0x30] sm:$0xff]
      %v1395 = vld [vmem:[%s681 + $0x38] sm:$0xff]
      %v1404 = vunpack.c.l.b16 %v1388
      %v1405 = vunpack.c.h.b16 %v1388
      %v1406 = vunpack.c.l.b16 %v1389
      %v1407 = vunpack.c.h.b16 %v1389
      %v1408 = vunpack.c.l.b16 %v1390
      %v1409 = vunpack.c.h.b16 %v1390
      %v1410 = vunpack.c.l.b16 %v1391
      %v1411 = vunpack.c.h.b16 %v1391
      %v1412 = vunpack.c.l.b16 %v1392
      %v1413 = vunpack.c.h.b16 %v1392
      %v1414 = vunpack.c.l.b16 %v1393
      %v1415 = vunpack.c.h.b16 %v1393
      %v1416 = vunpack.c.l.b16 %v1394
      %v1417 = vunpack.c.h.b16 %v1394
      %v1418 = vunpack.c.l.b16 %v1395
      %v1419 = vunpack.c.h.b16 %v1395
      %v1420 = vpack.c.b16 %v1406, %v1404
      %v1421 = vpack.c.b16 %v1407, %v1405
      %v1422 = vpack.c.b16 %v1410, %v1408
      %v1423 = vpack.c.b16 %v1411, %v1409
      %v1424 = vpack.c.b16 %v1414, %v1412
      %v1425 = vpack.c.b16 %v1415, %v1413
      %v1426 = vpack.c.b16 %v1418, %v1416
      %v1427 = vpack.c.b16 %v1419, %v1417
      %v1437 = vsel %vm1293, %v1385, 0
      %v1440 = vsel %vm1293, %v1386, 0
      %v1443 = vsel %vm1293, %v1387, 0
      %1445 = vmatprep.subr.bf16.mxu0 %v1421
      %1446 = vmatpush1.bf16.msra.mxu0 %v1420
      %1447 = vmatprep.subr.bf16.mxu0 %v1423
      %1448 = vmatpush1.bf16.msra.mxu0 %v1422
      %1449 = vmatprep.subr.bf16.mxu0 %v1425
      %1450 = vmatpush1.bf16.msra.mxu0 %v1424
      %1451 = vmatprep.subr.bf16.mxu0 %v1427
      %1452 = vmatpush1.bf16.msra.mxu0 %v1426
      %1453 = vmatprep.subr.bf16.mxu0 0
      %1454 = vmatpush1.bf16.msra.mxu0 0
      %1455 = vmatprep.subr.bf16.mxu0 0
      %1456 = vmatpush1.bf16.msra.mxu0 0
      %1457 = vmatprep.subr.bf16.mxu0 0
      %1458 = vmatpush1.bf16.msra.mxu0 0
      %1459 = vmatprep.subr.bf16.mxu0 0
      %1460 = vmatpush1.bf16.msra.mxu0 0
      %1461 = vmatprep.subr.bf16.mxu0 0
      %1462 = vmatpush1.bf16.msra.mxu0 0
      %1463 = vmatprep.subr.bf16.mxu0 0
      %1464 = vmatpush1.bf16.msra.mxu0 0
      %1465 = vmatprep.subr.bf16.mxu0 0
      %1466 = vmatpush1.bf16.msra.mxu0 0
      %1467 = vmatprep.subr.bf16.mxu0 0
      %1468 = vmatpush1.bf16.msra.mxu0 0
      %1469 = vmatprep.subr.bf16.mxu0 0
      %1470 = vmatpush1.bf16.msra.mxu0 0
      %1471 = vmatprep.subr.bf16.mxu0 0
      %1472 = vmatpush1.bf16.msra.mxu0 0
      %1473 = vmatprep.subr.bf16.mxu0 0
      %1474 = vmatpush1.bf16.msra.mxu0 0
      %1475 = vmatprep.subr.bf16.mxu0 0
      %1476 = vmatpush1.bf16.msra.mxu0 0
      %1477 = vmatprep.mubr.bf16.mxu0 0
      %1478 = vmatmul.mubr.bf16.gmra.mrb[0].mxu0 %v1437
      %v1479 = vpop.f32.mrb[0].mxu0
      %v1480 = vadd.f32 0.0, %v1479
      %v1481 = vpop.f32.mrb[0].mxu0
      %v1482 = vadd.f32 0.0, %v1481
      %v1483 = vpop.f32.mrb[0].mxu0
      %v1484 = vadd.f32 0.0, %v1483
      %v1485 = vpop.f32.mrb[0].mxu0
      %v1486 = vadd.f32 0.0, %v1485
      %1487 = vmatprep.mubr.bf16.mxu0 0
      %1488 = vmatmul.mubr.bf16.gmra.mrb[0].mxu0 %v1440
      %v1489 = vpop.f32.mrb[0].mxu0
      %v1490 = vadd.f32 0.0, %v1489
      %v1491 = vpop.f32.mrb[0].mxu0
      %v1492 = vadd.f32 0.0, %v1491
      %v1493 = vpop.f32.mrb[0].mxu0
      %v1494 = vadd.f32 0.0, %v1493
      %v1495 = vpop.f32.mrb[0].mxu0
      %v1496 = vadd.f32 0.0, %v1495
      %1497 = vmatprep.mubr.bf16.mxu0 0
      %1498 = vmatmul.mubr.bf16.gmra.mrb[0].mxu0 %v1443
      %v1499 = vpop.f32.mrb[0].mxu0
      %v1500 = vadd.f32 0.0, %v1499
      %v1501 = vpop.f32.mrb[0].mxu0
      %v1502 = vadd.f32 0.0, %v1501
      %v1503 = vpop.f32.mrb[0].mxu0
      %v1504 = vadd.f32 0.0, %v1503
      %v1505 = vpop.f32.mrb[0].mxu0
      %v1506 = vadd.f32 0.0, %v1505
      %1507 = vdwg.mxu0
      %v1508 = vld [vmem:[%s16] sm:$0xff]
      %v1509 = vld [vmem:[%s16 + $0x8] sm:$0xff]
      %v1510 = vld [vmem:[%s16 + $0x10] sm:$0xff]
      %v1511 = vld [vmem:[%s16 + $0x18] sm:$0xff]
      %v1512 = vld [vmem:[%s16 + $0x20] sm:$0xff]
      %v1513 = vld [vmem:[%s16 + $0x28] sm:$0xff]
      %v1514 = vld [vmem:[%s17] sm:$0xff]
      %v1515 = vld [vmem:[%s17 + $0x8] sm:$0xff]
      %v1516 = vld [vmem:[%s17 + $0x10] sm:$0xff]
      %v1517 = vld [vmem:[%s17 + $0x18] sm:$0xff]
      %v1518 = vld [vmem:[%s17 + $0x20] sm:$0xff]
      %v1519 = vld [vmem:[%s17 + $0x28] sm:$0xff]
      %v1520 = vlaneseq
      %v1521 = vand.u32 %v1520, 127
      %vm1522 = vcmp.lt.s32.totalorder %v1521, 17
      %v1523 = vsel %vm1522, 0.0, -1e+30
      %v1524 = vmul.f32 %v1480, %v1508
      %v1525 = vmul.f32 %v1484, %v1509
      %v1526 = vmul.f32 %v1490, %v1510
      %v1527 = vmul.f32 %v1494, %v1511
      %v1528 = vmul.f32 %v1500, %v1512
      %v1529 = vmul.f32 %v1504, %v1513
      %vm1530 = vcmask 1047808
      %1531 = vrot.lane.b32.xlu0 %v1480, 32
      %v1532 = vpop.permute.xlu0 %1531
      %v1533 = vsel %vm1530, %v1532, %v1480
      %1534 = vrot.lane.b32.xlu0 %v1484, 32
      %v1535 = vpop.permute.xlu0 %1534
      %v1536 = vsel %vm1530, %v1535, %v1484
      %1537 = vrot.lane.b32.xlu0 %v1490, 32
      %v1538 = vpop.permute.xlu0 %1537
      %v1539 = vsel %vm1530, %v1538, %v1490
      %1540 = vrot.lane.b32.xlu0 %v1494, 32
      %v1541 = vpop.permute.xlu0 %1540
      %v1542 = vsel %vm1530, %v1541, %v1494
      %1543 = vrot.lane.b32.xlu0 %v1500, 32
      %v1544 = vpop.permute.xlu0 %1543
      %v1545 = vsel %vm1530, %v1544, %v1500
      %1546 = vrot.lane.b32.xlu0 %v1504, 32
      %v1547 = vpop.permute.xlu0 %1546
      %v1548 = vsel %vm1530, %v1547, %v1504
      %1549 = vrot.lane.b32.xlu0 %v1533, 32
      %v1550 = vpop.permute.xlu0 %1549
      %1551 = vrot.lane.b32.xlu0 %v1536, 32
      %v1552 = vpop.permute.xlu0 %1551
      %1553 = vrot.lane.b32.xlu0 %v1539, 32
      %v1554 = vpop.permute.xlu0 %1553
      %1555 = vrot.lane.b32.xlu0 %v1542, 32
      %v1556 = vpop.permute.xlu0 %1555
      %1557 = vrot.lane.b32.xlu0 %v1545, 32
      %v1558 = vpop.permute.xlu0 %1557
      %1559 = vrot.lane.b32.xlu0 %v1548, 32
      %v1560 = vpop.permute.xlu0 %1559
      %v1561 = vsel %vm1530, %v1550, %v1480
      %v1562 = vsel %vm1530, %v1552, %v1484
      %v1563 = vsel %vm1530, %v1554, %v1490
      %v1564 = vsel %vm1530, %v1556, %v1494
      %v1565 = vsel %vm1530, %v1558, %v1500
      %v1566 = vsel %vm1530, %v1560, %v1504
      %1573 = vrot.lane.b32.xlu0 %v1514, 16
      %v1574 = vpop.permute.xlu0 %1573
      %1575 = vrot.lane.b32.xlu0 %v1515, 16
      %v1576 = vpop.permute.xlu0 %1575
      %1577 = vrot.lane.b32.xlu0 %v1516, 16
      %v1578 = vpop.permute.xlu0 %1577
      %1579 = vrot.lane.b32.xlu0 %v1517, 16
      %v1580 = vpop.permute.xlu0 %1579
      %1581 = vrot.lane.b32.xlu0 %v1518, 16
      %v1582 = vpop.permute.xlu0 %1581
      %1583 = vrot.lane.b32.xlu0 %v1519, 16
      %v1584 = vpop.permute.xlu0 %1583
      %v1591 = vmul.f32 %v1561, %v1574
      %v1592 = vmul.f32 %v1562, %v1576
      %v1593 = vmul.f32 %v1563, %v1578
      %v1594 = vmul.f32 %v1564, %v1580
      %v1595 = vmul.f32 %v1565, %v1582
      %v1596 = vmul.f32 %v1566, %v1584
      %1603 = vrot.lane.b32.xlu0 %v1591, 112
      %v1604 = vpop.permute.xlu0 %1603
      %1605 = vrot.lane.b32.xlu0 %v1592, 112
      %v1606 = vpop.permute.xlu0 %1605
      %1607 = vrot.lane.b32.xlu0 %v1593, 112
      %v1608 = vpop.permute.xlu0 %1607
      %1609 = vrot.lane.b32.xlu0 %v1594, 112
      %v1610 = vpop.permute.xlu0 %1609
      %1611 = vrot.lane.b32.xlu0 %v1595, 112
      %v1612 = vpop.permute.xlu0 %1611
      %1613 = vrot.lane.b32.xlu0 %v1596, 112
      %v1614 = vpop.permute.xlu0 %1613
      %v1621 = vadd.f32 %v1524, %v1604
      %v1622 = vadd.f32 %v1525, %v1606
      %v1623 = vadd.f32 %v1526, %v1608
      %v1624 = vadd.f32 %v1527, %v1610
      %v1625 = vadd.f32 %v1528, %v1612
      %v1626 = vadd.f32 %v1529, %v1614
      %1633 = vrot.lane.b32.xlu0 %v1508, 64
      %v1634 = vpop.permute.xlu0 %1633
      %1635 = vrot.lane.b32.xlu0 %v1509, 64
      %v1636 = vpop.permute.xlu0 %1635
      %1637 = vrot.lane.b32.xlu0 %v1510, 64
      %v1638 = vpop.permute.xlu0 %1637
      %1639 = vrot.lane.b32.xlu0 %v1511, 64
      %v1640 = vpop.permute.xlu0 %1639
      %1641 = vrot.lane.b32.xlu0 %v1512, 64
      %v1642 = vpop.permute.xlu0 %1641
      %1643 = vrot.lane.b32.xlu0 %v1513, 64
      %v1644 = vpop.permute.xlu0 %1643
      %v1651 = vmul.f32 %v1480, %v1634
      %v1652 = vmul.f32 %v1484, %v1636
      %v1653 = vmul.f32 %v1490, %v1638
      %v1654 = vmul.f32 %v1494, %v1640
      %v1655 = vmul.f32 %v1500, %v1642
      %v1656 = vmul.f32 %v1504, %v1644
      %1663 = vrot.lane.b32.xlu0 %v1480, 64
      %v1664 = vpop.permute.xlu0 %1663
      %1665 = vrot.lane.b32.xlu0 %v1484, 64
      %v1666 = vpop.permute.xlu0 %1665
      %1667 = vrot.lane.b32.xlu0 %v1490, 64
      %v1668 = vpop.permute.xlu0 %1667
      %1669 = vrot.lane.b32.xlu0 %v1494, 64
      %v1670 = vpop.permute.xlu0 %1669
      %1671 = vrot.lane.b32.xlu0 %v1500, 64
      %v1672 = vpop.permute.xlu0 %1671
      %1673 = vrot.lane.b32.xlu0 %v1504, 64
      %v1674 = vpop.permute.xlu0 %1673
      %1681 = vrot.lane.b32.xlu0 %v1664, 32
      %v1682 = vpop.permute.xlu0 %1681
      %v1683 = vsel %vm1530, %v1682, %v1664
      %1684 = vrot.lane.b32.xlu0 %v1666, 32
      %v1685 = vpop.permute.xlu0 %1684
      %v1686 = vsel %vm1530, %v1685, %v1666
      %1687 = vrot.lane.b32.xlu0 %v1668, 32
      %v1688 = vpop.permute.xlu0 %1687
      %v1689 = vsel %vm1530, %v1688, %v1668
      %1690 = vrot.lane.b32.xlu0 %v1670, 32
      %v1691 = vpop.permute.xlu0 %1690
      %v1692 = vsel %vm1530, %v1691, %v1670
      %1693 = vrot.lane.b32.xlu0 %v1672, 32
      %v1694 = vpop.permute.xlu0 %1693
      %v1695 = vsel %vm1530, %v1694, %v1672
      %1696 = vrot.lane.b32.xlu0 %v1674, 32
      %v1697 = vpop.permute.xlu0 %1696
      %v1698 = vsel %vm1530, %v1697, %v1674
      %1699 = vrot.lane.b32.xlu0 %v1683, 32
      %v1700 = vpop.permute.xlu0 %1699
      %1701 = vrot.lane.b32.xlu0 %v1686, 32
      %v1702 = vpop.permute.xlu0 %1701
      %1703 = vrot.lane.b32.xlu0 %v1689, 32
      %v1704 = vpop.permute.xlu0 %1703
      %1705 = vrot.lane.b32.xlu0 %v1692, 32
      %v1706 = vpop.permute.xlu0 %1705
      %1707 = vrot.lane.b32.xlu0 %v1695, 32
      %v1708 = vpop.permute.xlu0 %1707
      %1709 = vrot.lane.b32.xlu0 %v1698, 32
      %v1710 = vpop.permute.xlu0 %1709
      %v1711 = vsel %vm1530, %v1700, %v1664
      %v1712 = vsel %vm1530, %v1702, %v1666
      %v1713 = vsel %vm1530, %v1704, %v1668
      %v1714 = vsel %vm1530, %v1706, %v1670
      %v1715 = vsel %vm1530, %v1708, %v1672
      %v1716 = vsel %vm1530, %v1710, %v1674
      %v1717 = vmul.f32 %v1711, %v1574
      %v1718 = vmul.f32 %v1712, %v1576
      %v1719 = vmul.f32 %v1713, %v1578
      %v1720 = vmul.f32 %v1714, %v1580
      %v1721 = vmul.f32 %v1715, %v1582
      %v1722 = vmul.f32 %v1716, %v1584
      %1729 = vrot.lane.b32.xlu0 %v1717, 48
      %v1730 = vpop.permute.xlu0 %1729
      %1731 = vrot.lane.b32.xlu0 %v1718, 48
      %v1732 = vpop.permute.xlu0 %1731
      %1733 = vrot.lane.b32.xlu0 %v1719, 48
      %v1734 = vpop.permute.xlu0 %1733
      %1735 = vrot.lane.b32.xlu0 %v1720, 48
      %v1736 = vpop.permute.xlu0 %1735
      %1737 = vrot.lane.b32.xlu0 %v1721, 48
      %v1738 = vpop.permute.xlu0 %1737
      %1739 = vrot.lane.b32.xlu0 %v1722, 48
      %v1740 = vpop.permute.xlu0 %1739
      %v1747 = vadd.f32 %v1651, %v1730
      %v1748 = vadd.f32 %v1652, %v1732
      %v1749 = vadd.f32 %v1653, %v1734
      %v1750 = vadd.f32 %v1654, %v1736
      %v1751 = vadd.f32 %v1655, %v1738
      %v1752 = vadd.f32 %v1656, %v1740
      %v1753 = vpack.c.bf16 %v1622, %v1621
      %v1754 = vpack.c.bf16 %v1623, %v1623
      %v1755 = vpack.c.bf16 %v1625, %v1624
      %v1756 = vpack.c.bf16 %v1626, %v1626
      %v1757 = vpack.c.bf16 %v1748, %v1747
      %v1758 = vpack.c.bf16 %v1749, %v1749
      %v1759 = vpack.c.bf16 %v1751, %v1750
      %v1760 = vpack.c.bf16 %v1752, %v1752
      %1763 = vrot.lane.b32.xlu0 %v1757, 64
      %v1764 = vpop.permute.xlu0 %1763
      %1765 = vrot.lane.b32.xlu0 %v1758, 64
      %v1766 = vpop.permute.xlu0 %1765
      %vm1767 = vcmask 261120
      %v1769 = vsel %vm1767, %v1753, 0
      %v1772 = vsel %vm1767, %v1754, 0
      %v1775 = vsel %vm1767, %v1764, 0
      %v1778 = vsel %vm1767, %v1766, 0
      %1780 = vmatprep.subr.bf16.mxu0 0
      %1781 = vmatpush1.bf16.xpose.msra.mxu0 %v1775
      %1782 = vmatprep.subr.bf16.mxu0 0
      %1783 = vmatpush1.bf16.xpose.msra.mxu0 %v1778
      %1784 = vmatprep.subr.bf16.mxu0 0
      %1785 = vmatpush1.bf16.xpose.msra.mxu0 0
      %1786 = vmatprep.subr.bf16.mxu0 0
      %1787 = vmatpush1.bf16.xpose.msra.mxu0 0
      %1788 = vmatprep.subr.bf16.mxu0 0
      %1789 = vmatpush1.bf16.xpose.msra.mxu0 0
      %1790 = vmatprep.subr.bf16.mxu0 0
      %1791 = vmatpush1.bf16.xpose.msra.mxu0 0
      %1792 = vmatprep.subr.bf16.mxu0 0
      %1793 = vmatpush1.bf16.xpose.msra.mxu0 0
      %1794 = vmatprep.subr.bf16.mxu0 0
      %1795 = vmatpush1.bf16.xpose.msra.mxu0 0
      %1796 = vmatprep.subr.bf16.mxu0 0
      %1797 = vmatpush1.bf16.xpose.msra.mxu0 0
      %1798 = vmatprep.subr.bf16.mxu0 0
      %1799 = vmatpush1.bf16.xpose.msra.mxu0 0
      %1800 = vmatprep.subr.bf16.mxu0 0
      %1801 = vmatpush1.bf16.xpose.msra.mxu0 0
      %1802 = vmatprep.subr.bf16.mxu0 0
      %1803 = vmatpush1.bf16.xpose.msra.mxu0 0
      %1804 = vmatprep.subr.bf16.mxu0 0
      %1805 = vmatpush1.bf16.xpose.msra.mxu0 0
      %1806 = vmatprep.subr.bf16.mxu0 0
      %1807 = vmatpush1.bf16.xpose.msra.mxu0 0
      %1808 = vmatprep.subr.bf16.mxu0 0
      %1809 = vmatpush1.bf16.xpose.msra.mxu0 0
      %1810 = vmatprep.subr.bf16.mxu0 0
      %1811 = vmatpush1.bf16.xpose.msra.mxu0 0
      %1812 = vmatprep.mubr.bf16.mxu0 0
      %1813 = vmatmul.mubr.bf16.gmra.mrb[0].mxu0 %v1769
      %v1814 = vpop.f32.mrb[0].mxu0
      %v1815 = vadd.f32 0.0, %v1814
      %v1816 = vpop.f32.mrb[0].mxu0
      %v1817 = vpop.f32.mrb[0].mxu0
      %v1818 = vadd.f32 0.0, %v1817
      %v1819 = vpop.f32.mrb[0].mxu0
      %1820 = vmatprep.mubr.bf16.mxu0 0
      %1821 = vmatmul.mubr.bf16.gmra.mrb[0].mxu0 %v1772
      %v1822 = vpop.f32.mrb[0].mxu0
      %v1823 = vadd.f32 0.0, %v1822
      %v1824 = vpop.f32.mrb[0].mxu0
      %v1825 = vpop.f32.mrb[0].mxu0
      %v1826 = vpop.f32.mrb[0].mxu0
      %1827 = vdwg.mxu0
      %1830 = vrot.lane.b32.xlu0 %v1759, 64
      %v1831 = vpop.permute.xlu0 %1830
      %1832 = vrot.lane.b32.xlu0 %v1760, 64
      %v1833 = vpop.permute.xlu0 %1832
      %v1835 = vsel %vm1767, %v1755, 0
      %v1838 = vsel %vm1767, %v1756, 0
      %v1841 = vsel %vm1767, %v1831, 0
      %v1844 = vsel %vm1767, %v1833, 0
      %1846 = vmatprep.subr.bf16.mxu0 0
      %1847 = vmatpush1.bf16.xpose.msra.mxu0 %v1841
      %1848 = vmatprep.subr.bf16.mxu0 0
      %1849 = vmatpush1.bf16.xpose.msra.mxu0 %v1844
      %1850 = vmatprep.subr.bf16.mxu0 0
      %1851 = vmatpush1.bf16.xpose.msra.mxu0 0
      %1852 = vmatprep.subr.bf16.mxu0 0
      %1853 = vmatpush1.bf16.xpose.msra.mxu0 0
      %1854 = vmatprep.subr.bf16.mxu0 0
      %1855 = vmatpush1.bf16.xpose.msra.mxu0 0
      %1856 = vmatprep.subr.bf16.mxu0 0
      %1857 = vmatpush1.bf16.xpose.msra.mxu0 0
      %1858 = vmatprep.subr.bf16.mxu0 0
      %1859 = vmatpush1.bf16.xpose.msra.mxu0 0
      %1860 = vmatprep.subr.bf16.mxu0 0
      %1861 = vmatpush1.bf16.xpose.msra.mxu0 0
      %1862 = vmatprep.subr.bf16.mxu0 0
      %1863 = vmatpush1.bf16.xpose.msra.mxu0 0
      %1864 = vmatprep.subr.bf16.mxu0 0
      %1865 = vmatpush1.bf16.xpose.msra.mxu0 0
      %1866 = vmatprep.subr.bf16.mxu0 0
      %1867 = vmatpush1.bf16.xpose.msra.mxu0 0
      %1868 = vmatprep.subr.bf16.mxu0 0
      %1869 = vmatpush1.bf16.xpose.msra.mxu0 0
      %1870 = vmatprep.subr.bf16.mxu0 0
      %1871 = vmatpush1.bf16.xpose.msra.mxu0 0
      %1872 = vmatprep.subr.bf16.mxu0 0
      %1873 = vmatpush1.bf16.xpose.msra.mxu0 0
      %1874 = vmatprep.subr.bf16.mxu0 0
      %1875 = vmatpush1.bf16.xpose.msra.mxu0 0
      %1876 = vmatprep.subr.bf16.mxu0 0
      %1877 = vmatpush1.bf16.xpose.msra.mxu0 0
      %1878 = vmatprep.mubr.bf16.mxu0 0
      %1879 = vmatmul.mubr.bf16.gmra.mrb[0].mxu0 %v1835
      %v1880 = vpop.f32.mrb[0].mxu0
      %v1881 = vadd.f32 0.0, %v1880
      %v1882 = vpop.f32.mrb[0].mxu0
      %v1883 = vpop.f32.mrb[0].mxu0
      %v1884 = vadd.f32 0.0, %v1883
      %v1885 = vpop.f32.mrb[0].mxu0
      %1886 = vmatprep.mubr.bf16.mxu0 0
      %1887 = vmatmul.mubr.bf16.gmra.mrb[0].mxu0 %v1838
      %v1888 = vpop.f32.mrb[0].mxu0
      %v1889 = vadd.f32 0.0, %v1888
      %v1890 = vpop.f32.mrb[0].mxu0
      %v1891 = vpop.f32.mrb[0].mxu0
      %v1892 = vpop.f32.mrb[0].mxu0
      %1893 = vdwg.mxu0
      %v1894 = vmul.f32 %v1815, 0.17677669
      %v1895 = vmul.f32 %v1818, 0.17677669
      %v1896 = vmul.f32 %v1823, 0.17677669
      %v1897 = vmul.f32 %v1881, 0.17677669
      %v1898 = vmul.f32 %v1884, 0.17677669
      %v1899 = vmul.f32 %v1889, 0.17677669
      %v1900 = vadd.f32 %v1894, %v1523
      %v1901 = vadd.f32 %v1895, %v1523
      %v1902 = vadd.f32 %v1896, %v1523
      %v1903 = vadd.f32 %v1897, %v1523
      %v1904 = vadd.f32 %v1898, %v1523
      %v1905 = vadd.f32 %v1899, %v1523
      %vm1906 = vcmask 195584
      %v1907 = vsel %vm1906, %v1900, -inf
      %1908 = vmax.xlane.f32.xlu0 %v1907
      %v1909 = vpop.xlane.xlu0 %1908
      %v1910 = vsel %vm1906, %v1901, -inf
      %1911 = vmax.xlane.f32.xlu0 %v1910
      %v1912 = vpop.xlane.xlu0 %1911
      %v1913 = vsel %vm1906, %v1902, -inf
      %1914 = vmax.xlane.f32.xlu0 %v1913
      %v1915 = vpop.xlane.xlu0 %1914
      %v1916 = vsel %vm1906, %v1903, -inf
      %1917 = vmax.xlane.f32.xlu0 %v1916
      %v1918 = vpop.xlane.xlu0 %1917
      %v1919 = vsel %vm1906, %v1904, -inf
      %1920 = vmax.xlane.f32.xlu0 %v1919
      %v1921 = vpop.xlane.xlu0 %1920
      %v1922 = vsel %vm1906, %v1905, -inf
      %1923 = vmax.xlane.f32.xlu0 %v1922
      %v1924 = vpop.xlane.xlu0 %1923
      %v1925 = vsub.f32 %v1900, %v1909
      %v1926 = vsub.f32 %v1901, %v1912
      %v1927 = vsub.f32 %v1902, %v1915
      %v1928 = vsub.f32 %v1903, %v1918
      %v1929 = vsub.f32 %v1904, %v1921
      %v1930 = vsub.f32 %v1905, %v1924
      %v1931 = vmul.f32 %v1925, 1.442695
      %v1932 = vpow.pop %v1931
      %v1933 = vmul.f32 %v1926, 1.442695
      %v1934 = vpow.pop %v1933
      %v1935 = vmul.f32 %v1927, 1.442695
      %v1936 = vpow.pop %v1935
      %v1937 = vmul.f32 %v1928, 1.442695
      %v1938 = vpow.pop %v1937
      %v1939 = vmul.f32 %v1929, 1.442695
      %v1940 = vpow.pop %v1939
      %v1941 = vmul.f32 %v1930, 1.442695
      %v1942 = vpow.pop %v1941
      %v1943 = vsel %vm1906, %v1932, 0.0
      %1944 = vadd.xlane.f32.xlu0 %v1943
      %v1945 = vpop.xlane.xlu0 %1944
      %v1946 = vsel %vm1906, %v1934, 0.0
      %1947 = vadd.xlane.f32.xlu0 %v1946
      %v1948 = vpop.xlane.xlu0 %1947
      %v1949 = vsel %vm1906, %v1936, 0.0
      %1950 = vadd.xlane.f32.xlu0 %v1949
      %v1951 = vpop.xlane.xlu0 %1950
      %v1952 = vsel %vm1906, %v1938, 0.0
      %1953 = vadd.xlane.f32.xlu0 %v1952
      %v1954 = vpop.xlane.xlu0 %1953
      %v1955 = vsel %vm1906, %v1940, 0.0
      %1956 = vadd.xlane.f32.xlu0 %v1955
      %v1957 = vpop.xlane.xlu0 %1956
      %v1958 = vsel %vm1906, %v1942, 0.0
      %1959 = vadd.xlane.f32.xlu0 %v1958
      %v1960 = vpop.xlane.xlu0 %1959
      %v1961 = vpack.c.bf16 %v1934, %v1932
      %v1962 = vpack.c.bf16 %v1936, %v1936
      %v1963 = vpack.c.bf16 %v1940, %v1938
      %v1964 = vpack.c.bf16 %v1942, %v1942
      %v1965 = vpack.c.bf16 %v1486, %v1482
      %v1966 = vpack.c.bf16 %v1492, %v1492
      %v1967 = vpack.c.bf16 %v1502, %v1496
      %v1968 = vpack.c.bf16 %v1506, %v1506
      %v1970 = vsel %vm1906, %v1961, 0
      %v1973 = vsel %vm1906, %v1962, 0
      %vm1975 = vcmask 1043456
      %v1977 = vsel %vm1975, %v1966, 0
      %1979 = vmatprep.subr.bf16.mxu0 0
      %1980 = vmatpush1.bf16.msra.mxu0 %v1965
      %1981 = vmatprep.subr.bf16.mxu0 0
      %1982 = vmatpush1.bf16.msra.mxu0 %v1977
      %1983 = vmatprep.subr.bf16.mxu0 0
      %1984 = vmatpush1.bf16.msra.mxu0 0
      %1985 = vmatprep.subr.bf16.mxu0 0
      %1986 = vmatpush1.bf16.msra.mxu0 0
      %1987 = vmatprep.subr.bf16.mxu0 0
      %1988 = vmatpush1.bf16.msra.mxu0 0
      %1989 = vmatprep.subr.bf16.mxu0 0
      %1990 = vmatpush1.bf16.msra.mxu0 0
      %1991 = vmatprep.subr.bf16.mxu0 0
      %1992 = vmatpush1.bf16.msra.mxu0 0
      %1993 = vmatprep.subr.bf16.mxu0 0
      %1994 = vmatpush1.bf16.msra.mxu0 0
      %1995 = vmatprep.subr.bf16.mxu0 0
      %1996 = vmatpush1.bf16.msra.mxu0 0
      %1997 = vmatprep.subr.bf16.mxu0 0
      %1998 = vmatpush1.bf16.msra.mxu0 0
      %1999 = vmatprep.subr.bf16.mxu0 0
      %2000 = vmatpush1.bf16.msra.mxu0 0
      %2001 = vmatprep.subr.bf16.mxu0 0
      %2002 = vmatpush1.bf16.msra.mxu0 0
      %2003 = vmatprep.subr.bf16.mxu0 0
      %2004 = vmatpush1.bf16.msra.mxu0 0
      %2005 = vmatprep.subr.bf16.mxu0 0
      %2006 = vmatpush1.bf16.msra.mxu0 0
      %2007 = vmatprep.subr.bf16.mxu0 0
      %2008 = vmatpush1.bf16.msra.mxu0 0
      %2009 = vmatprep.subr.bf16.mxu0 0
      %2010 = vmatpush1.bf16.msra.mxu0 0
      %2011 = vmatprep.mubr.bf16.mxu0 0
      %2012 = vmatmul.mubr.bf16.gmra.mrb[0].mxu0 %v1970
      %v2013 = vpop.f32.mrb[0].mxu0
      %v2014 = vadd.f32 0.0, %v2013
      %v2015 = vpop.f32.mrb[0].mxu0
      %v2016 = vpop.f32.mrb[0].mxu0
      %v2017 = vadd.f32 0.0, %v2016
      %v2018 = vpop.f32.mrb[0].mxu0
      %2019 = vmatprep.mubr.bf16.mxu0 0
      %2020 = vmatmul.mubr.bf16.gmra.mrb[0].mxu0 %v1973
      %v2021 = vpop.f32.mrb[0].mxu0
      %v2022 = vadd.f32 0.0, %v2021
      %v2023 = vpop.f32.mrb[0].mxu0
      %v2024 = vpop.f32.mrb[0].mxu0
      %v2025 = vpop.f32.mrb[0].mxu0
      %2026 = vdwg.mxu0
      %v2028 = vsel %vm1906, %v1963, 0
      %v2031 = vsel %vm1906, %v1964, 0
      %v2034 = vsel %vm1975, %v1968, 0
      %2036 = vmatprep.subr.bf16.mxu0 0
      %2037 = vmatpush1.bf16.msra.mxu0 %v1967
      %2038 = vmatprep.subr.bf16.mxu0 0
      %2039 = vmatpush1.bf16.msra.mxu0 %v2034
      %2040 = vmatprep.subr.bf16.mxu0 0
      %2041 = vmatpush1.bf16.msra.mxu0 0
      %2042 = vmatprep.subr.bf16.mxu0 0
      %2043 = vmatpush1.bf16.msra.mxu0 0
      %2044 = vmatprep.subr.bf16.mxu0 0
      %2045 = vmatpush1.bf16.msra.mxu0 0
      %2046 = vmatprep.subr.bf16.mxu0 0
      %2047 = vmatpush1.bf16.msra.mxu0 0
      %2048 = vmatprep.subr.bf16.mxu0 0
      %2049 = vmatpush1.bf16.msra.mxu0 0
      %2050 = vmatprep.subr.bf16.mxu0 0
      %2051 = vmatpush1.bf16.msra.mxu0 0
      %2052 = vmatprep.subr.bf16.mxu0 0
      %2053 = vmatpush1.bf16.msra.mxu0 0
      %2054 = vmatprep.subr.bf16.mxu0 0
      %2055 = vmatpush1.bf16.msra.mxu0 0
      %2056 = vmatprep.subr.bf16.mxu0 0
      %2057 = vmatpush1.bf16.msra.mxu0 0
      %2058 = vmatprep.subr.bf16.mxu0 0
      %2059 = vmatpush1.bf16.msra.mxu0 0
      %2060 = vmatprep.subr.bf16.mxu0 0
      %2061 = vmatpush1.bf16.msra.mxu0 0
      %2062 = vmatprep.subr.bf16.mxu0 0
      %2063 = vmatpush1.bf16.msra.mxu0 0
      %2064 = vmatprep.subr.bf16.mxu0 0
      %2065 = vmatpush1.bf16.msra.mxu0 0
      %2066 = vmatprep.subr.bf16.mxu0 0
      %2067 = vmatpush1.bf16.msra.mxu0 0
      %2068 = vmatprep.mubr.bf16.mxu0 0
      %2069 = vmatmul.mubr.bf16.gmra.mrb[0].mxu0 %v2028
      %v2070 = vpop.f32.mrb[0].mxu0
      %v2071 = vadd.f32 0.0, %v2070
      %v2072 = vpop.f32.mrb[0].mxu0
      %v2073 = vpop.f32.mrb[0].mxu0
      %v2074 = vadd.f32 0.0, %v2073
      %v2075 = vpop.f32.mrb[0].mxu0
      %2076 = vmatprep.mubr.bf16.mxu0 0
      %2077 = vmatmul.mubr.bf16.gmra.mrb[0].mxu0 %v2031
      %v2078 = vpop.f32.mrb[0].mxu0
      %v2079 = vadd.f32 0.0, %v2078
      %v2080 = vpop.f32.mrb[0].mxu0
      %v2081 = vpop.f32.mrb[0].mxu0
      %v2082 = vpop.f32.mrb[0].mxu0
      %2083 = vdwg.mxu0
      %v2084 = vrcp.pop %v1945
      %v2085 = vrcp.pop %v1948
      %v2086 = vrcp.pop %v1951
      %v2087 = vrcp.pop %v1954
      %v2088 = vrcp.pop %v1957
      %v2089 = vrcp.pop %v1960
      %v2090 = vmul.f32 %v2014, %v2084
      %v2091 = vmul.f32 %v2017, %v2085
      %v2092 = vmul.f32 %v2022, %v2086
      %v2093 = vmul.f32 %v2071, %v2087
      %v2094 = vmul.f32 %v2074, %v2088
      %v2095 = vmul.f32 %v2079, %v2089
      %2096 = vrot.lane.b32.xlu0 %v1508, 32
      %v2097 = vpop.permute.xlu0 %2096
      %2098 = vrot.lane.b32.xlu0 %v1509, 32
      %v2099 = vpop.permute.xlu0 %2098
      %2100 = vrot.lane.b32.xlu0 %v1510, 32
      %v2101 = vpop.permute.xlu0 %2100
      %2102 = vrot.lane.b32.xlu0 %v1511, 32
      %v2103 = vpop.permute.xlu0 %2102
      %2104 = vrot.lane.b32.xlu0 %v1512, 32
      %v2105 = vpop.permute.xlu0 %2104
      %2106 = vrot.lane.b32.xlu0 %v1513, 32
      %v2107 = vpop.permute.xlu0 %2106
      %v2114 = vmul.f32 %v1480, %v2097
      %v2115 = vmul.f32 %v1484, %v2099
      %v2116 = vmul.f32 %v1490, %v2101
      %v2117 = vmul.f32 %v1494, %v2103
      %v2118 = vmul.f32 %v1500, %v2105
      %v2119 = vmul.f32 %v1504, %v2107
      %2120 = vrot.lane.b32.xlu0 %v1480, 96
      %v2121 = vpop.permute.xlu0 %2120
      %2122 = vrot.lane.b32.xlu0 %v1484, 96
      %v2123 = vpop.permute.xlu0 %2122
      %2124 = vrot.lane.b32.xlu0 %v1490, 96
      %v2125 = vpop.permute.xlu0 %2124
      %2126 = vrot.lane.b32.xlu0 %v1494, 96
      %v2127 = vpop.permute.xlu0 %2126
      %2128 = vrot.lane.b32.xlu0 %v1500, 96
      %v2129 = vpop.permute.xlu0 %2128
      %2130 = vrot.lane.b32.xlu0 %v1504, 96
      %v2131 = vpop.permute.xlu0 %2130
      %2138 = vrot.lane.b32.xlu0 %v2121, 32
      %v2139 = vpop.permute.xlu0 %2138
      %v2140 = vsel %vm1530, %v2139, %v2121
      %2141 = vrot.lane.b32.xlu0 %v2123, 32
      %v2142 = vpop.permute.xlu0 %2141
      %v2143 = vsel %vm1530, %v2142, %v2123
      %2144 = vrot.lane.b32.xlu0 %v2125, 32
      %v2145 = vpop.permute.xlu0 %2144
      %v2146 = vsel %vm1530, %v2145, %v2125
      %2147 = vrot.lane.b32.xlu0 %v2127, 32
      %v2148 = vpop.permute.xlu0 %2147
      %v2149 = vsel %vm1530, %v2148, %v2127
      %2150 = vrot.lane.b32.xlu0 %v2129, 32
      %v2151 = vpop.permute.xlu0 %2150
      %v2152 = vsel %vm1530, %v2151, %v2129
      %2153 = vrot.lane.b32.xlu0 %v2131, 32
      %v2154 = vpop.permute.xlu0 %2153
      %v2155 = vsel %vm1530, %v2154, %v2131
      %2156 = vrot.lane.b32.xlu0 %v2140, 32
      %v2157 = vpop.permute.xlu0 %2156
      %2158 = vrot.lane.b32.xlu0 %v2143, 32
      %v2159 = vpop.permute.xlu0 %2158
      %2160 = vrot.lane.b32.xlu0 %v2146, 32
      %v2161 = vpop.permute.xlu0 %2160
      %2162 = vrot.lane.b32.xlu0 %v2149, 32
      %v2163 = vpop.permute.xlu0 %2162
      %2164 = vrot.lane.b32.xlu0 %v2152, 32
      %v2165 = vpop.permute.xlu0 %2164
      %2166 = vrot.lane.b32.xlu0 %v2155, 32
      %v2167 = vpop.permute.xlu0 %2166
      %v2168 = vsel %vm1530, %v2157, %v2121
      %v2169 = vsel %vm1530, %v2159, %v2123
      %v2170 = vsel %vm1530, %v2161, %v2125
      %v2171 = vsel %vm1530, %v2163, %v2127
      %v2172 = vsel %vm1530, %v2165, %v2129
      %v2173 = vsel %vm1530, %v2167, %v2131
      %v2174 = vmul.f32 %v2168, %v1574
      %v2175 = vmul.f32 %v2169, %v1576
      %v2176 = vmul.f32 %v2170, %v1578
      %v2177 = vmul.f32 %v2171, %v1580
      %v2178 = vmul.f32 %v2172, %v1582
      %v2179 = vmul.f32 %v2173, %v1584
      %2186 = vrot.lane.b32.xlu0 %v2174, 16
      %v2187 = vpop.permute.xlu0 %2186
      %2188 = vrot.lane.b32.xlu0 %v2175, 16
      %v2189 = vpop.permute.xlu0 %2188
      %2190 = vrot.lane.b32.xlu0 %v2176, 16
      %v2191 = vpop.permute.xlu0 %2190
      %2192 = vrot.lane.b32.xlu0 %v2177, 16
      %v2193 = vpop.permute.xlu0 %2192
      %2194 = vrot.lane.b32.xlu0 %v2178, 16
      %v2195 = vpop.permute.xlu0 %2194
      %2196 = vrot.lane.b32.xlu0 %v2179, 16
      %v2197 = vpop.permute.xlu0 %2196
      %v2204 = vadd.f32 %v2114, %v2187
      %v2205 = vadd.f32 %v2115, %v2189
      %v2206 = vadd.f32 %v2116, %v2191
      %v2207 = vadd.f32 %v2117, %v2193
      %v2208 = vadd.f32 %v2118, %v2195
      %v2209 = vadd.f32 %v2119, %v2197
      %2210 = vrot.lane.b32.xlu0 %v1508, 96
      %v2211 = vpop.permute.xlu0 %2210
      %2212 = vrot.lane.b32.xlu0 %v1509, 96
      %v2213 = vpop.permute.xlu0 %2212
      %2214 = vrot.lane.b32.xlu0 %v1510, 96
      %v2215 = vpop.permute.xlu0 %2214
      %2216 = vrot.lane.b32.xlu0 %v1511, 96
      %v2217 = vpop.permute.xlu0 %2216
      %2218 = vrot.lane.b32.xlu0 %v1512, 96
      %v2219 = vpop.permute.xlu0 %2218
      %2220 = vrot.lane.b32.xlu0 %v1513, 96
      %v2221 = vpop.permute.xlu0 %2220
      %v2228 = vmul.f32 %v1480, %v2211
      %v2229 = vmul.f32 %v1484, %v2213
      %v2230 = vmul.f32 %v1490, %v2215
      %v2231 = vmul.f32 %v1494, %v2217
      %v2232 = vmul.f32 %v1500, %v2219
      %v2233 = vmul.f32 %v1504, %v2221
      %2234 = vrot.lane.b32.xlu0 %v1480, 32
      %v2235 = vpop.permute.xlu0 %2234
      %2236 = vrot.lane.b32.xlu0 %v1484, 32
      %v2237 = vpop.permute.xlu0 %2236
      %2238 = vrot.lane.b32.xlu0 %v1490, 32
      %v2239 = vpop.permute.xlu0 %2238
      %2240 = vrot.lane.b32.xlu0 %v1494, 32
      %v2241 = vpop.permute.xlu0 %2240
      %2242 = vrot.lane.b32.xlu0 %v1500, 32
      %v2243 = vpop.permute.xlu0 %2242
      %2244 = vrot.lane.b32.xlu0 %v1504, 32
      %v2245 = vpop.permute.xlu0 %2244
      %2252 = vrot.lane.b32.xlu0 %v2235, 32
      %v2253 = vpop.permute.xlu0 %2252
      %v2254 = vsel %vm1530, %v2253, %v2235
      %2255 = vrot.lane.b32.xlu0 %v2237, 32
      %v2256 = vpop.permute.xlu0 %2255
      %v2257 = vsel %vm1530, %v2256, %v2237
      %2258 = vrot.lane.b32.xlu0 %v2239, 32
      %v2259 = vpop.permute.xlu0 %2258
      %v2260 = vsel %vm1530, %v2259, %v2239
      %2261 = vrot.lane.b32.xlu0 %v2241, 32
      %v2262 = vpop.permute.xlu0 %2261
      %v2263 = vsel %vm1530, %v2262, %v2241
      %2264 = vrot.lane.b32.xlu0 %v2243, 32
      %v2265 = vpop.permute.xlu0 %2264
      %v2266 = vsel %vm1530, %v2265, %v2243
      %2267 = vrot.lane.b32.xlu0 %v2245, 32
      %v2268 = vpop.permute.xlu0 %2267
      %v2269 = vsel %vm1530, %v2268, %v2245
      %2270 = vrot.lane.b32.xlu0 %v2254, 32
      %v2271 = vpop.permute.xlu0 %2270
      %2272 = vrot.lane.b32.xlu0 %v2257, 32
      %v2273 = vpop.permute.xlu0 %2272
      %2274 = vrot.lane.b32.xlu0 %v2260, 32
      %v2275 = vpop.permute.xlu0 %2274
      %2276 = vrot.lane.b32.xlu0 %v2263, 32
      %v2277 = vpop.permute.xlu0 %2276
      %2278 = vrot.lane.b32.xlu0 %v2266, 32
      %v2279 = vpop.permute.xlu0 %2278
      %2280 = vrot.lane.b32.xlu0 %v2269, 32
      %v2281 = vpop.permute.xlu0 %2280
      %v2282 = vsel %vm1530, %v2271, %v2235
      %v2283 = vsel %vm1530, %v2273, %v2237
      %v2284 = vsel %vm1530, %v2275, %v2239
      %v2285 = vsel %vm1530, %v2277, %v2241
      %v2286 = vsel %vm1530, %v2279, %v2243
      %v2287 = vsel %vm1530, %v2281, %v2245
      %v2288 = vmul.f32 %v2282, %v1574
      %v2289 = vmul.f32 %v2283, %v1576
      %v2290 = vmul.f32 %v2284, %v1578
      %v2291 = vmul.f32 %v2285, %v1580
      %v2292 = vmul.f32 %v2286, %v1582
      %v2293 = vmul.f32 %v2287, %v1584
      %2300 = vrot.lane.b32.xlu0 %v2288, 80
      %v2301 = vpop.permute.xlu0 %2300
      %2302 = vrot.lane.b32.xlu0 %v2289, 80
      %v2303 = vpop.permute.xlu0 %2302
      %2304 = vrot.lane.b32.xlu0 %v2290, 80
      %v2305 = vpop.permute.xlu0 %2304
      %2306 = vrot.lane.b32.xlu0 %v2291, 80
      %v2307 = vpop.permute.xlu0 %2306
      %2308 = vrot.lane.b32.xlu0 %v2292, 80
      %v2309 = vpop.permute.xlu0 %2308
      %2310 = vrot.lane.b32.xlu0 %v2293, 80
      %v2311 = vpop.permute.xlu0 %2310
      %v2318 = vadd.f32 %v2228, %v2301
      %v2319 = vadd.f32 %v2229, %v2303
      %v2320 = vadd.f32 %v2230, %v2305
      %v2321 = vadd.f32 %v2231, %v2307
      %v2322 = vadd.f32 %v2232, %v2309
      %v2323 = vadd.f32 %v2233, %v2311
      %v2324 = vpack.c.bf16 %v2205, %v2204
      %v2325 = vpack.c.bf16 %v2206, %v2206
      %v2326 = vpack.c.bf16 %v2208, %v2207
      %v2327 = vpack.c.bf16 %v2209, %v2209
      %v2328 = vpack.c.bf16 %v2319, %v2318
      %v2329 = vpack.c.bf16 %v2320, %v2320
      %v2330 = vpack.c.bf16 %v2322, %v2321
      %v2331 = vpack.c.bf16 %v2323, %v2323
      %2334 = vrot.lane.b32.xlu0 %v2324, 96
      %v2335 = vpop.permute.xlu0 %2334
      %2336 = vrot.lane.b32.xlu0 %v2325, 96
      %v2337 = vpop.permute.xlu0 %2336
      %2340 = vrot.lane.b32.xlu0 %v2328, 32
      %v2341 = vpop.permute.xlu0 %2340
      %2342 = vrot.lane.b32.xlu0 %v2329, 32
      %v2343 = vpop.permute.xlu0 %2342
      %v2345 = vsel %vm1767, %v2335, 0
      %v2348 = vsel %vm1767, %v2337, 0
      %v2351 = vsel %vm1767, %v2341, 0
      %v2354 = vsel %vm1767, %v2343, 0
      %2356 = vmatprep.subr.bf16.mxu0 0
      %2357 = vmatpush1.bf16.xpose.msra.mxu0 %v2351
      %2358 = vmatprep.subr.bf16.mxu0 0
      %2359 = vmatpush1.bf16.xpose.msra.mxu0 %v2354
      %2360 = vmatprep.subr.bf16.mxu0 0
      %2361 = vmatpush1.bf16.xpose.msra.mxu0 0
      %2362 = vmatprep.subr.bf16.mxu0 0
      %2363 = vmatpush1.bf16.xpose.msra.mxu0 0
      %2364 = vmatprep.subr.bf16.mxu0 0
      %2365 = vmatpush1.bf16.xpose.msra.mxu0 0
      %2366 = vmatprep.subr.bf16.mxu0 0
      %2367 = vmatpush1.bf16.xpose.msra.mxu0 0
      %2368 = vmatprep.subr.bf16.mxu0 0
      %2369 = vmatpush1.bf16.xpose.msra.mxu0 0
      %2370 = vmatprep.subr.bf16.mxu0 0
      %2371 = vmatpush1.bf16.xpose.msra.mxu0 0
      %2372 = vmatprep.subr.bf16.mxu0 0
      %2373 = vmatpush1.bf16.xpose.msra.mxu0 0
      %2374 = vmatprep.subr.bf16.mxu0 0
      %2375 = vmatpush1.bf16.xpose.msra.mxu0 0
      %2376 = vmatprep.subr.bf16.mxu0 0
      %2377 = vmatpush1.bf16.xpose.msra.mxu0 0
      %2378 = vmatprep.subr.bf16.mxu0 0
      %2379 = vmatpush1.bf16.xpose.msra.mxu0 0
      %2380 = vmatprep.subr.bf16.mxu0 0
      %2381 = vmatpush1.bf16.xpose.msra.mxu0 0
      %2382 = vmatprep.subr.bf16.mxu0 0
      %2383 = vmatpush1.bf16.xpose.msra.mxu0 0
      %2384 = vmatprep.subr.bf16.mxu0 0
      %2385 = vmatpush1.bf16.xpose.msra.mxu0 0
      %2386 = vmatprep.subr.bf16.mxu0 0
      %2387 = vmatpush1.bf16.xpose.msra.mxu0 0
      %2388 = vmatprep.mubr.bf16.mxu0 0
      %2389 = vmatmul.mubr.bf16.gmra.mrb[0].mxu0 %v2345
      %v2390 = vpop.f32.mrb[0].mxu0
      %v2391 = vadd.f32 0.0, %v2390
      %v2392 = vpop.f32.mrb[0].mxu0
      %v2393 = vpop.f32.mrb[0].mxu0
      %v2394 = vadd.f32 0.0, %v2393
      %v2395 = vpop.f32.mrb[0].mxu0
      %2396 = vmatprep.mubr.bf16.mxu0 0
      %2397 = vmatmul.mubr.bf16.gmra.mrb[0].mxu0 %v2348
      %v2398 = vpop.f32.mrb[0].mxu0
      %v2399 = vadd.f32 0.0, %v2398
      %v2400 = vpop.f32.mrb[0].mxu0
      %v2401 = vpop.f32.mrb[0].mxu0
      %v2402 = vpop.f32.mrb[0].mxu0
      %2403 = vdwg.mxu0
      %2406 = vrot.lane.b32.xlu0 %v2326, 96
      %v2407 = vpop.permute.xlu0 %2406
      %2408 = vrot.lane.b32.xlu0 %v2327, 96
      %v2409 = vpop.permute.xlu0 %2408
      %2412 = vrot.lane.b32.xlu0 %v2330, 32
      %v2413 = vpop.permute.xlu0 %2412
      %2414 = vrot.lane.b32.xlu0 %v2331, 32
      %v2415 = vpop.permute.xlu0 %2414
      %v2417 = vsel %vm1767, %v2407, 0
      %v2420 = vsel %vm1767, %v2409, 0
      %v2423 = vsel %vm1767, %v2413, 0
      %v2426 = vsel %vm1767, %v2415, 0
      %2428 = vmatprep.subr.bf16.mxu0 0
      %2429 = vmatpush1.bf16.xpose.msra.mxu0 %v2423
      %2430 = vmatprep.subr.bf16.mxu0 0
      %2431 = vmatpush1.bf16.xpose.msra.mxu0 %v2426
      %2432 = vmatprep.subr.bf16.mxu0 0
      %2433 = vmatpush1.bf16.xpose.msra.mxu0 0
      %2434 = vmatprep.subr.bf16.mxu0 0
      %2435 = vmatpush1.bf16.xpose.msra.mxu0 0
      %2436 = vmatprep.subr.bf16.mxu0 0
      %2437 = vmatpush1.bf16.xpose.msra.mxu0 0
      %2438 = vmatprep.subr.bf16.mxu0 0
      %2439 = vmatpush1.bf16.xpose.msra.mxu0 0
      %2440 = vmatprep.subr.bf16.mxu0 0
      %2441 = vmatpush1.bf16.xpose.msra.mxu0 0
      %2442 = vmatprep.subr.bf16.mxu0 0
      %2443 = vmatpush1.bf16.xpose.msra.mxu0 0
      %2444 = vmatprep.subr.bf16.mxu0 0
      %2445 = vmatpush1.bf16.xpose.msra.mxu0 0
      %2446 = vmatprep.subr.bf16.mxu0 0
      %2447 = vmatpush1.bf16.xpose.msra.mxu0 0
      %2448 = vmatprep.subr.bf16.mxu0 0
      %2449 = vmatpush1.bf16.xpose.msra.mxu0 0
      %2450 = vmatprep.subr.bf16.mxu0 0
      %2451 = vmatpush1.bf16.xpose.msra.mxu0 0
      %2452 = vmatprep.subr.bf16.mxu0 0
      %2453 = vmatpush1.bf16.xpose.msra.mxu0 0
      %2454 = vmatprep.subr.bf16.mxu0 0
      %2455 = vmatpush1.bf16.xpose.msra.mxu0 0
      %2456 = vmatprep.subr.bf16.mxu0 0
      %2457 = vmatpush1.bf16.xpose.msra.mxu0 0
      %2458 = vmatprep.subr.bf16.mxu0 0
      %2459 = vmatpush1.bf16.xpose.msra.mxu0 0
      %2460 = vmatprep.mubr.bf16.mxu0 0
      %2461 = vmatmul.mubr.bf16.gmra.mrb[0].mxu0 %v2417
      %v2462 = vpop.f32.mrb[0].mxu0
      %v2463 = vadd.f32 0.0, %v2462
      %v2464 = vpop.f32.mrb[0].mxu0
      %v2465 = vpop.f32.mrb[0].mxu0
      %v2466 = vadd.f32 0.0, %v2465
      %v2467 = vpop.f32.mrb[0].mxu0
      %2468 = vmatprep.mubr.bf16.mxu0 0
      %2469 = vmatmul.mubr.bf16.gmra.mrb[0].mxu0 %v2420
      %v2470 = vpop.f32.mrb[0].mxu0
      %v2471 = vadd.f32 0.0, %v2470
      %v2472 = vpop.f32.mrb[0].mxu0
      %v2473 = vpop.f32.mrb[0].mxu0
      %v2474 = vpop.f32.mrb[0].mxu0
      %2475 = vdwg.mxu0
      %v2476 = vmul.f32 %v2391, 0.17677669
      %v2477 = vmul.f32 %v2394, 0.17677669
      %v2478 = vmul.f32 %v2399, 0.17677669
      %v2479 = vmul.f32 %v2463, 0.17677669
      %v2480 = vmul.f32 %v2466, 0.17677669
      %v2481 = vmul.f32 %v2471, 0.17677669
      %v2482 = vadd.f32 %v2476, %v1523
      %v2483 = vadd.f32 %v2477, %v1523
      %v2484 = vadd.f32 %v2478, %v1523
      %v2485 = vadd.f32 %v2479, %v1523
      %v2486 = vadd.f32 %v2480, %v1523
      %v2487 = vadd.f32 %v2481, %v1523
      %v2488 = vsel %vm1906, %v2482, -inf
      %2489 = vmax.xlane.f32.xlu0 %v2488
      %v2490 = vpop.xlane.xlu0 %2489
      %v2491 = vsel %vm1906, %v2483, -inf
      %2492 = vmax.xlane.f32.xlu0 %v2491
      %v2493 = vpop.xlane.xlu0 %2492
      %v2494 = vsel %vm1906, %v2484, -inf
      %2495 = vmax.xlane.f32.xlu0 %v2494
      %v2496 = vpop.xlane.xlu0 %2495
      %v2497 = vsel %vm1906, %v2485, -inf
      %2498 = vmax.xlane.f32.xlu0 %v2497
      %v2499 = vpop.xlane.xlu0 %2498
      %v2500 = vsel %vm1906, %v2486, -inf
      %2501 = vmax.xlane.f32.xlu0 %v2500
      %v2502 = vpop.xlane.xlu0 %2501
      %v2503 = vsel %vm1906, %v2487, -inf
      %2504 = vmax.xlane.f32.xlu0 %v2503
      %v2505 = vpop.xlane.xlu0 %2504
      %v2506 = vsub.f32 %v2482, %v2490
      %v2507 = vsub.f32 %v2483, %v2493
      %v2508 = vsub.f32 %v2484, %v2496
      %v2509 = vsub.f32 %v2485, %v2499
      %v2510 = vsub.f32 %v2486, %v2502
      %v2511 = vsub.f32 %v2487, %v2505
      %v2512 = vmul.f32 %v2506, 1.442695
      %v2513 = vpow.pop %v2512
      %v2514 = vmul.f32 %v2507, 1.442695
      %v2515 = vpow.pop %v2514
      %v2516 = vmul.f32 %v2508, 1.442695
      %v2517 = vpow.pop %v2516
      %v2518 = vmul.f32 %v2509, 1.442695
      %v2519 = vpow.pop %v2518
      %v2520 = vmul.f32 %v2510, 1.442695
      %v2521 = vpow.pop %v2520
      %v2522 = vmul.f32 %v2511, 1.442695
      %v2523 = vpow.pop %v2522
      %v2524 = vsel %vm1906, %v2513, 0.0
      %2525 = vadd.xlane.f32.xlu0 %v2524
      %v2526 = vpop.xlane.xlu0 %2525
      %v2527 = vsel %vm1906, %v2515, 0.0
      %2528 = vadd.xlane.f32.xlu0 %v2527
      %v2529 = vpop.xlane.xlu0 %2528
      %v2530 = vsel %vm1906, %v2517, 0.0
      %2531 = vadd.xlane.f32.xlu0 %v2530
      %v2532 = vpop.xlane.xlu0 %2531
      %v2533 = vsel %vm1906, %v2519, 0.0
      %2534 = vadd.xlane.f32.xlu0 %v2533
      %v2535 = vpop.xlane.xlu0 %2534
      %v2536 = vsel %vm1906, %v2521, 0.0
      %2537 = vadd.xlane.f32.xlu0 %v2536
      %v2538 = vpop.xlane.xlu0 %2537
      %v2539 = vsel %vm1906, %v2523, 0.0
      %2540 = vadd.xlane.f32.xlu0 %v2539
      %v2541 = vpop.xlane.xlu0 %2540
      %v2542 = vpack.c.bf16 %v2515, %v2513
      %v2543 = vpack.c.bf16 %v2517, %v2517
      %v2544 = vpack.c.bf16 %v2521, %v2519
      %v2545 = vpack.c.bf16 %v2523, %v2523
      %2548 = vrot.lane.b32.xlu0 %v1965, 96
      %v2549 = vpop.permute.xlu0 %2548
      %2550 = vrot.lane.b32.xlu0 %v1966, 96
      %v2551 = vpop.permute.xlu0 %2550
      %v2554 = vsel %vm1906, %v2542, 0
      %v2557 = vsel %vm1906, %v2543, 0
      %v2560 = vsel %vm1975, %v2551, 0
      %2562 = vmatprep.subr.bf16.mxu0 0
      %2563 = vmatpush1.bf16.msra.mxu0 %v2549
      %2564 = vmatprep.subr.bf16.mxu0 0
      %2565 = vmatpush1.bf16.msra.mxu0 %v2560
      %2566 = vmatprep.subr.bf16.mxu0 0
      %2567 = vmatpush1.bf16.msra.mxu0 0
      %2568 = vmatprep.subr.bf16.mxu0 0
      %2569 = vmatpush1.bf16.msra.mxu0 0
      %2570 = vmatprep.subr.bf16.mxu0 0
      %2571 = vmatpush1.bf16.msra.mxu0 0
      %2572 = vmatprep.subr.bf16.mxu0 0
      %2573 = vmatpush1.bf16.msra.mxu0 0
      %2574 = vmatprep.subr.bf16.mxu0 0
      %2575 = vmatpush1.bf16.msra.mxu0 0
      %2576 = vmatprep.subr.bf16.mxu0 0
      %2577 = vmatpush1.bf16.msra.mxu0 0
      %2578 = vmatprep.subr.bf16.mxu0 0
      %2579 = vmatpush1.bf16.msra.mxu0 0
      %2580 = vmatprep.subr.bf16.mxu0 0
      %2581 = vmatpush1.bf16.msra.mxu0 0
      %2582 = vmatprep.subr.bf16.mxu0 0
      %2583 = vmatpush1.bf16.msra.mxu0 0
      %2584 = vmatprep.subr.bf16.mxu0 0
      %2585 = vmatpush1.bf16.msra.mxu0 0
      %2586 = vmatprep.subr.bf16.mxu0 0
      %2587 = vmatpush1.bf16.msra.mxu0 0
      %2588 = vmatprep.subr.bf16.mxu0 0
      %2589 = vmatpush1.bf16.msra.mxu0 0
      %2590 = vmatprep.subr.bf16.mxu0 0
      %2591 = vmatpush1.bf16.msra.mxu0 0
      %2592 = vmatprep.subr.bf16.mxu0 0
      %2593 = vmatpush1.bf16.msra.mxu0 0
      %2594 = vmatprep.mubr.bf16.mxu0 0
      %2595 = vmatmul.mubr.bf16.gmra.mrb[0].mxu0 %v2554
      %v2596 = vpop.f32.mrb[0].mxu0
      %v2597 = vadd.f32 0.0, %v2596
      %v2598 = vpop.f32.mrb[0].mxu0
      %v2599 = vpop.f32.mrb[0].mxu0
      %v2600 = vadd.f32 0.0, %v2599
      %v2601 = vpop.f32.mrb[0].mxu0
      %2602 = vmatprep.mubr.bf16.mxu0 0
      %2603 = vmatmul.mubr.bf16.gmra.mrb[0].mxu0 %v2557
      %v2604 = vpop.f32.mrb[0].mxu0
      %v2605 = vadd.f32 0.0, %v2604
      %v2606 = vpop.f32.mrb[0].mxu0
      %v2607 = vpop.f32.mrb[0].mxu0
      %v2608 = vpop.f32.mrb[0].mxu0
      %2609 = vdwg.mxu0
      %2612 = vrot.lane.b32.xlu0 %v1967, 96
      %v2613 = vpop.permute.xlu0 %2612
      %2614 = vrot.lane.b32.xlu0 %v1968, 96
      %v2615 = vpop.permute.xlu0 %2614
      %v2618 = vsel %vm1906, %v2544, 0
      %v2621 = vsel %vm1906, %v2545, 0
      %v2624 = vsel %vm1975, %v2615, 0
      %2626 = vmatprep.subr.bf16.mxu0 0
      %2627 = vmatpush1.bf16.msra.mxu0 %v2613
      %2628 = vmatprep.subr.bf16.mxu0 0
      %2629 = vmatpush1.bf16.msra.mxu0 %v2624
      %2630 = vmatprep.subr.bf16.mxu0 0
      %2631 = vmatpush1.bf16.msra.mxu0 0
      %2632 = vmatprep.subr.bf16.mxu0 0
      %2633 = vmatpush1.bf16.msra.mxu0 0
      %2634 = vmatprep.subr.bf16.mxu0 0
      %2635 = vmatpush1.bf16.msra.mxu0 0
      %2636 = vmatprep.subr.bf16.mxu0 0
      %2637 = vmatpush1.bf16.msra.mxu0 0
      %2638 = vmatprep.subr.bf16.mxu0 0
      %2639 = vmatpush1.bf16.msra.mxu0 0
      %2640 = vmatprep.subr.bf16.mxu0 0
      %2641 = vmatpush1.bf16.msra.mxu0 0
      %2642 = vmatprep.subr.bf16.mxu0 0
      %2643 = vmatpush1.bf16.msra.mxu0 0
      %2644 = vmatprep.subr.bf16.mxu0 0
      %2645 = vmatpush1.bf16.msra.mxu0 0
      %2646 = vmatprep.subr.bf16.mxu0 0
      %2647 = vmatpush1.bf16.msra.mxu0 0
      %2648 = vmatprep.subr.bf16.mxu0 0
      %2649 = vmatpush1.bf16.msra.mxu0 0
      %2650 = vmatprep.subr.bf16.mxu0 0
      %2651 = vmatpush1.bf16.msra.mxu0 0
      %2652 = vmatprep.subr.bf16.mxu0 0
      %2653 = vmatpush1.bf16.msra.mxu0 0
      %2654 = vmatprep.subr.bf16.mxu0 0
      %2655 = vmatpush1.bf16.msra.mxu0 0
      %2656 = vmatprep.subr.bf16.mxu0 0
      %2657 = vmatpush1.bf16.msra.mxu0 0
      %2658 = vmatprep.mubr.bf16.mxu0 0
      %2659 = vmatmul.mubr.bf16.gmra.mrb[0].mxu0 %v2618
      %v2660 = vpop.f32.mrb[0].mxu0
      %v2661 = vadd.f32 0.0, %v2660
      %v2662 = vpop.f32.mrb[0].mxu0
      %v2663 = vpop.f32.mrb[0].mxu0
      %v2664 = vadd.f32 0.0, %v2663
      %v2665 = vpop.f32.mrb[0].mxu0
      %2666 = vmatprep.mubr.bf16.mxu0 0
      %2667 = vmatmul.mubr.bf16.gmra.mrb[0].mxu0 %v2621
      %v2668 = vpop.f32.mrb[0].mxu0
      %v2669 = vadd.f32 0.0, %v2668
      %v2670 = vpop.f32.mrb[0].mxu0
      %v2671 = vpop.f32.mrb[0].mxu0
      %v2672 = vpop.f32.mrb[0].mxu0
      %2673 = vdwg.mxu0
      %v2674 = vrcp.pop %v2526
      %v2675 = vrcp.pop %v2529
      %v2676 = vrcp.pop %v2532
      %v2677 = vrcp.pop %v2535
      %v2678 = vrcp.pop %v2538
      %v2679 = vrcp.pop %v2541
      %v2680 = vmul.f32 %v2597, %v2674
      %v2681 = vmul.f32 %v2600, %v2675
      %v2682 = vmul.f32 %v2605, %v2676
      %v2683 = vmul.f32 %v2661, %v2677
      %v2684 = vmul.f32 %v2664, %v2678
      %v2685 = vmul.f32 %v2669, %v2679
      %2692 = vrot.lane.b32.xlu0 %v2680, 32
      %v2693 = vpop.permute.xlu0 %2692
      %2694 = vrot.lane.b32.xlu0 %v2681, 32
      %v2695 = vpop.permute.xlu0 %2694
      %2696 = vrot.lane.b32.xlu0 %v2682, 32
      %v2697 = vpop.permute.xlu0 %2696
      %2698 = vrot.lane.b32.xlu0 %v2683, 32
      %v2699 = vpop.permute.xlu0 %2698
      %2700 = vrot.lane.b32.xlu0 %v2684, 32
      %v2701 = vpop.permute.xlu0 %2700
      %2702 = vrot.lane.b32.xlu0 %v2685, 32
      %v2703 = vpop.permute.xlu0 %2702
      %v2710 = vsel %vm1767, %v2090, %v2693
      %v2711 = vsel %vm1767, %v2091, %v2695
      %v2712 = vsel %vm1767, %v2092, %v2697
      %v2713 = vsel %vm1767, %v2093, %v2699
      %v2714 = vsel %vm1767, %v2094, %v2701
      %v2715 = vsel %vm1767, %v2095, %v2703
      %v2716 = vpack.c.bf16 %v2711, %v2710
      %v2717 = vpack.c.bf16 %v2713, %v2712
      %v2718 = vpack.c.bf16 %v2715, %v2714
      %v2719 = vld [vmem:[%s686] sm:$0xf]
      %v2720 = vld [vmem:[%s686 + $0x4] sm:$0xf]
      %v2721 = vld [vmem:[%s686 + $0x8] sm:$0xf]
      %v2722 = vld [vmem:[%s686 + $0xc] sm:$0xf]
      %v2723 = vld [vmem:[%s686 + $0x10] sm:$0xf]
      %v2724 = vld [vmem:[%s686 + $0x14] sm:$0xf]
      %v2725 = vld [vmem:[%s686 + $0x18] sm:$0xf]
      %v2726 = vld [vmem:[%s686 + $0x1c] sm:$0xf]
      %v2735 = vunpack.c.l.b16 %v2719
      %v2736 = vunpack.c.l.b16 %v2720
      %v2737 = vunpack.c.l.b16 %v2721
      %v2738 = vunpack.c.l.b16 %v2722
      %v2739 = vunpack.c.l.b16 %v2723
      %v2740 = vunpack.c.l.b16 %v2724
      %v2741 = vunpack.c.l.b16 %v2725
      %v2742 = vunpack.c.l.b16 %v2726
      %v2743 = vpack.c.b16 %v2736, %v2735
      %v2744 = vpack.c.b16 %v2738, %v2737
      %v2745 = vpack.c.b16 %v2740, %v2739
      %v2746 = vpack.c.b16 %v2742, %v2741
      %v2752 = vsel %vm1293, %v2716, 0
      %v2755 = vsel %vm1293, %v2717, 0
      %v2758 = vsel %vm1293, %v2718, 0
      %2760 = vmatprep.subr.bf16.mxu0 0
      %2761 = vmatpush1.bf16.msra.mxu0 %v2743
      %2762 = vmatprep.subr.bf16.mxu0 0
      %2763 = vmatpush1.bf16.msra.mxu0 %v2744
      %2764 = vmatprep.subr.bf16.mxu0 0
      %2765 = vmatpush1.bf16.msra.mxu0 %v2745
      %2766 = vmatprep.subr.bf16.mxu0 0
      %2767 = vmatpush1.bf16.msra.mxu0 %v2746
      %2768 = vmatprep.subr.bf16.mxu0 0
      %2769 = vmatpush1.bf16.msra.mxu0 0
      %2770 = vmatprep.subr.bf16.mxu0 0
      %2771 = vmatpush1.bf16.msra.mxu0 0
      %2772 = vmatprep.subr.bf16.mxu0 0
      %2773 = vmatpush1.bf16.msra.mxu0 0
      %2774 = vmatprep.subr.bf16.mxu0 0
      %2775 = vmatpush1.bf16.msra.mxu0 0
      %2776 = vmatprep.subr.bf16.mxu0 0
      %2777 = vmatpush1.bf16.msra.mxu0 0
      %2778 = vmatprep.subr.bf16.mxu0 0
      %2779 = vmatpush1.bf16.msra.mxu0 0
      %2780 = vmatprep.subr.bf16.mxu0 0
      %2781 = vmatpush1.bf16.msra.mxu0 0
      %2782 = vmatprep.subr.bf16.mxu0 0
      %2783 = vmatpush1.bf16.msra.mxu0 0
      %2784 = vmatprep.subr.bf16.mxu0 0
      %2785 = vmatpush1.bf16.msra.mxu0 0
      %2786 = vmatprep.subr.bf16.mxu0 0
      %2787 = vmatpush1.bf16.msra.mxu0 0
      %2788 = vmatprep.subr.bf16.mxu0 0
      %2789 = vmatpush1.bf16.msra.mxu0 0
      %2790 = vmatprep.subr.bf16.mxu0 0
      %2791 = vmatpush1.bf16.msra.mxu0 0
      %2792 = vmatprep.mubr.bf16.mxu0 0
      %2793 = vmatmul.mubr.bf16.gmra.mrb[0].mxu0 %v2752
      %v2794 = vpop.f32.mrb[0].mxu0
      %v2795 = vadd.f32 0.0, %v2794
      %v2796 = vpop.f32.mrb[0].mxu0
      %v2797 = vpop.f32.mrb[0].mxu0
      %v2798 = vadd.f32 0.0, %v2797
      %v2799 = vpop.f32.mrb[0].mxu0
      %2800 = vmatprep.mubr.bf16.mxu0 0
      %2801 = vmatmul.mubr.bf16.gmra.mrb[0].mxu0 %v2755
      %v2802 = vpop.f32.mrb[0].mxu0
      %v2803 = vadd.f32 0.0, %v2802
      %v2804 = vpop.f32.mrb[0].mxu0
      %v2805 = vpop.f32.mrb[0].mxu0
      %v2806 = vadd.f32 0.0, %v2805
      %v2807 = vpop.f32.mrb[0].mxu0
      %2808 = vmatprep.mubr.bf16.mxu0 0
      %2809 = vmatmul.mubr.bf16.gmra.mrb[0].mxu0 %v2758
      %v2810 = vpop.f32.mrb[0].mxu0
      %v2811 = vadd.f32 0.0, %v2810
      %v2812 = vpop.f32.mrb[0].mxu0
      %v2813 = vpop.f32.mrb[0].mxu0
      %v2814 = vadd.f32 0.0, %v2813
      %v2815 = vpop.f32.mrb[0].mxu0
      %2816 = vdwg.mxu0
      %v2817 = vadd.f32 %v1286, %v2795
      %v2818 = vadd.f32 %v1287, %v2798
      %v2819 = vadd.f32 %v1288, %v2803
      %v2820 = vadd.f32 %v1289, %v2806
      %v2821 = vadd.f32 %v1290, %v2811
      %v2822 = vadd.f32 %v1291, %v2814
      %v2823 = vld [vmem:[%s689] sm:$0x1]
      %v2824 = vsel %vm1293, %v2817, 0.0
      %2825 = vadd.xlane.f32.xlu0 %v2824
      %v2826 = vpop.xlane.xlu0 %2825
      %v2827 = vsel %vm1293, %v2818, 0.0
      %2828 = vadd.xlane.f32.xlu0 %v2827
      %v2829 = vpop.xlane.xlu0 %2828
      %v2830 = vsel %vm1293, %v2819, 0.0
      %2831 = vadd.xlane.f32.xlu0 %v2830
      %v2832 = vpop.xlane.xlu0 %2831
      %v2833 = vsel %vm1293, %v2820, 0.0
      %2834 = vadd.xlane.f32.xlu0 %v2833
      %v2835 = vpop.xlane.xlu0 %2834
      %v2836 = vsel %vm1293, %v2821, 0.0
      %2837 = vadd.xlane.f32.xlu0 %v2836
      %v2838 = vpop.xlane.xlu0 %2837
      %v2839 = vsel %vm1293, %v2822, 0.0
      %2840 = vadd.xlane.f32.xlu0 %v2839
      %v2841 = vpop.xlane.xlu0 %2840
      %v2842 = vmul.f32 %v2826, %v1312
      %v2843 = vmul.f32 %v2829, %v1312
      %v2844 = vmul.f32 %v2832, %v1312
      %v2845 = vmul.f32 %v2835, %v1312
      %v2846 = vmul.f32 %v2838, %v1312
      %v2847 = vmul.f32 %v2841, %v1312
      %v2848 = vsub.f32 %v2817, %v2842
      %v2849 = vsub.f32 %v2818, %v2843
      %v2850 = vsub.f32 %v2819, %v2844
      %v2851 = vsub.f32 %v2820, %v2845
      %v2852 = vsub.f32 %v2821, %v2846
      %v2853 = vsub.f32 %v2822, %v2847
      %v2854 = vmul.f32 %v2848, %v2848
      %v2855 = vmul.f32 %v2849, %v2849
      %v2856 = vmul.f32 %v2850, %v2850
      %v2857 = vmul.f32 %v2851, %v2851
      %v2858 = vmul.f32 %v2852, %v2852
      %v2859 = vmul.f32 %v2853, %v2853
      %v2860 = vsel %vm1293, %v2854, 0.0
      %2861 = vadd.xlane.f32.xlu0 %v2860
      %v2862 = vpop.xlane.xlu0 %2861
      %v2863 = vsel %vm1293, %v2855, 0.0
      %2864 = vadd.xlane.f32.xlu0 %v2863
      %v2865 = vpop.xlane.xlu0 %2864
      %v2866 = vsel %vm1293, %v2856, 0.0
      %2867 = vadd.xlane.f32.xlu0 %v2866
      %v2868 = vpop.xlane.xlu0 %2867
      %v2869 = vsel %vm1293, %v2857, 0.0
      %2870 = vadd.xlane.f32.xlu0 %v2869
      %v2871 = vpop.xlane.xlu0 %2870
      %v2872 = vsel %vm1293, %v2858, 0.0
      %2873 = vadd.xlane.f32.xlu0 %v2872
      %v2874 = vpop.xlane.xlu0 %2873
      %v2875 = vsel %vm1293, %v2859, 0.0
      %2876 = vadd.xlane.f32.xlu0 %v2875
      %v2877 = vpop.xlane.xlu0 %2876
      %v2878 = vmul.f32 %v2862, %v1312
      %v2879 = vmul.f32 %v2865, %v1312
      %v2880 = vmul.f32 %v2868, %v1312
      %v2881 = vmul.f32 %v2871, %v1312
      %v2882 = vmul.f32 %v2874, %v1312
      %v2883 = vmul.f32 %v2877, %v1312
      %v2884 = vadd.f32 %v2878, 1e-05
      %v2885 = vadd.f32 %v2879, 1e-05
      %v2886 = vadd.f32 %v2880, 1e-05
      %v2887 = vadd.f32 %v2881, 1e-05
      %v2888 = vadd.f32 %v2882, 1e-05
      %v2889 = vadd.f32 %v2883, 1e-05
      %v2890 = vrsqrt.pop %v2884
      %v2891 = vrsqrt.pop %v2885
      %v2892 = vrsqrt.pop %v2886
      %v2893 = vrsqrt.pop %v2887
      %v2894 = vrsqrt.pop %v2888
      %v2895 = vrsqrt.pop %v2889
      %v2896 = vmul.f32 %v2848, %v2890
      %v2897 = vmul.f32 %v2849, %v2891
      %v2898 = vmul.f32 %v2850, %v2892
      %v2899 = vmul.f32 %v2851, %v2893
      %v2900 = vmul.f32 %v2852, %v2894
      %v2901 = vmul.f32 %v2853, %v2895
      %v2903 = vlaneseq
      %v2904 = vshrl.u32 %v2903, 7
      %v2905 = vsub.s32 0, %v2904
      %v2906 = vrot.slane %v2823, %v2905
      %v2908 = vmul.f32 %v2896, %v2906
      %v2909 = vmul.f32 %v2897, %v2906
      %v2910 = vmul.f32 %v2898, %v2906
      %v2911 = vmul.f32 %v2899, %v2906
      %v2912 = vmul.f32 %v2900, %v2906
      %v2913 = vmul.f32 %v2901, %v2906
      %v2914 = vpack.c.bf16 %v2909, %v2908
      %v2915 = vpack.c.bf16 %v2911, %v2910
      %v2916 = vpack.c.bf16 %v2913, %v2912
      %v2917 = vld [vmem:[%s694] sm:$0xff]
      %v2918 = vld [vmem:[%s694 + $0x8] sm:$0xff]
      %v2919 = vld [vmem:[%s694 + $0x10] sm:$0xff]
      %v2920 = vld [vmem:[%s694 + $0x18] sm:$0xff]
      %v2921 = vld [vmem:[%s694 + $0x20] sm:$0xff]
      %v2922 = vld [vmem:[%s694 + $0x28] sm:$0xff]
      %v2923 = vld [vmem:[%s694 + $0x30] sm:$0xff]
      %v2924 = vld [vmem:[%s694 + $0x38] sm:$0xff]
      %v2925 = vld [vmem:[%s694 + $0x40] sm:$0xff]
      %v2926 = vld [vmem:[%s694 + $0x48] sm:$0xff]
      %v2927 = vld [vmem:[%s694 + $0x50] sm:$0xff]
      %v2928 = vld [vmem:[%s694 + $0x58] sm:$0xff]
      %v2929 = vld [vmem:[%s694 + $0x60] sm:$0xff]
      %v2930 = vld [vmem:[%s694 + $0x68] sm:$0xff]
      %v2931 = vld [vmem:[%s694 + $0x70] sm:$0xff]
      %v2932 = vld [vmem:[%s694 + $0x78] sm:$0xff]
      %v2933 = vld [vmem:[%s698] sm:$0xf]
      %v2935 = vlaneseq
      %v2936 = vshrl.u32 %v2935, 7
      %v2937 = vsub.s32 0, %v2936
      %v2938 = vrot.slane %v2933, %v2937
      %v2939 = vlaneseq
      %v2940 = vshrl.u32 %v2939, 7
      %v2941 = vsub.s32 1, %v2940
      %v2942 = vrot.slane %v2933, %v2941
      %v2943 = vlaneseq
      %v2944 = vshrl.u32 %v2943, 7
      %v2945 = vsub.s32 2, %v2944
      %v2946 = vrot.slane %v2933, %v2945
      %v2947 = vlaneseq
      %v2948 = vshrl.u32 %v2947, 7
      %v2949 = vsub.s32 3, %v2948
      %v2950 = vrot.slane %v2933, %v2949
      %v2971 = vunpack.c.l.b16 %v2917
      %v2972 = vunpack.c.h.b16 %v2917
      %v2973 = vunpack.c.l.b16 %v2918
      %v2974 = vunpack.c.h.b16 %v2918
      %v2975 = vunpack.c.l.b16 %v2919
      %v2976 = vunpack.c.h.b16 %v2919
      %v2977 = vunpack.c.l.b16 %v2920
      %v2978 = vunpack.c.h.b16 %v2920
      %v2979 = vunpack.c.l.b16 %v2921
      %v2980 = vunpack.c.h.b16 %v2921
      %v2981 = vunpack.c.l.b16 %v2922
      %v2982 = vunpack.c.h.b16 %v2922
      %v2983 = vunpack.c.l.b16 %v2923
      %v2984 = vunpack.c.h.b16 %v2923
      %v2985 = vunpack.c.l.b16 %v2924
      %v2986 = vunpack.c.h.b16 %v2924
      %v2987 = vunpack.c.l.b16 %v2925
      %v2988 = vunpack.c.h.b16 %v2925
      %v2989 = vunpack.c.l.b16 %v2926
      %v2990 = vunpack.c.h.b16 %v2926
      %v2991 = vunpack.c.l.b16 %v2927
      %v2992 = vunpack.c.h.b16 %v2927
      %v2993 = vunpack.c.l.b16 %v2928
      %v2994 = vunpack.c.h.b16 %v2928
      %v2995 = vunpack.c.l.b16 %v2929
      %v2996 = vunpack.c.h.b16 %v2929
      %v2997 = vunpack.c.l.b16 %v2930
      %v2998 = vunpack.c.h.b16 %v2930
      %v2999 = vunpack.c.l.b16 %v2931
      %v3000 = vunpack.c.h.b16 %v2931
      %v3001 = vunpack.c.l.b16 %v2932
      %v3002 = vunpack.c.h.b16 %v2932
      %v3003 = vpack.c.b16 %v2975, %v2971
      %v3004 = vpack.c.b16 %v2976, %v2972
      %v3005 = vpack.c.b16 %v2977, %v2973
      %v3006 = vpack.c.b16 %v2978, %v2974
      %v3007 = vpack.c.b16 %v2983, %v2979
      %v3008 = vpack.c.b16 %v2984, %v2980
      %v3009 = vpack.c.b16 %v2985, %v2981
      %v3010 = vpack.c.b16 %v2986, %v2982
      %v3011 = vpack.c.b16 %v2991, %v2987
      %v3012 = vpack.c.b16 %v2992, %v2988
      %v3013 = vpack.c.b16 %v2993, %v2989
      %v3014 = vpack.c.b16 %v2994, %v2990
      %v3015 = vpack.c.b16 %v2999, %v2995
      %v3016 = vpack.c.b16 %v3000, %v2996
      %v3017 = vpack.c.b16 %v3001, %v2997
      %v3018 = vpack.c.b16 %v3002, %v2998
      %v3036 = vsel %vm1293, %v2914, 0
      %v3039 = vsel %vm1293, %v2915, 0
      %v3042 = vsel %vm1293, %v2916, 0
      %3044 = vmatprep.subr.bf16.mxu0 %v3004
      %3045 = vmatpush1.bf16.msra.mxu0 %v3003
      %3046 = vmatprep.subr.bf16.mxu0 %v3008
      %3047 = vmatpush1.bf16.msra.mxu0 %v3007
      %3048 = vmatprep.subr.bf16.mxu0 %v3012
      %3049 = vmatpush1.bf16.msra.mxu0 %v3011
      %3050 = vmatprep.subr.bf16.mxu0 %v3016
      %3051 = vmatpush1.bf16.msra.mxu0 %v3015
      %3052 = vmatprep.subr.bf16.mxu0 0
      %3053 = vmatpush1.bf16.msra.mxu0 0
      %3054 = vmatprep.subr.bf16.mxu0 0
      %3055 = vmatpush1.bf16.msra.mxu0 0
      %3056 = vmatprep.subr.bf16.mxu0 0
      %3057 = vmatpush1.bf16.msra.mxu0 0
      %3058 = vmatprep.subr.bf16.mxu0 0
      %3059 = vmatpush1.bf16.msra.mxu0 0
      %3060 = vmatprep.subr.bf16.mxu0 0
      %3061 = vmatpush1.bf16.msra.mxu0 0
      %3062 = vmatprep.subr.bf16.mxu0 0
      %3063 = vmatpush1.bf16.msra.mxu0 0
      %3064 = vmatprep.subr.bf16.mxu0 0
      %3065 = vmatpush1.bf16.msra.mxu0 0
      %3066 = vmatprep.subr.bf16.mxu0 0
      %3067 = vmatpush1.bf16.msra.mxu0 0
      %3068 = vmatprep.subr.bf16.mxu0 0
      %3069 = vmatpush1.bf16.msra.mxu0 0
      %3070 = vmatprep.subr.bf16.mxu0 0
      %3071 = vmatpush1.bf16.msra.mxu0 0
      %3072 = vmatprep.subr.bf16.mxu0 0
      %3073 = vmatpush1.bf16.msra.mxu0 0
      %3074 = vmatprep.subr.bf16.mxu0 0
      %3075 = vmatpush1.bf16.msra.mxu0 0
      %3076 = vmatprep.mubr.bf16.mxu0 0
      %3077 = vmatmul.mubr.bf16.gmra.mrb[0].mxu0 %v3036
      %v3078 = vpop.f32.mrb[0].mxu0
      %v3079 = vadd.f32 %v2938, %v3078
      %v3080 = vpop.f32.mrb[0].mxu0
      %v3081 = vadd.f32 %v2942, %v3080
      %v3082 = vpop.f32.mrb[0].mxu0
      %v3083 = vadd.f32 %v2938, %v3082
      %v3084 = vpop.f32.mrb[0].mxu0
      %v3085 = vadd.f32 %v2942, %v3084
      %3086 = vmatprep.mubr.bf16.mxu0 0
      %3087 = vmatmul.mubr.bf16.gmra.mrb[0].mxu0 %v3039
      %v3088 = vpop.f32.mrb[0].mxu0
      %v3089 = vadd.f32 %v2938, %v3088
      %v3090 = vpop.f32.mrb[0].mxu0
      %v3091 = vadd.f32 %v2942, %v3090
      %v3092 = vpop.f32.mrb[0].mxu0
      %v3093 = vadd.f32 %v2938, %v3092
      %v3094 = vpop.f32.mrb[0].mxu0
      %v3095 = vadd.f32 %v2942, %v3094
      %3096 = vmatprep.mubr.bf16.mxu0 0
      %3097 = vmatmul.mubr.bf16.gmra.mrb[0].mxu0 %v3042
      %v3098 = vpop.f32.mrb[0].mxu0
      %v3099 = vadd.f32 %v2938, %v3098
      %v3100 = vpop.f32.mrb[0].mxu0
      %v3101 = vadd.f32 %v2942, %v3100
      %v3102 = vpop.f32.mrb[0].mxu0
      %v3103 = vadd.f32 %v2938, %v3102
      %v3104 = vpop.f32.mrb[0].mxu0
      %v3105 = vadd.f32 %v2942, %v3104
      %3106 = vdwg.mxu0
      %3107 = vmatprep.subr.bf16.mxu0 %v3006
      %3108 = vmatpush1.bf16.msra.mxu0 %v3005
      %3109 = vmatprep.subr.bf16.mxu0 %v3010
      %3110 = vmatpush1.bf16.msra.mxu0 %v3009
      %3111 = vmatprep.subr.bf16.mxu0 %v3014
      %3112 = vmatpush1.bf16.msra.mxu0 %v3013
      %3113 = vmatprep.subr.bf16.mxu0 %v3018
      %3114 = vmatpush1.bf16.msra.mxu0 %v3017
      %3115 = vmatprep.subr.bf16.mxu0 0
      %3116 = vmatpush1.bf16.msra.mxu0 0
      %3117 = vmatprep.subr.bf16.mxu0 0
      %3118 = vmatpush1.bf16.msra.mxu0 0
      %3119 = vmatprep.subr.bf16.mxu0 0
      %3120 = vmatpush1.bf16.msra.mxu0 0
      %3121 = vmatprep.subr.bf16.mxu0 0
      %3122 = vmatpush1.bf16.msra.mxu0 0
      %3123 = vmatprep.subr.bf16.mxu0 0
      %3124 = vmatpush1.bf16.msra.mxu0 0
      %3125 = vmatprep.subr.bf16.mxu0 0
      %3126 = vmatpush1.bf16.msra.mxu0 0
      %3127 = vmatprep.subr.bf16.mxu0 0
      %3128 = vmatpush1.bf16.msra.mxu0 0
      %3129 = vmatprep.subr.bf16.mxu0 0
      %3130 = vmatpush1.bf16.msra.mxu0 0
      %3131 = vmatprep.subr.bf16.mxu0 0
      %3132 = vmatpush1.bf16.msra.mxu0 0
      %3133 = vmatprep.subr.bf16.mxu0 0
      %3134 = vmatpush1.bf16.msra.mxu0 0
      %3135 = vmatprep.subr.bf16.mxu0 0
      %3136 = vmatpush1.bf16.msra.mxu0 0
      %3137 = vmatprep.subr.bf16.mxu0 0
      %3138 = vmatpush1.bf16.msra.mxu0 0
      %3139 = vmatprep.mubr.bf16.mxu0 0
      %3140 = vmatmul.mubr.bf16.gmra.mrb[0].mxu0 %v3036
      %v3141 = vpop.f32.mrb[0].mxu0
      %v3142 = vadd.f32 %v2946, %v3141
      %v3143 = vpop.f32.mrb[0].mxu0
      %v3144 = vadd.f32 %v2950, %v3143
      %v3145 = vpop.f32.mrb[0].mxu0
      %v3146 = vadd.f32 %v2946, %v3145
      %v3147 = vpop.f32.mrb[0].mxu0
      %v3148 = vadd.f32 %v2950, %v3147
      %3149 = vmatprep.mubr.bf16.mxu0 0
      %3150 = vmatmul.mubr.bf16.gmra.mrb[0].mxu0 %v3039
      %v3151 = vpop.f32.mrb[0].mxu0
      %v3152 = vadd.f32 %v2946, %v3151
      %v3153 = vpop.f32.mrb[0].mxu0
      %v3154 = vadd.f32 %v2950, %v3153
      %v3155 = vpop.f32.mrb[0].mxu0
      %v3156 = vadd.f32 %v2946, %v3155
      %v3157 = vpop.f32.mrb[0].mxu0
      %v3158 = vadd.f32 %v2950, %v3157
      %3159 = vmatprep.mubr.bf16.mxu0 0
      %3160 = vmatmul.mubr.bf16.gmra.mrb[0].mxu0 %v3042
      %v3161 = vpop.f32.mrb[0].mxu0
      %v3162 = vadd.f32 %v2946, %v3161
      %v3163 = vpop.f32.mrb[0].mxu0
      %v3164 = vadd.f32 %v2950, %v3163
      %v3165 = vpop.f32.mrb[0].mxu0
      %v3166 = vadd.f32 %v2946, %v3165
      %v3167 = vpop.f32.mrb[0].mxu0
      %v3168 = vadd.f32 %v2950, %v3167
      %3169 = vdwg.mxu0
      %v3170 = vxor.u32 %v3142, 2147483648
      %v3171 = vxor.u32 %v3144, 2147483648
      %v3172 = vxor.u32 %v3146, 2147483648
      %v3173 = vxor.u32 %v3148, 2147483648
      %v3174 = vxor.u32 %v3152, 2147483648
      %v3175 = vxor.u32 %v3154, 2147483648
      %v3176 = vxor.u32 %v3156, 2147483648
      %v3177 = vxor.u32 %v3158, 2147483648
      %v3178 = vxor.u32 %v3162, 2147483648
      %v3179 = vxor.u32 %v3164, 2147483648
      %v3180 = vxor.u32 %v3166, 2147483648
      %v3181 = vxor.u32 %v3168, 2147483648
      %v3182 = vmul.f32 %v3170, 1.442695
      %v3183 = vpow.pop %v3182
      %v3184 = vmul.f32 %v3171, 1.442695
      %v3185 = vpow.pop %v3184
      %v3186 = vmul.f32 %v3172, 1.442695
      %v3187 = vpow.pop %v3186
      %v3188 = vmul.f32 %v3173, 1.442695
      %v3189 = vpow.pop %v3188
      %v3190 = vmul.f32 %v3174, 1.442695
      %v3191 = vpow.pop %v3190
      %v3192 = vmul.f32 %v3175, 1.442695
      %v3193 = vpow.pop %v3192
      %v3194 = vmul.f32 %v3176, 1.442695
      %v3195 = vpow.pop %v3194
      %v3196 = vmul.f32 %v3177, 1.442695
      %v3197 = vpow.pop %v3196
      %v3198 = vmul.f32 %v3178, 1.442695
      %v3199 = vpow.pop %v3198
      %v3200 = vmul.f32 %v3179, 1.442695
      %v3201 = vpow.pop %v3200
      %v3202 = vmul.f32 %v3180, 1.442695
      %v3203 = vpow.pop %v3202
      %v3204 = vmul.f32 %v3181, 1.442695
      %v3205 = vpow.pop %v3204
      %v3206 = vadd.f32 %v3183, 1.0
      %v3207 = vadd.f32 %v3185, 1.0
      %v3208 = vadd.f32 %v3187, 1.0
      %v3209 = vadd.f32 %v3189, 1.0
      %v3210 = vadd.f32 %v3191, 1.0
      %v3211 = vadd.f32 %v3193, 1.0
      %v3212 = vadd.f32 %v3195, 1.0
      %v3213 = vadd.f32 %v3197, 1.0
      %v3214 = vadd.f32 %v3199, 1.0
      %v3215 = vadd.f32 %v3201, 1.0
      %v3216 = vadd.f32 %v3203, 1.0
      %v3217 = vadd.f32 %v3205, 1.0
      %v3218 = vrcp.pop %v3206
      %v3219 = vmul.f32 1.0, %v3218
      %v3220 = vrcp.pop %v3207
      %v3221 = vmul.f32 1.0, %v3220
      %v3222 = vrcp.pop %v3208
      %v3223 = vmul.f32 1.0, %v3222
      %v3224 = vrcp.pop %v3209
      %v3225 = vmul.f32 1.0, %v3224
      %v3226 = vrcp.pop %v3210
      %v3227 = vmul.f32 1.0, %v3226
      %v3228 = vrcp.pop %v3211
      %v3229 = vmul.f32 1.0, %v3228
      %v3230 = vrcp.pop %v3212
      %v3231 = vmul.f32 1.0, %v3230
      %v3232 = vrcp.pop %v3213
      %v3233 = vmul.f32 1.0, %v3232
      %v3234 = vrcp.pop %v3214
      %v3235 = vmul.f32 1.0, %v3234
      %v3236 = vrcp.pop %v3215
      %v3237 = vmul.f32 1.0, %v3236
      %v3238 = vrcp.pop %v3216
      %v3239 = vmul.f32 1.0, %v3238
      %v3240 = vrcp.pop %v3217
      %v3241 = vmul.f32 1.0, %v3240
      %v3242 = vmul.f32 %v3142, %v3219
      %v3243 = vmul.f32 %v3144, %v3221
      %v3244 = vmul.f32 %v3146, %v3223
      %v3245 = vmul.f32 %v3148, %v3225
      %v3246 = vmul.f32 %v3152, %v3227
      %v3247 = vmul.f32 %v3154, %v3229
      %v3248 = vmul.f32 %v3156, %v3231
      %v3249 = vmul.f32 %v3158, %v3233
      %v3250 = vmul.f32 %v3162, %v3235
      %v3251 = vmul.f32 %v3164, %v3237
      %v3252 = vmul.f32 %v3166, %v3239
      %v3253 = vmul.f32 %v3168, %v3241
      %v3254 = vmul.f32 %v3079, %v3242
      %v3255 = vmul.f32 %v3081, %v3243
      %v3256 = vmul.f32 %v3083, %v3244
      %v3257 = vmul.f32 %v3085, %v3245
      %v3258 = vmul.f32 %v3089, %v3246
      %v3259 = vmul.f32 %v3091, %v3247
      %v3260 = vmul.f32 %v3093, %v3248
      %v3261 = vmul.f32 %v3095, %v3249
      %v3262 = vmul.f32 %v3099, %v3250
      %v3263 = vmul.f32 %v3101, %v3251
      %v3264 = vmul.f32 %v3103, %v3252
      %v3265 = vmul.f32 %v3105, %v3253
      %v3266 = vpack.c.bf16 %v3256, %v3254
      %v3267 = vpack.c.bf16 %v3257, %v3255
      %v3268 = vpack.c.bf16 %v3260, %v3258
      %v3269 = vpack.c.bf16 %v3261, %v3259
      %v3270 = vpack.c.bf16 %v3264, %v3262
      %v3271 = vpack.c.bf16 %v3265, %v3263
      %v3272 = vld [vmem:[%s703] sm:$0xf]
      %v3273 = vld [vmem:[%s703 + $0x4] sm:$0xf]
      %v3274 = vld [vmem:[%s703 + $0x8] sm:$0xf]
      %v3275 = vld [vmem:[%s703 + $0xc] sm:$0xf]
      %v3276 = vld [vmem:[%s703 + $0x10] sm:$0xf]
      %v3277 = vld [vmem:[%s703 + $0x14] sm:$0xf]
      %v3278 = vld [vmem:[%s703 + $0x18] sm:$0xf]
      %v3279 = vld [vmem:[%s703 + $0x1c] sm:$0xf]
      %v3280 = vld [vmem:[%s703 + $0x20] sm:$0xf]
      %v3281 = vld [vmem:[%s703 + $0x24] sm:$0xf]
      %v3282 = vld [vmem:[%s703 + $0x28] sm:$0xf]
      %v3283 = vld [vmem:[%s703 + $0x2c] sm:$0xf]
      %v3284 = vld [vmem:[%s703 + $0x30] sm:$0xf]
      %v3285 = vld [vmem:[%s703 + $0x34] sm:$0xf]
      %v3286 = vld [vmem:[%s703 + $0x38] sm:$0xf]
      %v3287 = vld [vmem:[%s703 + $0x3c] sm:$0xf]
      %v3288 = vld [vmem:[%s703 + $0x40] sm:$0xf]
      %v3289 = vld [vmem:[%s703 + $0x44] sm:$0xf]
      %v3290 = vld [vmem:[%s703 + $0x48] sm:$0xf]
      %v3291 = vld [vmem:[%s703 + $0x4c] sm:$0xf]
      %v3292 = vld [vmem:[%s703 + $0x50] sm:$0xf]
      %v3293 = vld [vmem:[%s703 + $0x54] sm:$0xf]
      %v3294 = vld [vmem:[%s703 + $0x58] sm:$0xf]
      %v3295 = vld [vmem:[%s703 + $0x5c] sm:$0xf]
      %v3296 = vld [vmem:[%s703 + $0x60] sm:$0xf]
      %v3297 = vld [vmem:[%s703 + $0x64] sm:$0xf]
      %v3298 = vld [vmem:[%s703 + $0x68] sm:$0xf]
      %v3299 = vld [vmem:[%s703 + $0x6c] sm:$0xf]
      %v3300 = vld [vmem:[%s703 + $0x70] sm:$0xf]
      %v3301 = vld [vmem:[%s703 + $0x74] sm:$0xf]
      %v3302 = vld [vmem:[%s703 + $0x78] sm:$0xf]
      %v3303 = vld [vmem:[%s703 + $0x7c] sm:$0xf]
      %v3304 = vld [vmem:[%s706] sm:$0x1]
      %v3306 = vlaneseq
      %v3307 = vshrl.u32 %v3306, 7
      %v3308 = vsub.s32 0, %v3307
      %v3309 = vrot.slane %v3304, %v3308
      %v3343 = vunpack.c.l.b16 %v3272
      %v3344 = vunpack.c.l.b16 %v3273
      %v3345 = vunpack.c.l.b16 %v3274
      %v3346 = vunpack.c.l.b16 %v3275
      %v3347 = vunpack.c.l.b16 %v3276
      %v3348 = vunpack.c.l.b16 %v3277
      %v3349 = vunpack.c.l.b16 %v3278
      %v3350 = vunpack.c.l.b16 %v3279
      %v3351 = vunpack.c.l.b16 %v3280
      %v3352 = vunpack.c.l.b16 %v3281
      %v3353 = vunpack.c.l.b16 %v3282
      %v3354 = vunpack.c.l.b16 %v3283
      %v3355 = vunpack.c.l.b16 %v3284
      %v3356 = vunpack.c.l.b16 %v3285
      %v3357 = vunpack.c.l.b16 %v3286
      %v3358 = vunpack.c.l.b16 %v3287
      %v3359 = vunpack.c.l.b16 %v3288
      %v3360 = vunpack.c.l.b16 %v3289
      %v3361 = vunpack.c.l.b16 %v3290
      %v3362 = vunpack.c.l.b16 %v3291
      %v3363 = vunpack.c.l.b16 %v3292
      %v3364 = vunpack.c.l.b16 %v3293
      %v3365 = vunpack.c.l.b16 %v3294
      %v3366 = vunpack.c.l.b16 %v3295
      %v3367 = vunpack.c.l.b16 %v3296
      %v3368 = vunpack.c.l.b16 %v3297
      %v3369 = vunpack.c.l.b16 %v3298
      %v3370 = vunpack.c.l.b16 %v3299
      %v3371 = vunpack.c.l.b16 %v3300
      %v3372 = vunpack.c.l.b16 %v3301
      %v3373 = vunpack.c.l.b16 %v3302
      %v3374 = vunpack.c.l.b16 %v3303
      %v3375 = vpack.c.b16 %v3344, %v3343
      %v3376 = vpack.c.b16 %v3346, %v3345
      %v3377 = vpack.c.b16 %v3348, %v3347
      %v3378 = vpack.c.b16 %v3350, %v3349
      %v3379 = vpack.c.b16 %v3352, %v3351
      %v3380 = vpack.c.b16 %v3354, %v3353
      %v3381 = vpack.c.b16 %v3356, %v3355
      %v3382 = vpack.c.b16 %v3358, %v3357
      %v3383 = vpack.c.b16 %v3360, %v3359
      %v3384 = vpack.c.b16 %v3362, %v3361
      %v3385 = vpack.c.b16 %v3364, %v3363
      %v3386 = vpack.c.b16 %v3366, %v3365
      %v3387 = vpack.c.b16 %v3368, %v3367
      %v3388 = vpack.c.b16 %v3370, %v3369
      %v3389 = vpack.c.b16 %v3372, %v3371
      %v3390 = vpack.c.b16 %v3374, %v3373
      %3407 = vmatprep.subr.bf16.mxu0 0
      %3408 = vmatpush1.bf16.msra.mxu0 %v3375
      %3409 = vmatprep.subr.bf16.mxu0 0
      %3410 = vmatpush1.bf16.msra.mxu0 %v3376
      %3411 = vmatprep.subr.bf16.mxu0 0
      %3412 = vmatpush1.bf16.msra.mxu0 %v3377
      %3413 = vmatprep.subr.bf16.mxu0 0
      %3414 = vmatpush1.bf16.msra.mxu0 %v3378
      %3415 = vmatprep.subr.bf16.mxu0 0
      %3416 = vmatpush1.bf16.msra.mxu0 %v3379
      %3417 = vmatprep.subr.bf16.mxu0 0
      %3418 = vmatpush1.bf16.msra.mxu0 %v3380
      %3419 = vmatprep.subr.bf16.mxu0 0
      %3420 = vmatpush1.bf16.msra.mxu0 %v3381
      %3421 = vmatprep.subr.bf16.mxu0 0
      %3422 = vmatpush1.bf16.msra.mxu0 %v3382
      %3423 = vmatprep.subr.bf16.mxu0 0
      %3424 = vmatpush1.bf16.msra.mxu0 %v3383
      %3425 = vmatprep.subr.bf16.mxu0 0
      %3426 = vmatpush1.bf16.msra.mxu0 %v3384
      %3427 = vmatprep.subr.bf16.mxu0 0
      %3428 = vmatpush1.bf16.msra.mxu0 %v3385
      %3429 = vmatprep.subr.bf16.mxu0 0
      %3430 = vmatpush1.bf16.msra.mxu0 %v3386
      %3431 = vmatprep.subr.bf16.mxu0 0
      %3432 = vmatpush1.bf16.msra.mxu0 %v3387
      %3433 = vmatprep.subr.bf16.mxu0 0
      %3434 = vmatpush1.bf16.msra.mxu0 %v3388
      %3435 = vmatprep.subr.bf16.mxu0 0
      %3436 = vmatpush1.bf16.msra.mxu0 %v3389
      %3437 = vmatprep.subr.bf16.mxu0 0
      %3438 = vmatpush1.bf16.msra.mxu0 %v3390
      %3439 = vmatprep.mubr.bf16.mxu0 %v3267
      %3440 = vmatmul.mubr.bf16.gmra.mrb[0].mxu0 %v3266
      %v3441 = vpop.f32.mrb[0].mxu0
      %v3442 = vadd.f32 %v3309, %v3441
      %v3443 = vpop.f32.mrb[0].mxu0
      %v3444 = vpop.f32.mrb[0].mxu0
      %v3445 = vadd.f32 %v3309, %v3444
      %v3446 = vpop.f32.mrb[0].mxu0
      %3447 = vmatprep.mubr.bf16.mxu0 %v3269
      %3448 = vmatmul.mubr.bf16.gmra.mrb[0].mxu0 %v3268
      %v3449 = vpop.f32.mrb[0].mxu0
      %v3450 = vadd.f32 %v3309, %v3449
      %v3451 = vpop.f32.mrb[0].mxu0
      %v3452 = vpop.f32.mrb[0].mxu0
      %v3453 = vadd.f32 %v3309, %v3452
      %v3454 = vpop.f32.mrb[0].mxu0
      %3455 = vmatprep.mubr.bf16.mxu0 %v3271
      %3456 = vmatmul.mubr.bf16.gmra.mrb[0].mxu0 %v3270
      %v3457 = vpop.f32.mrb[0].mxu0
      %v3458 = vadd.f32 %v3309, %v3457
      %v3459 = vpop.f32.mrb[0].mxu0
      %v3460 = vpop.f32.mrb[0].mxu0
      %v3461 = vadd.f32 %v3309, %v3460
      %v3462 = vpop.f32.mrb[0].mxu0
      %3463 = vdwg.mxu0
      %v3464 = vadd.f32 %v2817, %v3442
      %v3465 = vadd.f32 %v2818, %v3445
      %v3466 = vadd.f32 %v2819, %v3450
      %v3467 = vadd.f32 %v2820, %v3453
      %v3468 = vadd.f32 %v2821, %v3458
      %v3469 = vadd.f32 %v2822, %v3461
      %3470 = vst.msk [vmem:[#allocation2] sm:$0xff] %vm1293, %v3464
      %3471 = vst.msk [vmem:[#allocation2 + $0x8] sm:$0xff] %vm1293, %v3465
      %3472 = vst.msk [vmem:[#allocation2 + $0x10] sm:$0xff] %vm1293, %v3466
      %3473 = vst.msk [vmem:[#allocation2 + $0x18] sm:$0xff] %vm1293, %v3467
      %3474 = vst.msk [vmem:[#allocation2 + $0x20] sm:$0xff] %vm1293, %v3468
      %3475 = vst.msk [vmem:[#allocation2 + $0x28] sm:$0xff] %vm1293, %v3469
      %p3476 = scmp.eq.s32.totalorder %s30, 1
      // Predicated region
      $region101: #{diffusion_transformer_forward.1} parent=95 // pred_check
        %p3477 = pneg %p3476
      $region102: #{diffusion_transformer_forward.1} parent=95 // pred_check_branch
        %3479 = sbr.rel (%p3477) target = $region104
      $region103: #{diffusion_transformer_forward.1} parent=95 // pred_region
        %v3480 = vpack.c.bf16 %v3465, %v3464
        %v3481 = vpack.c.bf16 %v3467, %v3466
        %v3482 = vpack.c.bf16 %v3469, %v3468
        %v3483 = vld [vmem:[%s18] sm:$0xf]
        %v3484 = vld [vmem:[%s18 + $0x4] sm:$0xf]
        %v3485 = vld [vmem:[%s18 + $0x8] sm:$0xf]
        %v3486 = vld [vmem:[%s18 + $0xc] sm:$0xf]
        %v3487 = vld [vmem:[%s18 + $0x10] sm:$0xf]
        %v3488 = vld [vmem:[%s18 + $0x14] sm:$0xf]
        %v3489 = vld [vmem:[%s18 + $0x18] sm:$0xf]
        %v3490 = vld [vmem:[%s18 + $0x1c] sm:$0xf]
        %v3499 = vunpack.c.l.b16 %v3483
        %v3500 = vunpack.c.l.b16 %v3484
        %v3501 = vunpack.c.l.b16 %v3485
        %v3502 = vunpack.c.l.b16 %v3486
        %v3503 = vunpack.c.l.b16 %v3487
        %v3504 = vunpack.c.l.b16 %v3488
        %v3505 = vunpack.c.l.b16 %v3489
        %v3506 = vunpack.c.l.b16 %v3490
        %v3507 = vpack.c.b16 %v3500, %v3499
        %v3508 = vpack.c.b16 %v3502, %v3501
        %v3509 = vpack.c.b16 %v3504, %v3503
        %v3510 = vpack.c.b16 %v3506, %v3505
        %v3516 = vsel %vm1293, %v3480, 0
        %v3519 = vsel %vm1293, %v3481, 0
        %v3522 = vsel %vm1293, %v3482, 0
        %3524 = vmatprep.subr.bf16.mxu0 0
        %3525 = vmatpush1.bf16.msra.mxu0 %v3507
        %3526 = vmatprep.subr.bf16.mxu0 0
        %3527 = vmatpush1.bf16.msra.mxu0 %v3508
        %3528 = vmatprep.subr.bf16.mxu0 0
        %3529 = vmatpush1.bf16.msra.mxu0 %v3509
        %3530 = vmatprep.subr.bf16.mxu0 0
        %3531 = vmatpush1.bf16.msra.mxu0 %v3510
        %3532 = vmatprep.subr.bf16.mxu0 0
        %3533 = vmatpush1.bf16.msra.mxu0 0
        %3534 = vmatprep.subr.bf16.mxu0 0
        %3535 = vmatpush1.bf16.msra.mxu0 0
        %3536 = vmatprep.subr.bf16.mxu0 0
        %3537 = vmatpush1.bf16.msra.mxu0 0
        %3538 = vmatprep.subr.bf16.mxu0 0
        %3539 = vmatpush1.bf16.msra.mxu0 0
        %3540 = vmatprep.subr.bf16.mxu0 0
        %3541 = vmatpush1.bf16.msra.mxu0 0
        %3542 = vmatprep.subr.bf16.mxu0 0
        %3543 = vmatpush1.bf16.msra.mxu0 0
        %3544 = vmatprep.subr.bf16.mxu0 0
        %3545 = vmatpush1.bf16.msra.mxu0 0
        %3546 = vmatprep.subr.bf16.mxu0 0
        %3547 = vmatpush1.bf16.msra.mxu0 0
        %3548 = vmatprep.subr.bf16.mxu0 0
        %3549 = vmatpush1.bf16.msra.mxu0 0
        %3550 = vmatprep.subr.bf16.mxu0 0
        %3551 = vmatpush1.bf16.msra.mxu0 0
        %3552 = vmatprep.subr.bf16.mxu0 0
        %3553 = vmatpush1.bf16.msra.mxu0 0
        %3554 = vmatprep.subr.bf16.mxu0 0
        %3555 = vmatpush1.bf16.msra.mxu0 0
        %3556 = vmatprep.mubr.bf16.mxu0 0
        %3557 = vmatmul.mubr.bf16.gmra.mrb[0].mxu0 %v3516
        %v3558 = vpop.f32.mrb[0].mxu0
        %v3559 = vadd.f32 0.0, %v3558
        %v3560 = vpop.f32.mrb[0].mxu0
        %v3561 = vpop.f32.mrb[0].mxu0
        %v3562 = vadd.f32 0.0, %v3561
        %v3563 = vpop.f32.mrb[0].mxu0
        %3564 = vmatprep.mubr.bf16.mxu0 0
        %3565 = vmatmul.mubr.bf16.gmra.mrb[0].mxu0 %v3519
        %v3566 = vpop.f32.mrb[0].mxu0
        %v3567 = vadd.f32 0.0, %v3566
        %v3568 = vpop.f32.mrb[0].mxu0
        %v3569 = vpop.f32.mrb[0].mxu0
        %v3570 = vadd.f32 0.0, %v3569
        %v3571 = vpop.f32.mrb[0].mxu0
        %3572 = vmatprep.mubr.bf16.mxu0 0
        %3573 = vmatmul.mubr.bf16.gmra.mrb[0].mxu0 %v3522
        %v3574 = vpop.f32.mrb[0].mxu0
        %v3575 = vadd.f32 0.0, %v3574
        %v3576 = vpop.f32.mrb[0].mxu0
        %v3577 = vpop.f32.mrb[0].mxu0
        %v3578 = vadd.f32 0.0, %v3577
        %v3579 = vpop.f32.mrb[0].mxu0
        %3580 = vdwg.mxu0
        %vm3581 = vcmask 130049
        %3582 = vst.msk [vmem:[%s19 - $0x1] sm:$0xfe] %vm3581, %v3559
        %vm3583 = vcmask 130048
        %3584 = vst.msk [vmem:[%s19 + $0x7] sm:$0xff] %vm3583, %v3562
        %vm3585 = vcmask 122880
        %3586 = vst.msk [vmem:[%s19 + $0xf] sm:$0x1] %vm3585, %v3567
        %s3587 = scalar_lea.vmem %s19, 16
        %3588 = vst.msk [vmem:[%s3587 - $0x1] sm:$0xfe] %vm3581, %v3570
        %3589 = vst.msk [vmem:[%s3587 + $0x7] sm:$0xff] %vm3583, %v3575
        %3590 = vst.msk [vmem:[%s3587 + $0xf] sm:$0x1] %vm3585, %v3578
      $region104: #{diffusion_transformer_forward.1} parent=95 // pred_fallthru
        _
      // Predicated region
      $region105: #{diffusion_transformer_forward.1} parent=95 // pred_check
        %p3591 = pneg %p482
      $region106: #{diffusion_transformer_forward.1} parent=95 // pred_check_branch
        %3593 = sbr.rel (%p3591) target = $region108
      $region107: #{diffusion_transformer_forward.1} parent=95 // pred_region
        _
      $region108: #{diffusion_transformer_forward.1} parent=95 // pred_fallthru
        _
      // Predicated region
      $region109: #{diffusion_transformer_forward.1} parent=95 // pred_check
        %p3594 = pneg %p482
      $region110: #{diffusion_transformer_forward.1} parent=95 // pred_check_branch
        %3596 = sbr.rel (%p3594) target = $region112
      $region111: #{diffusion_transformer_forward.1} parent=95 // pred_region
        _
      $region112: #{diffusion_transformer_forward.1} parent=95 // pred_fallthru
        _
    $region96: #{diffusion_transformer_forward.1} parent=5 // pred_fallthru
      _
    %p3597 = scmp.le.s32.totalorder 2, %s25
    // Predicated region
    $region113: #{diffusion_transformer_forward.1} parent=5 // pred_check
      %p3598 = pneg %p3597
    $region114: #{diffusion_transformer_forward.1} parent=5 // pred_check_branch
      %3600 = sbr.rel (%p3598) target = $region116
    $region115: #{diffusion_transformer_forward.1} parent=5 // pred_region
      %s3601 = ssub.s32 %s25, 2
    $region116: #{diffusion_transformer_forward.1} parent=5 // pred_fallthru
      _
  $region6: #{diffusion_transformer_forward.1} parent=0 // loop_footer
    %s29 = sadd.s32 1, %s25
  $region7: #{diffusion_transformer_forward.1} parent=0 // loop_footer_branch
    %24 = sbr.rel target = $region3
  $region8: #{diffusion_transformer_forward.1} parent=0 // loop_exit
    _

</llo_original>
